<compile_context>
chip_gen: v6e
topology: v6e:2x2x1
jax: 0.10.0
libtpu: 0.0.40
codegen_flags: <defaults>
</compile_context>

<pallas_src>
import jax
import jax.numpy as jnp
from jax.experimental import pallas as pl
from jax.experimental.pallas import tpu as pltpu


# ----------------------------------------------------------------------------- helpers
def _num_tensorcores():
    """Grid steps = TensorCores per chip: 2 on megacore (v4/v5p) and v7x, else 1."""
    try:
        kind = (jax.devices()[0].device_kind or "").lower()
    except Exception:
        return 1
    if ("v7" in kind) or ("v4" in kind) or ("v5p" in kind):
        return 2
    return 1


# ----------------------------------------------------------------------------- forward
def patch_embedding_forward(x_nchw, p, emb_size=128, grid_steps=None, use_bf16=False):
    """x_nchw: (B, 1, 4, W) float32, NCHW like the PyTorch module. Returns (B, seq, emb)."""
    B, C, H, W = x_nchw.shape
    assert C == 1 and H == 4, "PatchEmbedding expects input (B, 1, 4, W)"
    eps = 1e-5
    f32 = jnp.float32
    mmdt = jnp.bfloat16 if use_bf16 else f32   # matmul operand dtype (accum always f32)

    # ---- spatial bookkeeping --------------------------------------------------
    KW1, KH2, KW3 = 7, 4, 3
    W1 = W - (KW1 - 1)               # after fused conv1(1,7)+conv2(4,1)
    W1p = (W1 - 3) // 2 + 1          # after avgpool (1,3)/(1,2)
    W2 = W1p - (KW3 - 1)             # after conv3 (1,3)
    W2p = (W2 - 3) // 2 + 1          # after avgpool (1,3)/(1,2)
    assert W1 >= 3 and W2 >= 3, "W too small for this network"

    # ---- grid sizing: one step per TensorCore ----------------------------------
    G = grid_steps if grid_steps is not None else _num_tensorcores()
    G = max(1, min(G, B))
    Bt = -(-B // G)
    Bt = -(-Bt // 8) * 8             # multiple of 8 -> sublane-aligned row blocks
    Bp = G * Bt                      # padded batch

    # ---- fold conv1 + conv2 + BN1 into one (28, 64) weight + bias (host side) --
    w1 = p["w1"][:, 0, 0, :].astype(f32)                    # (64, 7)     [c1, kw]
    w2 = p["w2"][:, :, :, 0].astype(f32)                    # (64, 64, 4) [c2, c1, h]
    a1 = p["bn1_g"] / jnp.sqrt(p["bn1_v"] + eps)
    c1s = p["bn1_b"] - p["bn1_m"] * a1
    wf = jnp.einsum("ik,oih->hko", w1, w2).reshape(KH2 * KW1, -1)   # (28, 64) [(h,kw), c2]
    bias_f = p["b2"] + jnp.einsum("i,oih->o", p["b1"], w2)
    wf = wf * a1[None, :]
    bias1 = bias_f * a1 + c1s                                # (64,)

    # ---- fold BN2 into conv3, fuse the 3 taps into one (192, 96) weight ---------
    a2 = p["bn2_g"] / jnp.sqrt(p["bn2_v"] + eps)
    c2s = p["bn2_b"] - p["bn2_m"] * a2
    w3 = jnp.transpose(p["w3"][:, :, 0, :], (2, 1, 0)) * a2[None, None, :]  # (3, 64, 96)
    C1 = w3.shape[1]                 # 64
    C3 = w3.shape[2]                 # 96
    w3f = w3.reshape(KW3 * C1, C3)   # (192, 96), row = kw*64 + ci
    bias2 = p["b3"] * a2 + c2s                               # (96,)
    w4 = jnp.transpose(p["w4"][:, :, 0, 0], (1, 0))          # (96, emb)
    bias4 = p["b4"]                                          # (emb,)

    # ---- pack the small bias vectors into one lane-dense array ------------------
    bw = max(128, emb_size)
    biases = jnp.zeros((3, bw), f32)
    biases = biases.at[0, :C1].set(bias1).at[1, :C3].set(bias2).at[2, :emb_size].set(bias4)

    # ---- wrapper-side im2col, width-major batch stacking -------------------------
    x0 = x_nchw[:, 0].astype(f32)                            # (B, 4, W)
    if Bp != B:
        x0 = jnp.pad(x0, ((0, Bp - B), (0, 0), (0, 0)))
    cols = jnp.stack([x0[:, :, kw:kw + W1] for kw in range(KW1)], axis=-1)  # (Bp,4,W1,7)
    xe = jnp.transpose(cols, (0, 2, 1, 3)).reshape(Bp, W1, KH2 * KW1)       # (Bp,W1,28)
    xe = xe.reshape(G, Bt, W1, KH2 * KW1).transpose(0, 2, 1, 3)
    xe = xe.reshape(G * W1 * Bt, KH2 * KW1)                  # row = (g*W1 + w)*Bt + b_local

    # cast matmul operands (no-op when mmdt == f32)
    xe = xe.astype(mmdt)
    wf = wf.astype(mmdt)
    w3f = w3f.astype(mmdt)
    w4 = w4.astype(mmdt)

    # ---- kernel -------------------------------------------------------------------
    def kernel(xe_ref, wf_ref, w3_ref, w4_ref, b_ref, out_ref, s1_ref, s2_ref):
        def elu(v):
            return jnp.where(v > 0, v, jnp.exp(jnp.minimum(v, 0.0)) - 1.0)

        b1_ = b_ref[0:1, :C1]                 # (1, 64)
        b2_ = b_ref[1:2, :C3]                 # (1, 96)
        b4_ = b_ref[2:3, :emb_size]           # (1, emb)

        # stage 1: fused conv1(1x7)+conv2(4x1)+BN1 as one matmul, then ELU
        y = jnp.dot(xe_ref[...], wf_ref[...], preferred_element_type=jnp.float32) + b1_
        y = elu(y)                            # (W1*Bt, 64) f32
        s1_ref[...] = y.reshape(W1, Bt, C1)

        # avgpool #1 (1,3)/(1,2): 3 strided row-block reads + 1/3 scale (VPU only)
        # (Dropout(0.3): eval -> identity)
        p1 = (s1_ref[pl.ds(0, W1p, stride=2), :, :]
              + s1_ref[pl.ds(1, W1p, stride=2), :, :]
              + s1_ref[pl.ds(2, W1p, stride=2), :, :]) * (1.0 / 3.0)   # (W1p, Bt, 64)

        # conv3 (1x3) 64->96 with BN2 folded, fused into a single K=192 matmul
        p1m = p1.astype(mmdt)
        x3 = jnp.concatenate([p1m[kw:kw + W2] for kw in range(KW3)], axis=-1)  # (W2,Bt,192)
        z = jnp.dot(x3.reshape(W2 * Bt, KW3 * C1), w3_ref[...],
                    preferred_element_type=jnp.float32) + b2_
        z = elu(z)                            # (W2*Bt, 96) f32
        s2_ref[...] = z.reshape(W2, Bt, C3)

        # avgpool #2 (Dropout(0.4): eval -> identity)
        p2 = (s2_ref[pl.ds(0, W2p, stride=2), :, :]
              + s2_ref[pl.ds(1, W2p, stride=2), :, :]
              + s2_ref[pl.ds(2, W2p, stride=2), :, :]) * (1.0 / 3.0)   # (W2p, Bt, 96)

        # projection: 1x1 conv + Rearrange('b e h w -> b (h w) e')  (h == 1)
        out = jnp.dot(p2.reshape(W2p * Bt, C3).astype(mmdt), w4_ref[...],
                      preferred_element_type=jnp.float32) + b4_
        out_ref[...] = out.astype(out_ref.dtype)

    def const_spec(a):
        return pl.BlockSpec(a.shape, lambda i: (0, 0))

    out = pl.pallas_call(
        kernel,
        out_shape=jax.ShapeDtypeStruct((G * W2p * Bt, emb_size), jnp.float32),
        grid_spec=pltpu.PrefetchScalarGridSpec(
            num_scalar_prefetch=0,
            grid=(G,),
            in_specs=[pl.BlockSpec((W1 * Bt, KH2 * KW1), lambda i: (i, 0)),
                      const_spec(wf), const_spec(w3f), const_spec(w4),
                      const_spec(biases)],
            out_specs=pl.BlockSpec((W2p * Bt, emb_size), lambda i: (i, 0)),
            scratch_shapes=[pltpu.VMEM((W1, Bt, C1), jnp.float32),
                            pltpu.VMEM((W2, Bt, C3), jnp.float32)],
        ),
        compiler_params=pltpu.CompilerParams(dimension_semantics=("parallel",)),
    )(xe, wf, w3f, w4, biases)

    # un-stack width-major rows: row = (g, w2p, b_local) -> (B, W2p, emb)
    out = out.reshape(G, W2p, Bt, emb_size).transpose(0, 2, 1, 3)
    out = out.reshape(Bp, W2p, emb_size)[:B]
    return out


# ----------------------------------------------------------------------------- params
def make_params(key, emb_size=128):
    ks = jax.random.split(key, 18)

    def nrm(k, shape, s):
        return (s * jax.random.normal(k, shape)).astype(jnp.float32)

    return {
        "w1": nrm(ks[0], (64, 1, 1, 7), 0.3),
        "b1": nrm(ks[1], (64,), 0.1),
        "w2": nrm(ks[2], (64, 64, 4, 1), 0.08),
        "b2": nrm(ks[3], (64,), 0.1),
        "bn1_g": (1.0 + 0.1 * jax.random.normal(ks[4], (64,))).astype(jnp.float32),
        "bn1_b": nrm(ks[5], (64,), 0.1),
        "bn1_m": nrm(ks[6], (64,), 0.1),
        "bn1_v": jax.random.uniform(ks[7], (64,), jnp.float32, 0.5, 1.5),
        "w3": nrm(ks[8], (96, 64, 1, 3), 0.08),
        "b3": nrm(ks[9], (96,), 0.1),
        "bn2_g": (1.0 + 0.1 * jax.random.normal(ks[10], (96,))).astype(jnp.float32),
        "bn2_b": nrm(ks[11], (96,), 0.1),
        "bn2_m": nrm(ks[12], (96,), 0.1),
        "bn2_v": jax.random.uniform(ks[13], (96,), jnp.float32, 0.5, 1.5),
        "w4": nrm(ks[14], (emb_size, 96, 1, 1), 0.1),
        "b4": nrm(ks[15], (emb_size,), 0.1),
    }


# ----------------------------------------------------------------------------- reference
def reference_forward(x_nchw, p, emb_size=128):
    eps = 1e-5
    dn = ("NCHW", "OIHW", "NCHW")
    prec = jax.lax.Precision.HIGHEST

    def conv(x, w, b):
        y = jax.lax.conv_general_dilated(
            x, w, (1, 1), "VALID", dimension_numbers=dn, precision=prec)
        return y + b[None, :, None, None]

    def bn(x, g, bta, m, v):
        inv = g / jnp.sqrt(v + eps)
        return (x - m[None, :, None, None]) * inv[None, :, None, None] + bta[None, :, None, None]

    def elu(x):
        return jnp.where(x > 0, x, jnp.exp(jnp.minimum(x, 0.0)) - 1.0)

    def avgpool(x):
        s = jax.lax.reduce_window(x, 0.0, jax.lax.add, (1, 1, 1, 3), (1, 1, 1, 2), "VALID")
        return s / 3.0

    y = conv(x_nchw, p["w1"], p["b1"])
    y = conv(y, p["w2"], p["b2"])
    y = avgpool(elu(bn(y, p["bn1_g"], p["bn1_b"], p["bn1_m"], p["bn1_v"])))
    y = conv(y, p["w3"], p["b3"])
    y = avgpool(elu(bn(y, p["bn2_g"], p["bn2_b"], p["bn2_m"], p["bn2_v"])))
    y = conv(y, p["w4"], p["b4"])                      # (B, emb, 1, Wp)
    B, E, Hh, Wp = y.shape
    return jnp.transpose(y, (0, 2, 3, 1)).reshape(B, Hh * Wp, E)


# ----------------------------------------------------------------------------- main
if __name__ == "__main__":
    key = jax.random.PRNGKey(0)
    kx, kp = jax.random.split(key)

    B, H, W, EMB = 16, 4, 64, 128
    x = jax.random.normal(kx, (B, 1, H, W), jnp.float32)   # NCHW, like the PyTorch module
    params = make_params(kp, emb_size=EMB)

    ref = reference_forward(x, params, emb_size=EMB)

    # f32 path, grid auto-sized to the TensorCore count of this chip.
    out = patch_embedding_forward(x, params, emb_size=EMB)
    out = jax.block_until_ready(out)
    assert out.shape == ref.shape == (B, 12, EMB), (out.shape, ref.shape)
    err = float(jnp.max(jnp.abs(out - ref)))
    if not err < 2e-2:
        raise AssertionError(f"kernel/reference mismatch: max abs err {err}")

    # Explicit 2-step (v7x-style megacore) grid path: must also match tightly.
    out2 = patch_embedding_forward(x, params, emb_size=EMB, grid_steps=2)
    out2 = jax.block_until_ready(out2)
    err2 = float(jnp.max(jnp.abs(out2 - ref)))
    if not err2 < 2e-2:
        raise AssertionError(f"grid_steps=2 mismatch: max abs err {err2}")

    # bf16 MXU-operand path (perf option on v6e/v7x; native MXU dtype on v5e).
    out_bf = patch_embedding_forward(x, params, emb_size=EMB, use_bf16=True)
    out_bf = jax.block_until_ready(out_bf)
    err_bf = float(jnp.max(jnp.abs(out_bf - ref)))
    if not err_bf < 1.5e-1:
        raise AssertionError(f"bf16 path mismatch: max abs err {err_bf}")

    print("KERNEL_OK")
</pallas_src>

<mosaic_0001>
module attributes {stable_mosaic.version = 11 : i64} {
  func.func @kernel(%arg0: i32, %arg1: memref<928x28xf32, #tpu.memory_space<vmem>>, %arg2: memref<28x64xf32, #tpu.memory_space<vmem>>, %arg3: memref<192x96xf32, #tpu.memory_space<vmem>>, %arg4: memref<96x128xf32, #tpu.memory_space<vmem>>, %arg5: memref<3x128xf32, #tpu.memory_space<vmem>>, %arg6: memref<192x128xf32, #tpu.memory_space<vmem>>, %arg7: memref<58x16x64xf32, #tpu.memory_space<vmem>>, %arg8: memref<26x16x96xf32, #tpu.memory_space<vmem>>) attributes {dimension_semantics = [#tpu.dimension_semantics<parallel>], iteration_bounds = array<i64: 1>, scalar_prefetch = 0 : i64, scratch_operands = 2 : i64, tpu.core_type = #tpu.core_type<tc>, window_params = [{transform_indices = @transform_0, window_bounds = array<i64: 928, 28>}, {pipeline_mode = #tpu.pipeline_mode<synchronous>, transform_indices = @transform_1, window_bounds = array<i64: 28, 64>}, {pipeline_mode = #tpu.pipeline_mode<synchronous>, transform_indices = @transform_2, window_bounds = array<i64: 192, 96>}, {pipeline_mode = #tpu.pipeline_mode<synchronous>, transform_indices = @transform_3, window_bounds = array<i64: 96, 128>}, {pipeline_mode = #tpu.pipeline_mode<synchronous>, transform_indices = @transform_4, window_bounds = array<i64: 3, 128>}, {transform_indices = @transform_5, window_bounds = array<i64: 192, 128>}]} {
    %c0 = arith.constant 0 : index
    %c0_0 = arith.constant 0 : index
    %0 = vector.load %arg5[%c0, %c0_0] : memref<3x128xf32, #tpu.memory_space<vmem>>, vector<1x64xf32>
    %c1 = arith.constant 1 : index
    %c0_1 = arith.constant 0 : index
    %1 = vector.load %arg5[%c1, %c0_1] : memref<3x128xf32, #tpu.memory_space<vmem>>, vector<1x96xf32>
    %c2 = arith.constant 2 : index
    %c0_2 = arith.constant 0 : index
    %2 = vector.load %arg5[%c2, %c0_2] : memref<3x128xf32, #tpu.memory_space<vmem>>, vector<1x128xf32>
    %c0_3 = arith.constant 0 : index
    %c0_4 = arith.constant 0 : index
    %3 = vector.load %arg1[%c0_3, %c0_4] : memref<928x28xf32, #tpu.memory_space<vmem>>, vector<928x28xf32>
    %c0_5 = arith.constant 0 : index
    %c0_6 = arith.constant 0 : index
    %4 = vector.load %arg2[%c0_5, %c0_6] : memref<28x64xf32, #tpu.memory_space<vmem>>, vector<28x64xf32>
    %cst = arith.constant dense<0.000000e+00> : vector<928x64xf32>
    %5 = tpu.matmul %3, %4, %cst {dimension_numbers = #tpu.dot_dimension_numbers<[1], [0], [0], [1], [0, 0, 1, 1], [], []>} : vector<928x28xf32>, vector<28x64xf32>, vector<928x64xf32> -> vector<928x64xf32>
    %6 = vector.broadcast %0 : vector<1x64xf32> to vector<928x64xf32>
    %7 = arith.addf %5, %6 : vector<928x64xf32>
    %cst_7 = arith.constant 0.000000e+00 : f32
    %8 = vector.broadcast %cst_7 : f32 to vector<928x64xf32>
    %9 = arith.cmpf ogt, %7, %8 : vector<928x64xf32>
    %cst_8 = arith.constant 0.000000e+00 : f32
    %10 = vector.broadcast %cst_8 : f32 to vector<928x64xf32>
    %11 = arith.minimumf %7, %10 : vector<928x64xf32>
    %12 = math.exp %11 : vector<928x64xf32>
    %cst_9 = arith.constant 1.000000e+00 : f32
    %13 = vector.broadcast %cst_9 : f32 to vector<928x64xf32>
    %14 = arith.subf %12, %13 : vector<928x64xf32>
    %15 = arith.select %9, %7, %14 : vector<928x64xi1>, vector<928x64xf32>
    %16 = vector.shape_cast %15 : vector<928x64xf32> to vector<58x16x64xf32>
    %c0_10 = arith.constant 0 : index
    %c0_11 = arith.constant 0 : index
    %c0_12 = arith.constant 0 : index
    %17 = vector.load %arg7[%c0_10, %c0_11, %c0_12] : memref<58x16x64xf32, #tpu.memory_space<vmem>>, vector<58x16x64xf32>
    tpu.vector_store %arg7[%c0_10, %c0_11, %c0_12], %16 {strides = array<i32>} : memref<58x16x64xf32, #tpu.memory_space<vmem>>, vector<58x16x64xf32>,
    %c0_13 = arith.constant 0 : index
    %c0_14 = arith.constant 0 : index
    %c0_15 = arith.constant 0 : index
    %18 = tpu.strided_load %arg7[%c0_13, %c0_14, %c0_15] {strides = array<i32: 2, 1, 1>} : memref<58x16x64xf32, #tpu.memory_space<vmem>>, vector<28x16x64xf32>
    %c1_16 = arith.constant 1 : index
    %c0_17 = arith.constant 0 : index
    %c0_18 = arith.constant 0 : index
    %19 = tpu.strided_load %arg7[%c1_16, %c0_17, %c0_18] {strides = array<i32: 2, 1, 1>} : memref<58x16x64xf32, #tpu.memory_space<vmem>>, vector<28x16x64xf32>
    %20 = arith.addf %18, %19 : vector<28x16x64xf32>
    %c2_19 = arith.constant 2 : index
    %c0_20 = arith.constant 0 : index
    %c0_21 = arith.constant 0 : index
    %21 = tpu.strided_load %arg7[%c2_19, %c0_20, %c0_21] {strides = array<i32: 2, 1, 1>} : memref<58x16x64xf32, #tpu.memory_space<vmem>>, vector<28x16x64xf32>
    %22 = arith.addf %20, %21 : vector<28x16x64xf32>
    %cst_22 = arith.constant 0.333333343 : f32
    %23 = vector.broadcast %cst_22 : f32 to vector<28x16x64xf32>
    %24 = arith.mulf %22, %23 : vector<28x16x64xf32>
    %25 = vector.extract_strided_slice %24 {offsets = [0, 0, 0], sizes = [26, 16, 64], strides = [1, 1, 1]} : vector<28x16x64xf32> to vector<26x16x64xf32>
    %26 = vector.extract_strided_slice %24 {offsets = [1, 0, 0], sizes = [26, 16, 64], strides = [1, 1, 1]} : vector<28x16x64xf32> to vector<26x16x64xf32>
    %27 = vector.extract_strided_slice %24 {offsets = [2, 0, 0], sizes = [26, 16, 64], strides = [1, 1, 1]} : vector<28x16x64xf32> to vector<26x16x64xf32>
    %28 = tpu.concatenate %25, %26, %27 in 2 : vector<26x16x64xf32>, vector<26x16x64xf32>, vector<26x16x64xf32> -> vector<26x16x192xf32>
    %29 = vector.shape_cast %28 : vector<26x16x192xf32> to vector<416x192xf32>
    %c0_23 = arith.constant 0 : index
    %c0_24 = arith.constant 0 : index
    %30 = vector.load %arg3[%c0_23, %c0_24] : memref<192x96xf32, #tpu.memory_space<vmem>>, vector<192x96xf32>
    %cst_25 = arith.constant dense<0.000000e+00> : vector<416x96xf32>
    %31 = tpu.matmul %29, %30, %cst_25 {dimension_numbers = #tpu.dot_dimension_numbers<[1], [0], [0], [1], [0, 0, 1, 1], [], []>} : vector<416x192xf32>, vector<192x96xf32>, vector<416x96xf32> -> vector<416x96xf32>
    %32 = vector.broadcast %1 : vector<1x96xf32> to vector<416x96xf32>
    %33 = arith.addf %31, %32 : vector<416x96xf32>
    %cst_26 = arith.constant 0.000000e+00 : f32
    %34 = vector.broadcast %cst_26 : f32 to vector<416x96xf32>
    %35 = arith.cmpf ogt, %33, %34 : vector<416x96xf32>
    %cst_27 = arith.constant 0.000000e+00 : f32
    %36 = vector.broadcast %cst_27 : f32 to vector<416x96xf32>
    %37 = arith.minimumf %33, %36 : vector<416x96xf32>
    %38 = math.exp %37 : vector<416x96xf32>
    %cst_28 = arith.constant 1.000000e+00 : f32
    %39 = vector.broadcast %cst_28 : f32 to vector<416x96xf32>
    %40 = arith.subf %38, %39 : vector<416x96xf32>
    %41 = arith.select %35, %33, %40 : vector<416x96xi1>, vector<416x96xf32>
    %42 = vector.shape_cast %41 : vector<416x96xf32> to vector<26x16x96xf32>
    %c0_29 = arith.constant 0 : index
    %c0_30 = arith.constant 0 : index
    %c0_31 = arith.constant 0 : index
    %43 = vector.load %arg8[%c0_29, %c0_30, %c0_31] : memref<26x16x96xf32, #tpu.memory_space<vmem>>, vector<26x16x96xf32>
    tpu.vector_store %arg8[%c0_29, %c0_30, %c0_31], %42 {strides = array<i32>} : memref<26x16x96xf32, #tpu.memory_space<vmem>>, vector<26x16x96xf32>,
    %c0_32 = arith.constant 0 : index
    %c0_33 = arith.constant 0 : index
    %c0_34 = arith.constant 0 : index
    %44 = tpu.strided_load %arg8[%c0_32, %c0_33, %c0_34] {strides = array<i32: 2, 1, 1>} : memref<26x16x96xf32, #tpu.memory_space<vmem>>, vector<12x16x96xf32>
    %c1_35 = arith.constant 1 : index
    %c0_36 = arith.constant 0 : index
    %c0_37 = arith.constant 0 : index
    %45 = tpu.strided_load %arg8[%c1_35, %c0_36, %c0_37] {strides = array<i32: 2, 1, 1>} : memref<26x16x96xf32, #tpu.memory_space<vmem>>, vector<12x16x96xf32>
    %46 = arith.addf %44, %45 : vector<12x16x96xf32>
    %c2_38 = arith.constant 2 : index
    %c0_39 = arith.constant 0 : index
    %c0_40 = arith.constant 0 : index
    %47 = tpu.strided_load %arg8[%c2_38, %c0_39, %c0_40] {strides = array<i32: 2, 1, 1>} : memref<26x16x96xf32, #tpu.memory_space<vmem>>, vector<12x16x96xf32>
    %48 = arith.addf %46, %47 : vector<12x16x96xf32>
    %cst_41 = arith.constant 0.333333343 : f32
    %49 = vector.broadcast %cst_41 : f32 to vector<12x16x96xf32>
    %50 = arith.mulf %48, %49 : vector<12x16x96xf32>
    %51 = vector.shape_cast %50 : vector<12x16x96xf32> to vector<192x96xf32>
    %c0_42 = arith.constant 0 : index
    %c0_43 = arith.constant 0 : index
    %52 = vector.load %arg4[%c0_42, %c0_43] : memref<96x128xf32, #tpu.memory_space<vmem>>, vector<96x128xf32>
    %cst_44 = arith.constant dense<0.000000e+00> : vector<192x128xf32>
    %53 = tpu.matmul %51, %52, %cst_44 {dimension_numbers = #tpu.dot_dimension_numbers<[1], [0], [0], [1], [0, 0, 1, 1], [], []>} : vector<192x96xf32>, vector<96x128xf32>, vector<192x128xf32> -> vector<192x128xf32>
    %54 = vector.broadcast %2 : vector<1x128xf32> to vector<192x128xf32>
    %55 = arith.addf %53, %54 : vector<192x128xf32>
    %c0_45 = arith.constant 0 : index
    %c0_46 = arith.constant 0 : index
    %56 = vector.load %arg6[%c0_45, %c0_46] : memref<192x128xf32, #tpu.memory_space<vmem>>, vector<192x128xf32>
    tpu.vector_store %arg6[%c0_45, %c0_46], %55 {strides = array<i32>} : memref<192x128xf32, #tpu.memory_space<vmem>>, vector<192x128xf32>,
    return
  }
  func.func @transform_0(%arg0: i32) -> (i32, i32) {
    %c0_i32 = arith.constant 0 : i32
    %c0_i32_0 = arith.constant 0 : i32
    return %arg0, %c0_i32 : i32, i32
  }
  func.func @transform_1(%arg0: i32) -> (i32, i32) {
    %c0_i32 = arith.constant 0 : i32
    %c0_i32_0 = arith.constant 0 : i32
    %c0_i32_1 = arith.constant 0 : i32
    return %c0_i32, %c0_i32_0 : i32, i32
  }
  func.func @transform_2(%arg0: i32) -> (i32, i32) {
    %c0_i32 = arith.constant 0 : i32
    %c0_i32_0 = arith.constant 0 : i32
    %c0_i32_1 = arith.constant 0 : i32
    return %c0_i32, %c0_i32_0 : i32, i32
  }
  func.func @transform_3(%arg0: i32) -> (i32, i32) {
    %c0_i32 = arith.constant 0 : i32
    %c0_i32_0 = arith.constant 0 : i32
    %c0_i32_1 = arith.constant 0 : i32
    return %c0_i32, %c0_i32_0 : i32, i32
  }
  func.func @transform_4(%arg0: i32) -> (i32, i32) {
    %c0_i32 = arith.constant 0 : i32
    %c0_i32_0 = arith.constant 0 : i32
    %c0_i32_1 = arith.constant 0 : i32
    return %c0_i32, %c0_i32_0 : i32, i32
  }
  func.func @transform_5(%arg0: i32) -> (i32, i32) {
    %c0_i32 = arith.constant 0 : i32
    %c0_i32_0 = arith.constant 0 : i32
    return %arg0, %c0_i32 : i32, i32
  }
}

</mosaic_0001>

<llo_original>
// kernel: tpu_custom_call.1
$region0: #{tpu_custom_call.1}
  #allocation0 [shape = 'u32[]', space=smem, size = 0x4, offset = 0x4, fixed_abs, tag = 'smem constant byte address 0x4 - core index']
  #allocation1 [shape = 'u32[144,128]{1,0:T(1,128)}', space=vmem, size = 0x12000, scoped, tag = 'internal scratch']
  #allocation2 [shape = 'f32[58,16,64]{2,1,0:T(8,128)}', space=vmem, size = 0x74000, scoped, tag = 'scratch operand']
  #allocation3 [shape = 'f32[26,16,96]{2,1,0:T(8,128)}', space=vmem, size = 0x34000, scoped, tag = 'scratch operand']
  %s0 = inlined_call_operand.vmem [shape: f32[928,28], index: 0, kind: input, shape index: {}]
  %s1 = inlined_call_operand.vmem [shape: f32[28,64], index: 1, kind: input, shape index: {}]
  %s2 = inlined_call_operand.vmem [shape: f32[192,96], index: 2, kind: input, shape index: {}]
  %s3 = inlined_call_operand.vmem [shape: f32[96,128], index: 3, kind: input, shape index: {}]
  %s4 = inlined_call_operand.vmem [shape: f32[3,128], index: 4, kind: input, shape index: {}]
  %s5 = inlined_call_operand.hbm [shape: f32[192,128], index: 5, kind: output, shape index: {}]
  %s6 = sld [smem:[#allocation0]]
  $region30: #{tpu_custom_call.1} parent=0
    _
  %s8 = ssub.s32 1, %s6
  %s9 = scalar_select 0, %s8, %s6
  $region1: #{tpu_custom_call.1} parent=0
    #allocation4 [shape = 'u8[98304]{0}', space=vmem, size = 0x18000, scoped, tag = 'output window, operand 0, single buffered']
    #allocation5 [shape = 's32[1]{0}', space=sflag, size = 0x4, scoped, tag = 'scoped memory for tpu_custom_call.1']
    %10 = vsyncpa [#allocation5], 0
    // Predicated region
    $region2: #{tpu_custom_call.1} parent=1 // pred_check
      _
    $region3: #{tpu_custom_call.1} parent=1 // pred_check_branch
      %12 = sbr.rel (0) target = $region5
    $region4: #{tpu_custom_call.1} parent=1 // pred_region
      _
    $region5: #{tpu_custom_call.1} parent=1 // pred_fallthru
      _
    // Predicated region
    $region6: #{tpu_custom_call.1} parent=1 // pred_check
      _
    $region7: #{tpu_custom_call.1} parent=1 // pred_check_branch
      %14 = sbr.rel (0) target = $region9
    $region8: #{tpu_custom_call.1} parent=1 // pred_region
      _
    $region9: #{tpu_custom_call.1} parent=1 // pred_fallthru
      _
    // Predicated region
    $region10: #{tpu_custom_call.1} parent=1 // pred_check
      _
    $region11: #{tpu_custom_call.1} parent=1 // pred_check_branch
      %16 = sbr.rel (0) target = $region13
    $region12: #{tpu_custom_call.1} parent=1 // pred_region
      _
    $region13: #{tpu_custom_call.1} parent=1 // pred_fallthru
      _
    // Predicated region
    $region14: #{tpu_custom_call.1} parent=1 // pred_check
      _
    $region15: #{tpu_custom_call.1} parent=1 // pred_check_branch
      %18 = sbr.rel (0) target = $region17
    $region16: #{tpu_custom_call.1} parent=1 // pred_region
      _
    $region17: #{tpu_custom_call.1} parent=1 // pred_fallthru
      _
    // Predicated region
    $region18: #{tpu_custom_call.1} parent=1 // pred_check
      _
    $region19: #{tpu_custom_call.1} parent=1 // pred_check_branch
      %20 = sbr.rel (0) target = $region21
    $region20: #{tpu_custom_call.1} parent=1 // pred_region
      _
    $region21: #{tpu_custom_call.1} parent=1 // pred_fallthru
      _
    %v21 = vld [vmem:[%s4] sm:$0x1]
    %v22 = vld [vmem:[%s4 + $0x1] sm:$0x1]
    %v23 = vld [vmem:[%s4 + $0x2] sm:$0x1]
    %v24 = vld [vmem:[%s0] sm:$0xff]
    %v25 = vld [vmem:[%s0 + $0x8] sm:$0xff]
    %v26 = vld [vmem:[%s0 + $0x10] sm:$0xff]
    %v27 = vld [vmem:[%s0 + $0x18] sm:$0xff]
    %v28 = vld [vmem:[%s0 + $0x20] sm:$0xff]
    %v29 = vld [vmem:[%s0 + $0x28] sm:$0xff]
    %v30 = vld [vmem:[%s0 + $0x30] sm:$0xff]
    %v31 = vld [vmem:[%s0 + $0x38] sm:$0xff]
    %v32 = vld [vmem:[%s0 + $0x40] sm:$0xff]
    %v33 = vld [vmem:[%s0 + $0x48] sm:$0xff]
    %v34 = vld [vmem:[%s0 + $0x50] sm:$0xff]
    %v35 = vld [vmem:[%s0 + $0x58] sm:$0xff]
    %v36 = vld [vmem:[%s0 + $0x60] sm:$0xff]
    %v37 = vld [vmem:[%s0 + $0x68] sm:$0xff]
    %v38 = vld [vmem:[%s0 + $0x70] sm:$0xff]
    %v39 = vld [vmem:[%s0 + $0x78] sm:$0xff]
    %v40 = vld [vmem:[%s0 + $0x80] sm:$0xff]
    %v41 = vld [vmem:[%s0 + $0x88] sm:$0xff]
    %v42 = vld [vmem:[%s0 + $0x90] sm:$0xff]
    %v43 = vld [vmem:[%s0 + $0x98] sm:$0xff]
    %v44 = vld [vmem:[%s0 + $0xa0] sm:$0xff]
    %v45 = vld [vmem:[%s0 + $0xa8] sm:$0xff]
    %v46 = vld [vmem:[%s0 + $0xb0] sm:$0xff]
    %v47 = vld [vmem:[%s0 + $0xb8] sm:$0xff]
    %v48 = vld [vmem:[%s0 + $0xc0] sm:$0xff]
    %v49 = vld [vmem:[%s0 + $0xc8] sm:$0xff]
    %v50 = vld [vmem:[%s0 + $0xd0] sm:$0xff]
    %v51 = vld [vmem:[%s0 + $0xd8] sm:$0xff]
    %v52 = vld [vmem:[%s0 + $0xe0] sm:$0xff]
    %v53 = vld [vmem:[%s0 + $0xe8] sm:$0xff]
    %v54 = vld [vmem:[%s0 + $0xf0] sm:$0xff]
    %v55 = vld [vmem:[%s0 + $0xf8] sm:$0xff]
    %v56 = vld [vmem:[%s0 + $0x100] sm:$0xff]
    %v57 = vld [vmem:[%s0 + $0x108] sm:$0xff]
    %v58 = vld [vmem:[%s0 + $0x110] sm:$0xff]
    %v59 = vld [vmem:[%s0 + $0x118] sm:$0xff]
    %v60 = vld [vmem:[%s0 + $0x120] sm:$0xff]
    %v61 = vld [vmem:[%s0 + $0x128] sm:$0xff]
    %v62 = vld [vmem:[%s0 + $0x130] sm:$0xff]
    %v63 = vld [vmem:[%s0 + $0x138] sm:$0xff]
    %v64 = vld [vmem:[%s0 + $0x140] sm:$0xff]
    %v65 = vld [vmem:[%s0 + $0x148] sm:$0xff]
    %v66 = vld [vmem:[%s0 + $0x150] sm:$0xff]
    %v67 = vld [vmem:[%s0 + $0x158] sm:$0xff]
    %v68 = vld [vmem:[%s0 + $0x160] sm:$0xff]
    %v69 = vld [vmem:[%s0 + $0x168] sm:$0xff]
    %v70 = vld [vmem:[%s0 + $0x170] sm:$0xff]
    %v71 = vld [vmem:[%s0 + $0x178] sm:$0xff]
    %v72 = vld [vmem:[%s0 + $0x180] sm:$0xff]
    %v73 = vld [vmem:[%s0 + $0x188] sm:$0xff]
    %v74 = vld [vmem:[%s0 + $0x190] sm:$0xff]
    %v75 = vld [vmem:[%s0 + $0x198] sm:$0xff]
    %v76 = vld [vmem:[%s0 + $0x1a0] sm:$0xff]
    %v77 = vld [vmem:[%s0 + $0x1a8] sm:$0xff]
    %v78 = vld [vmem:[%s0 + $0x1b0] sm:$0xff]
    %v79 = vld [vmem:[%s0 + $0x1b8] sm:$0xff]
    %v80 = vld [vmem:[%s0 + $0x1c0] sm:$0xff]
    %v81 = vld [vmem:[%s0 + $0x1c8] sm:$0xff]
    %v82 = vld [vmem:[%s0 + $0x1d0] sm:$0xff]
    %v83 = vld [vmem:[%s0 + $0x1d8] sm:$0xff]
    %v84 = vld [vmem:[%s0 + $0x1e0] sm:$0xff]
    %v85 = vld [vmem:[%s0 + $0x1e8] sm:$0xff]
    %v86 = vld [vmem:[%s0 + $0x1f0] sm:$0xff]
    %v87 = vld [vmem:[%s0 + $0x1f8] sm:$0xff]
    %v88 = vld [vmem:[%s0 + $0x200] sm:$0xff]
    %v89 = vld [vmem:[%s0 + $0x208] sm:$0xff]
    %v90 = vld [vmem:[%s0 + $0x210] sm:$0xff]
    %v91 = vld [vmem:[%s0 + $0x218] sm:$0xff]
    %v92 = vld [vmem:[%s0 + $0x220] sm:$0xff]
    %v93 = vld [vmem:[%s0 + $0x228] sm:$0xff]
    %v94 = vld [vmem:[%s0 + $0x230] sm:$0xff]
    %v95 = vld [vmem:[%s0 + $0x238] sm:$0xff]
    %v96 = vld [vmem:[%s0 + $0x240] sm:$0xff]
    %v97 = vld [vmem:[%s0 + $0x248] sm:$0xff]
    %v98 = vld [vmem:[%s0 + $0x250] sm:$0xff]
    %v99 = vld [vmem:[%s0 + $0x258] sm:$0xff]
    %v100 = vld [vmem:[%s0 + $0x260] sm:$0xff]
    %v101 = vld [vmem:[%s0 + $0x268] sm:$0xff]
    %v102 = vld [vmem:[%s0 + $0x270] sm:$0xff]
    %v103 = vld [vmem:[%s0 + $0x278] sm:$0xff]
    %v104 = vld [vmem:[%s0 + $0x280] sm:$0xff]
    %v105 = vld [vmem:[%s0 + $0x288] sm:$0xff]
    %v106 = vld [vmem:[%s0 + $0x290] sm:$0xff]
    %v107 = vld [vmem:[%s0 + $0x298] sm:$0xff]
    %v108 = vld [vmem:[%s0 + $0x2a0] sm:$0xff]
    %v109 = vld [vmem:[%s0 + $0x2a8] sm:$0xff]
    %v110 = vld [vmem:[%s0 + $0x2b0] sm:$0xff]
    %v111 = vld [vmem:[%s0 + $0x2b8] sm:$0xff]
    %v112 = vld [vmem:[%s0 + $0x2c0] sm:$0xff]
    %v113 = vld [vmem:[%s0 + $0x2c8] sm:$0xff]
    %v114 = vld [vmem:[%s0 + $0x2d0] sm:$0xff]
    %v115 = vld [vmem:[%s0 + $0x2d8] sm:$0xff]
    %v116 = vld [vmem:[%s0 + $0x2e0] sm:$0xff]
    %v117 = vld [vmem:[%s0 + $0x2e8] sm:$0xff]
    %v118 = vld [vmem:[%s0 + $0x2f0] sm:$0xff]
    %v119 = vld [vmem:[%s0 + $0x2f8] sm:$0xff]
    %v120 = vld [vmem:[%s0 + $0x300] sm:$0xff]
    %v121 = vld [vmem:[%s0 + $0x308] sm:$0xff]
    %v122 = vld [vmem:[%s0 + $0x310] sm:$0xff]
    %v123 = vld [vmem:[%s0 + $0x318] sm:$0xff]
    %v124 = vld [vmem:[%s0 + $0x320] sm:$0xff]
    %v125 = vld [vmem:[%s0 + $0x328] sm:$0xff]
    %v126 = vld [vmem:[%s0 + $0x330] sm:$0xff]
    %v127 = vld [vmem:[%s0 + $0x338] sm:$0xff]
    %v128 = vld [vmem:[%s0 + $0x340] sm:$0xff]
    %v129 = vld [vmem:[%s0 + $0x348] sm:$0xff]
    %v130 = vld [vmem:[%s0 + $0x350] sm:$0xff]
    %v131 = vld [vmem:[%s0 + $0x358] sm:$0xff]
    %v132 = vld [vmem:[%s0 + $0x360] sm:$0xff]
    %v133 = vld [vmem:[%s0 + $0x368] sm:$0xff]
    %v134 = vld [vmem:[%s0 + $0x370] sm:$0xff]
    %v135 = vld [vmem:[%s0 + $0x378] sm:$0xff]
    %v136 = vld [vmem:[%s0 + $0x380] sm:$0xff]
    %v137 = vld [vmem:[%s0 + $0x388] sm:$0xff]
    %v138 = vld [vmem:[%s0 + $0x390] sm:$0xff]
    %v139 = vld [vmem:[%s0 + $0x398] sm:$0xff]
    %v140 = vld [vmem:[%s1] sm:$0xff]
    %v141 = vld [vmem:[%s1 + $0x8] sm:$0xff]
    %v142 = vld [vmem:[%s1 + $0x10] sm:$0xff]
    %v143 = vld [vmem:[%s1 + $0x18] sm:$0xf]
    %v144 = vlaneseq
    %v145 = vshrl.u32 %v144, 7
    %v146 = vsub.s32 0, %v145
    %v147 = vrot.slane %v21, %v146
    %vm148 = vcmask 228352
    %v150 = vsel %vm148, %v24, 0
    %v153 = vsel %vm148, %v25, 0
    %v156 = vsel %vm148, %v26, 0
    %v159 = vsel %vm148, %v27, 0
    %v162 = vsel %vm148, %v28, 0
    %v165 = vsel %vm148, %v29, 0
    %v168 = vsel %vm148, %v30, 0
    %v171 = vsel %vm148, %v31, 0
    %v174 = vsel %vm148, %v32, 0
    %v177 = vsel %vm148, %v33, 0
    %v180 = vsel %vm148, %v34, 0
    %v183 = vsel %vm148, %v35, 0
    %v186 = vsel %vm148, %v36, 0
    %v189 = vsel %vm148, %v37, 0
    %v192 = vsel %vm148, %v38, 0
    %v195 = vsel %vm148, %v39, 0
    %v198 = vsel %vm148, %v40, 0
    %v201 = vsel %vm148, %v41, 0
    %v204 = vsel %vm148, %v42, 0
    %v207 = vsel %vm148, %v43, 0
    %v210 = vsel %vm148, %v44, 0
    %v213 = vsel %vm148, %v45, 0
    %v216 = vsel %vm148, %v46, 0
    %v219 = vsel %vm148, %v47, 0
    %v222 = vsel %vm148, %v48, 0
    %v225 = vsel %vm148, %v49, 0
    %v228 = vsel %vm148, %v50, 0
    %v231 = vsel %vm148, %v51, 0
    %v234 = vsel %vm148, %v52, 0
    %v237 = vsel %vm148, %v53, 0
    %v240 = vsel %vm148, %v54, 0
    %v243 = vsel %vm148, %v55, 0
    %v246 = vsel %vm148, %v56, 0
    %v249 = vsel %vm148, %v57, 0
    %v252 = vsel %vm148, %v58, 0
    %v255 = vsel %vm148, %v59, 0
    %v258 = vsel %vm148, %v60, 0
    %v261 = vsel %vm148, %v61, 0
    %v264 = vsel %vm148, %v62, 0
    %v267 = vsel %vm148, %v63, 0
    %v270 = vsel %vm148, %v64, 0
    %v273 = vsel %vm148, %v65, 0
    %v276 = vsel %vm148, %v66, 0
    %v279 = vsel %vm148, %v67, 0
    %v282 = vsel %vm148, %v68, 0
    %v285 = vsel %vm148, %v69, 0
    %v288 = vsel %vm148, %v70, 0
    %v291 = vsel %vm148, %v71, 0
    %v294 = vsel %vm148, %v72, 0
    %v297 = vsel %vm148, %v73, 0
    %v300 = vsel %vm148, %v74, 0
    %v303 = vsel %vm148, %v75, 0
    %v306 = vsel %vm148, %v76, 0
    %v309 = vsel %vm148, %v77, 0
    %v312 = vsel %vm148, %v78, 0
    %v315 = vsel %vm148, %v79, 0
    %v318 = vsel %vm148, %v80, 0
    %v321 = vsel %vm148, %v81, 0
    %v324 = vsel %vm148, %v82, 0
    %v327 = vsel %vm148, %v83, 0
    %v330 = vsel %vm148, %v84, 0
    %v333 = vsel %vm148, %v85, 0
    %v336 = vsel %vm148, %v86, 0
    %v339 = vsel %vm148, %v87, 0
    %v342 = vsel %vm148, %v88, 0
    %v345 = vsel %vm148, %v89, 0
    %v348 = vsel %vm148, %v90, 0
    %v351 = vsel %vm148, %v91, 0
    %v354 = vsel %vm148, %v92, 0
    %v357 = vsel %vm148, %v93, 0
    %v360 = vsel %vm148, %v94, 0
    %v363 = vsel %vm148, %v95, 0
    %v366 = vsel %vm148, %v96, 0
    %v369 = vsel %vm148, %v97, 0
    %v372 = vsel %vm148, %v98, 0
    %v375 = vsel %vm148, %v99, 0
    %v378 = vsel %vm148, %v100, 0
    %v381 = vsel %vm148, %v101, 0
    %v384 = vsel %vm148, %v102, 0
    %v387 = vsel %vm148, %v103, 0
    %v390 = vsel %vm148, %v104, 0
    %v393 = vsel %vm148, %v105, 0
    %v396 = vsel %vm148, %v106, 0
    %v399 = vsel %vm148, %v107, 0
    %v402 = vsel %vm148, %v108, 0
    %v405 = vsel %vm148, %v109, 0
    %v408 = vsel %vm148, %v110, 0
    %v411 = vsel %vm148, %v111, 0
    %v414 = vsel %vm148, %v112, 0
    %v417 = vsel %vm148, %v113, 0
    %v420 = vsel %vm148, %v114, 0
    %v423 = vsel %vm148, %v115, 0
    %v426 = vsel %vm148, %v116, 0
    %v429 = vsel %vm148, %v117, 0
    %v432 = vsel %vm148, %v118, 0
    %v435 = vsel %vm148, %v119, 0
    %v438 = vsel %vm148, %v120, 0
    %v441 = vsel %vm148, %v121, 0
    %v444 = vsel %vm148, %v122, 0
    %v447 = vsel %vm148, %v123, 0
    %v450 = vsel %vm148, %v124, 0
    %v453 = vsel %vm148, %v125, 0
    %v456 = vsel %vm148, %v126, 0
    %v459 = vsel %vm148, %v127, 0
    %v462 = vsel %vm148, %v128, 0
    %v465 = vsel %vm148, %v129, 0
    %v468 = vsel %vm148, %v130, 0
    %v471 = vsel %vm148, %v131, 0
    %v474 = vsel %vm148, %v132, 0
    %v477 = vsel %vm148, %v133, 0
    %v480 = vsel %vm148, %v134, 0
    %v483 = vsel %vm148, %v135, 0
    %v486 = vsel %vm148, %v136, 0
    %v489 = vsel %vm148, %v137, 0
    %v492 = vsel %vm148, %v138, 0
    %v495 = vsel %vm148, %v139, 0
    %vm497 = vcmask 1043456
    %v499 = vsel %vm497, %v143, 0
    %501 = vmatprep.subr.mxu0 0.0
    %502 = vmatpush1.msra.mxu0 0.0
    %503 = vmatprep.subr.mxu0 0.0
    %504 = vmatpush1.msra.mxu0 0.0
    %505 = vmatprep.subr.mxu0 0.0
    %506 = vmatpush1.msra.mxu0 0.0
    %507 = vmatprep.subr.mxu0 0.0
    %508 = vmatpush1.msra.mxu0 0.0
    %509 = vmatprep.subr.mxu0 0.0
    %510 = vmatpush1.msra.mxu0 0.0
    %511 = vmatprep.subr.mxu0 0.0
    %512 = vmatpush1.msra.mxu0 0.0
    %513 = vmatprep.subr.mxu0 0.0
    %514 = vmatpush1.msra.mxu0 0.0
    %515 = vmatprep.subr.mxu0 0.0
    %516 = vmatpush1.msra.mxu0 0.0
    %517 = vmatprep.subr.mxu0 0.0
    %518 = vmatpush1.msra.mxu0 0.0
    %519 = vmatprep.subr.mxu0 0.0
    %520 = vmatpush1.msra.mxu0 0.0
    %521 = vmatprep.subr.mxu0 0.0
    %522 = vmatpush1.msra.mxu0 0.0
    %523 = vmatprep.subr.mxu0 0.0
    %524 = vmatpush1.msra.mxu0 0.0
    %525 = vmatprep.subr.mxu0 0.0
    %526 = vmatpush1.msra.mxu0 %v499
    %527 = vmatprep.subr.mxu0 0.0
    %528 = vmatpush1.msra.mxu0 %v142
    %529 = vmatprep.subr.mxu0 0.0
    %530 = vmatpush1.msra.mxu0 %v141
    %531 = vmatprep.subr.mxu0 0.0
    %532 = vmatpush1.msra.mxu0 %v140
    %533 = vmatprep.subr.mxu0 0.0
    %534 = vmatpush2.msra.mxu0 0.0
    %535 = vmatprep.subr.mxu0 0.0
    %536 = vmatpush2.msra.mxu0 0.0
    %537 = vmatprep.subr.mxu0 0.0
    %538 = vmatpush2.msra.mxu0 0.0
    %539 = vmatprep.subr.mxu0 0.0
    %540 = vmatpush2.msra.mxu0 0.0
    %541 = vmatprep.subr.mxu0 0.0
    %542 = vmatpush2.msra.mxu0 0.0
    %543 = vmatprep.subr.mxu0 0.0
    %544 = vmatpush2.msra.mxu0 0.0
    %545 = vmatprep.subr.mxu0 0.0
    %546 = vmatpush2.msra.mxu0 0.0
    %547 = vmatprep.subr.mxu0 0.0
    %548 = vmatpush2.msra.mxu0 0.0
    %549 = vmatprep.subr.mxu0 0.0
    %550 = vmatpush2.msra.mxu0 0.0
    %551 = vmatprep.subr.mxu0 0.0
    %552 = vmatpush2.msra.mxu0 0.0
    %553 = vmatprep.subr.mxu0 0.0
    %554 = vmatpush2.msra.mxu0 0.0
    %555 = vmatprep.subr.mxu0 0.0
    %556 = vmatpush2.msra.mxu0 0.0
    %557 = vmatprep.subr.mxu0 0.0
    %558 = vmatpush2.msra.mxu0 0.0
    %559 = vmatprep.subr.mxu0 0.0
    %560 = vmatpush2.msra.mxu0 0.0
    %561 = vmatprep.subr.mxu0 0.0
    %562 = vmatpush2.msra.mxu0 0.0
    %563 = vmatprep.subr.mxu0 0.0
    %564 = vmatpush2.msra.mxu0 0.0
    %565 = vmatprep.mubr.f32.mxu0 0.0
    %566 = vmatmul.mubr.f32.gmra.mxu0 %v150
    %v567 = vpop.f32.mrf.mxu0
    %v568 = vadd.f32 %v147, %v567
    %v569 = vpop.f32.mrf.mxu0
    %570 = vmatprep.mubr.f32.mxu0 0.0
    %571 = vmatmul.mubr.f32.gmra.mxu0 %v153
    %v572 = vpop.f32.mrf.mxu0
    %v573 = vadd.f32 %v147, %v572
    %v574 = vpop.f32.mrf.mxu0
    %575 = vmatprep.mubr.f32.mxu0 0.0
    %576 = vmatmul.mubr.f32.gmra.mxu0 %v156
    %v577 = vpop.f32.mrf.mxu0
    %v578 = vadd.f32 %v147, %v577
    %v579 = vpop.f32.mrf.mxu0
    %580 = vmatprep.mubr.f32.mxu0 0.0
    %581 = vmatmul.mubr.f32.gmra.mxu0 %v159
    %v582 = vpop.f32.mrf.mxu0
    %v583 = vadd.f32 %v147, %v582
    %v584 = vpop.f32.mrf.mxu0
    %585 = vmatprep.mubr.f32.mxu0 0.0
    %586 = vmatmul.mubr.f32.gmra.mxu0 %v162
    %v587 = vpop.f32.mrf.mxu0
    %v588 = vadd.f32 %v147, %v587
    %v589 = vpop.f32.mrf.mxu0
    %590 = vmatprep.mubr.f32.mxu0 0.0
    %591 = vmatmul.mubr.f32.gmra.mxu0 %v165
    %v592 = vpop.f32.mrf.mxu0
    %v593 = vadd.f32 %v147, %v592
    %v594 = vpop.f32.mrf.mxu0
    %595 = vmatprep.mubr.f32.mxu0 0.0
    %596 = vmatmul.mubr.f32.gmra.mxu0 %v168
    %v597 = vpop.f32.mrf.mxu0
    %v598 = vadd.f32 %v147, %v597
    %v599 = vpop.f32.mrf.mxu0
    %600 = vmatprep.mubr.f32.mxu0 0.0
    %601 = vmatmul.mubr.f32.gmra.mxu0 %v171
    %v602 = vpop.f32.mrf.mxu0
    %v603 = vadd.f32 %v147, %v602
    %v604 = vpop.f32.mrf.mxu0
    %605 = vmatprep.mubr.f32.mxu0 0.0
    %606 = vmatmul.mubr.f32.gmra.mxu0 %v174
    %v607 = vpop.f32.mrf.mxu0
    %v608 = vadd.f32 %v147, %v607
    %v609 = vpop.f32.mrf.mxu0
    %610 = vmatprep.mubr.f32.mxu0 0.0
    %611 = vmatmul.mubr.f32.gmra.mxu0 %v177
    %v612 = vpop.f32.mrf.mxu0
    %v613 = vadd.f32 %v147, %v612
    %v614 = vpop.f32.mrf.mxu0
    %615 = vmatprep.mubr.f32.mxu0 0.0
    %616 = vmatmul.mubr.f32.gmra.mxu0 %v180
    %v617 = vpop.f32.mrf.mxu0
    %v618 = vadd.f32 %v147, %v617
    %v619 = vpop.f32.mrf.mxu0
    %620 = vmatprep.mubr.f32.mxu0 0.0
    %621 = vmatmul.mubr.f32.gmra.mxu0 %v183
    %v622 = vpop.f32.mrf.mxu0
    %v623 = vadd.f32 %v147, %v622
    %v624 = vpop.f32.mrf.mxu0
    %625 = vmatprep.mubr.f32.mxu0 0.0
    %626 = vmatmul.mubr.f32.gmra.mxu0 %v186
    %v627 = vpop.f32.mrf.mxu0
    %v628 = vadd.f32 %v147, %v627
    %v629 = vpop.f32.mrf.mxu0
    %630 = vmatprep.mubr.f32.mxu0 0.0
    %631 = vmatmul.mubr.f32.gmra.mxu0 %v189
    %v632 = vpop.f32.mrf.mxu0
    %v633 = vadd.f32 %v147, %v632
    %v634 = vpop.f32.mrf.mxu0
    %635 = vmatprep.mubr.f32.mxu0 0.0
    %636 = vmatmul.mubr.f32.gmra.mxu0 %v192
    %v637 = vpop.f32.mrf.mxu0
    %v638 = vadd.f32 %v147, %v637
    %v639 = vpop.f32.mrf.mxu0
    %640 = vmatprep.mubr.f32.mxu0 0.0
    %641 = vmatmul.mubr.f32.gmra.mxu0 %v195
    %v642 = vpop.f32.mrf.mxu0
    %v643 = vadd.f32 %v147, %v642
    %v644 = vpop.f32.mrf.mxu0
    %645 = vmatprep.mubr.f32.mxu0 0.0
    %646 = vmatmul.mubr.f32.gmra.mxu0 %v198
    %v647 = vpop.f32.mrf.mxu0
    %v648 = vadd.f32 %v147, %v647
    %v649 = vpop.f32.mrf.mxu0
    %650 = vmatprep.mubr.f32.mxu0 0.0
    %651 = vmatmul.mubr.f32.gmra.mxu0 %v201
    %v652 = vpop.f32.mrf.mxu0
    %v653 = vadd.f32 %v147, %v652
    %v654 = vpop.f32.mrf.mxu0
    %655 = vmatprep.mubr.f32.mxu0 0.0
    %656 = vmatmul.mubr.f32.gmra.mxu0 %v204
    %v657 = vpop.f32.mrf.mxu0
    %v658 = vadd.f32 %v147, %v657
    %v659 = vpop.f32.mrf.mxu0
    %660 = vmatprep.mubr.f32.mxu0 0.0
    %661 = vmatmul.mubr.f32.gmra.mxu0 %v207
    %v662 = vpop.f32.mrf.mxu0
    %v663 = vadd.f32 %v147, %v662
    %v664 = vpop.f32.mrf.mxu0
    %665 = vmatprep.mubr.f32.mxu0 0.0
    %666 = vmatmul.mubr.f32.gmra.mxu0 %v210
    %v667 = vpop.f32.mrf.mxu0
    %v668 = vadd.f32 %v147, %v667
    %v669 = vpop.f32.mrf.mxu0
    %670 = vmatprep.mubr.f32.mxu0 0.0
    %671 = vmatmul.mubr.f32.gmra.mxu0 %v213
    %v672 = vpop.f32.mrf.mxu0
    %v673 = vadd.f32 %v147, %v672
    %v674 = vpop.f32.mrf.mxu0
    %675 = vmatprep.mubr.f32.mxu0 0.0
    %676 = vmatmul.mubr.f32.gmra.mxu0 %v216
    %v677 = vpop.f32.mrf.mxu0
    %v678 = vadd.f32 %v147, %v677
    %v679 = vpop.f32.mrf.mxu0
    %680 = vmatprep.mubr.f32.mxu0 0.0
    %681 = vmatmul.mubr.f32.gmra.mxu0 %v219
    %v682 = vpop.f32.mrf.mxu0
    %v683 = vadd.f32 %v147, %v682
    %v684 = vpop.f32.mrf.mxu0
    %685 = vmatprep.mubr.f32.mxu0 0.0
    %686 = vmatmul.mubr.f32.gmra.mxu0 %v222
    %v687 = vpop.f32.mrf.mxu0
    %v688 = vadd.f32 %v147, %v687
    %v689 = vpop.f32.mrf.mxu0
    %690 = vmatprep.mubr.f32.mxu0 0.0
    %691 = vmatmul.mubr.f32.gmra.mxu0 %v225
    %v692 = vpop.f32.mrf.mxu0
    %v693 = vadd.f32 %v147, %v692
    %v694 = vpop.f32.mrf.mxu0
    %695 = vmatprep.mubr.f32.mxu0 0.0
    %696 = vmatmul.mubr.f32.gmra.mxu0 %v228
    %v697 = vpop.f32.mrf.mxu0
    %v698 = vadd.f32 %v147, %v697
    %v699 = vpop.f32.mrf.mxu0
    %700 = vmatprep.mubr.f32.mxu0 0.0
    %701 = vmatmul.mubr.f32.gmra.mxu0 %v231
    %v702 = vpop.f32.mrf.mxu0
    %v703 = vadd.f32 %v147, %v702
    %v704 = vpop.f32.mrf.mxu0
    %705 = vmatprep.mubr.f32.mxu0 0.0
    %706 = vmatmul.mubr.f32.gmra.mxu0 %v234
    %v707 = vpop.f32.mrf.mxu0
    %v708 = vadd.f32 %v147, %v707
    %v709 = vpop.f32.mrf.mxu0
    %710 = vmatprep.mubr.f32.mxu0 0.0
    %711 = vmatmul.mubr.f32.gmra.mxu0 %v237
    %v712 = vpop.f32.mrf.mxu0
    %v713 = vadd.f32 %v147, %v712
    %v714 = vpop.f32.mrf.mxu0
    %715 = vmatprep.mubr.f32.mxu0 0.0
    %716 = vmatmul.mubr.f32.gmra.mxu0 %v240
    %v717 = vpop.f32.mrf.mxu0
    %v718 = vadd.f32 %v147, %v717
    %v719 = vpop.f32.mrf.mxu0
    %720 = vmatprep.mubr.f32.mxu0 0.0
    %721 = vmatmul.mubr.f32.gmra.mxu0 %v243
    %v722 = vpop.f32.mrf.mxu0
    %v723 = vadd.f32 %v147, %v722
    %v724 = vpop.f32.mrf.mxu0
    %725 = vmatprep.mubr.f32.mxu0 0.0
    %726 = vmatmul.mubr.f32.gmra.mxu0 %v246
    %v727 = vpop.f32.mrf.mxu0
    %v728 = vadd.f32 %v147, %v727
    %v729 = vpop.f32.mrf.mxu0
    %730 = vmatprep.mubr.f32.mxu0 0.0
    %731 = vmatmul.mubr.f32.gmra.mxu0 %v249
    %v732 = vpop.f32.mrf.mxu0
    %v733 = vadd.f32 %v147, %v732
    %v734 = vpop.f32.mrf.mxu0
    %735 = vmatprep.mubr.f32.mxu0 0.0
    %736 = vmatmul.mubr.f32.gmra.mxu0 %v252
    %v737 = vpop.f32.mrf.mxu0
    %v738 = vadd.f32 %v147, %v737
    %v739 = vpop.f32.mrf.mxu0
    %740 = vmatprep.mubr.f32.mxu0 0.0
    %741 = vmatmul.mubr.f32.gmra.mxu0 %v255
    %v742 = vpop.f32.mrf.mxu0
    %v743 = vadd.f32 %v147, %v742
    %v744 = vpop.f32.mrf.mxu0
    %745 = vmatprep.mubr.f32.mxu0 0.0
    %746 = vmatmul.mubr.f32.gmra.mxu0 %v258
    %v747 = vpop.f32.mrf.mxu0
    %v748 = vadd.f32 %v147, %v747
    %v749 = vpop.f32.mrf.mxu0
    %750 = vmatprep.mubr.f32.mxu0 0.0
    %751 = vmatmul.mubr.f32.gmra.mxu0 %v261
    %v752 = vpop.f32.mrf.mxu0
    %v753 = vadd.f32 %v147, %v752
    %v754 = vpop.f32.mrf.mxu0
    %755 = vmatprep.mubr.f32.mxu0 0.0
    %756 = vmatmul.mubr.f32.gmra.mxu0 %v264
    %v757 = vpop.f32.mrf.mxu0
    %v758 = vadd.f32 %v147, %v757
    %v759 = vpop.f32.mrf.mxu0
    %760 = vmatprep.mubr.f32.mxu0 0.0
    %761 = vmatmul.mubr.f32.gmra.mxu0 %v267
    %v762 = vpop.f32.mrf.mxu0
    %v763 = vadd.f32 %v147, %v762
    %v764 = vpop.f32.mrf.mxu0
    %765 = vmatprep.mubr.f32.mxu0 0.0
    %766 = vmatmul.mubr.f32.gmra.mxu0 %v270
    %v767 = vpop.f32.mrf.mxu0
    %v768 = vadd.f32 %v147, %v767
    %v769 = vpop.f32.mrf.mxu0
    %770 = vmatprep.mubr.f32.mxu0 0.0
    %771 = vmatmul.mubr.f32.gmra.mxu0 %v273
    %v772 = vpop.f32.mrf.mxu0
    %v773 = vadd.f32 %v147, %v772
    %v774 = vpop.f32.mrf.mxu0
    %775 = vmatprep.mubr.f32.mxu0 0.0
    %776 = vmatmul.mubr.f32.gmra.mxu0 %v276
    %v777 = vpop.f32.mrf.mxu0
    %v778 = vadd.f32 %v147, %v777
    %v779 = vpop.f32.mrf.mxu0
    %780 = vmatprep.mubr.f32.mxu0 0.0
    %781 = vmatmul.mubr.f32.gmra.mxu0 %v279
    %v782 = vpop.f32.mrf.mxu0
    %v783 = vadd.f32 %v147, %v782
    %v784 = vpop.f32.mrf.mxu0
    %785 = vmatprep.mubr.f32.mxu0 0.0
    %786 = vmatmul.mubr.f32.gmra.mxu0 %v282
    %v787 = vpop.f32.mrf.mxu0
    %v788 = vadd.f32 %v147, %v787
    %v789 = vpop.f32.mrf.mxu0
    %790 = vmatprep.mubr.f32.mxu0 0.0
    %791 = vmatmul.mubr.f32.gmra.mxu0 %v285
    %v792 = vpop.f32.mrf.mxu0
    %v793 = vadd.f32 %v147, %v792
    %v794 = vpop.f32.mrf.mxu0
    %795 = vmatprep.mubr.f32.mxu0 0.0
    %796 = vmatmul.mubr.f32.gmra.mxu0 %v288
    %v797 = vpop.f32.mrf.mxu0
    %v798 = vadd.f32 %v147, %v797
    %v799 = vpop.f32.mrf.mxu0
    %800 = vmatprep.mubr.f32.mxu0 0.0
    %801 = vmatmul.mubr.f32.gmra.mxu0 %v291
    %v802 = vpop.f32.mrf.mxu0
    %v803 = vadd.f32 %v147, %v802
    %v804 = vpop.f32.mrf.mxu0
    %805 = vmatprep.mubr.f32.mxu0 0.0
    %806 = vmatmul.mubr.f32.gmra.mxu0 %v294
    %v807 = vpop.f32.mrf.mxu0
    %v808 = vadd.f32 %v147, %v807
    %v809 = vpop.f32.mrf.mxu0
    %810 = vmatprep.mubr.f32.mxu0 0.0
    %811 = vmatmul.mubr.f32.gmra.mxu0 %v297
    %v812 = vpop.f32.mrf.mxu0
    %v813 = vadd.f32 %v147, %v812
    %v814 = vpop.f32.mrf.mxu0
    %815 = vmatprep.mubr.f32.mxu0 0.0
    %816 = vmatmul.mubr.f32.gmra.mxu0 %v300
    %v817 = vpop.f32.mrf.mxu0
    %v818 = vadd.f32 %v147, %v817
    %v819 = vpop.f32.mrf.mxu0
    %820 = vmatprep.mubr.f32.mxu0 0.0
    %821 = vmatmul.mubr.f32.gmra.mxu0 %v303
    %v822 = vpop.f32.mrf.mxu0
    %v823 = vadd.f32 %v147, %v822
    %v824 = vpop.f32.mrf.mxu0
    %825 = vmatprep.mubr.f32.mxu0 0.0
    %826 = vmatmul.mubr.f32.gmra.mxu0 %v306
    %v827 = vpop.f32.mrf.mxu0
    %v828 = vadd.f32 %v147, %v827
    %v829 = vpop.f32.mrf.mxu0
    %830 = vmatprep.mubr.f32.mxu0 0.0
    %831 = vmatmul.mubr.f32.gmra.mxu0 %v309
    %v832 = vpop.f32.mrf.mxu0
    %v833 = vadd.f32 %v147, %v832
    %v834 = vpop.f32.mrf.mxu0
    %835 = vmatprep.mubr.f32.mxu0 0.0
    %836 = vmatmul.mubr.f32.gmra.mxu0 %v312
    %v837 = vpop.f32.mrf.mxu0
    %v838 = vadd.f32 %v147, %v837
    %v839 = vpop.f32.mrf.mxu0
    %840 = vmatprep.mubr.f32.mxu0 0.0
    %841 = vmatmul.mubr.f32.gmra.mxu0 %v315
    %v842 = vpop.f32.mrf.mxu0
    %v843 = vadd.f32 %v147, %v842
    %v844 = vpop.f32.mrf.mxu0
    %845 = vmatprep.mubr.f32.mxu0 0.0
    %846 = vmatmul.mubr.f32.gmra.mxu0 %v318
    %v847 = vpop.f32.mrf.mxu0
    %v848 = vadd.f32 %v147, %v847
    %v849 = vpop.f32.mrf.mxu0
    %850 = vmatprep.mubr.f32.mxu0 0.0
    %851 = vmatmul.mubr.f32.gmra.mxu0 %v321
    %v852 = vpop.f32.mrf.mxu0
    %v853 = vadd.f32 %v147, %v852
    %v854 = vpop.f32.mrf.mxu0
    %855 = vmatprep.mubr.f32.mxu0 0.0
    %856 = vmatmul.mubr.f32.gmra.mxu0 %v324
    %v857 = vpop.f32.mrf.mxu0
    %v858 = vadd.f32 %v147, %v857
    %v859 = vpop.f32.mrf.mxu0
    %860 = vmatprep.mubr.f32.mxu0 0.0
    %861 = vmatmul.mubr.f32.gmra.mxu0 %v327
    %v862 = vpop.f32.mrf.mxu0
    %v863 = vadd.f32 %v147, %v862
    %v864 = vpop.f32.mrf.mxu0
    %865 = vmatprep.mubr.f32.mxu0 0.0
    %866 = vmatmul.mubr.f32.gmra.mxu0 %v330
    %v867 = vpop.f32.mrf.mxu0
    %v868 = vadd.f32 %v147, %v867
    %v869 = vpop.f32.mrf.mxu0
    %870 = vmatprep.mubr.f32.mxu0 0.0
    %871 = vmatmul.mubr.f32.gmra.mxu0 %v333
    %v872 = vpop.f32.mrf.mxu0
    %v873 = vadd.f32 %v147, %v872
    %v874 = vpop.f32.mrf.mxu0
    %875 = vmatprep.mubr.f32.mxu0 0.0
    %876 = vmatmul.mubr.f32.gmra.mxu0 %v336
    %v877 = vpop.f32.mrf.mxu0
    %v878 = vadd.f32 %v147, %v877
    %v879 = vpop.f32.mrf.mxu0
    %880 = vmatprep.mubr.f32.mxu0 0.0
    %881 = vmatmul.mubr.f32.gmra.mxu0 %v339
    %v882 = vpop.f32.mrf.mxu0
    %v883 = vadd.f32 %v147, %v882
    %v884 = vpop.f32.mrf.mxu0
    %885 = vmatprep.mubr.f32.mxu0 0.0
    %886 = vmatmul.mubr.f32.gmra.mxu0 %v342
    %v887 = vpop.f32.mrf.mxu0
    %v888 = vadd.f32 %v147, %v887
    %v889 = vpop.f32.mrf.mxu0
    %890 = vmatprep.mubr.f32.mxu0 0.0
    %891 = vmatmul.mubr.f32.gmra.mxu0 %v345
    %v892 = vpop.f32.mrf.mxu0
    %v893 = vadd.f32 %v147, %v892
    %v894 = vpop.f32.mrf.mxu0
    %895 = vmatprep.mubr.f32.mxu0 0.0
    %896 = vmatmul.mubr.f32.gmra.mxu0 %v348
    %v897 = vpop.f32.mrf.mxu0
    %v898 = vadd.f32 %v147, %v897
    %v899 = vpop.f32.mrf.mxu0
    %900 = vmatprep.mubr.f32.mxu0 0.0
    %901 = vmatmul.mubr.f32.gmra.mxu0 %v351
    %v902 = vpop.f32.mrf.mxu0
    %v903 = vadd.f32 %v147, %v902
    %v904 = vpop.f32.mrf.mxu0
    %905 = vmatprep.mubr.f32.mxu0 0.0
    %906 = vmatmul.mubr.f32.gmra.mxu0 %v354
    %v907 = vpop.f32.mrf.mxu0
    %v908 = vadd.f32 %v147, %v907
    %v909 = vpop.f32.mrf.mxu0
    %910 = vmatprep.mubr.f32.mxu0 0.0
    %911 = vmatmul.mubr.f32.gmra.mxu0 %v357
    %v912 = vpop.f32.mrf.mxu0
    %v913 = vadd.f32 %v147, %v912
    %v914 = vpop.f32.mrf.mxu0
    %915 = vmatprep.mubr.f32.mxu0 0.0
    %916 = vmatmul.mubr.f32.gmra.mxu0 %v360
    %v917 = vpop.f32.mrf.mxu0
    %v918 = vadd.f32 %v147, %v917
    %v919 = vpop.f32.mrf.mxu0
    %920 = vmatprep.mubr.f32.mxu0 0.0
    %921 = vmatmul.mubr.f32.gmra.mxu0 %v363
    %v922 = vpop.f32.mrf.mxu0
    %v923 = vadd.f32 %v147, %v922
    %v924 = vpop.f32.mrf.mxu0
    %925 = vmatprep.mubr.f32.mxu0 0.0
    %926 = vmatmul.mubr.f32.gmra.mxu0 %v366
    %v927 = vpop.f32.mrf.mxu0
    %v928 = vadd.f32 %v147, %v927
    %v929 = vpop.f32.mrf.mxu0
    %930 = vmatprep.mubr.f32.mxu0 0.0
    %931 = vmatmul.mubr.f32.gmra.mxu0 %v369
    %v932 = vpop.f32.mrf.mxu0
    %v933 = vadd.f32 %v147, %v932
    %v934 = vpop.f32.mrf.mxu0
    %935 = vmatprep.mubr.f32.mxu0 0.0
    %936 = vmatmul.mubr.f32.gmra.mxu0 %v372
    %v937 = vpop.f32.mrf.mxu0
    %v938 = vadd.f32 %v147, %v937
    %v939 = vpop.f32.mrf.mxu0
    %940 = vmatprep.mubr.f32.mxu0 0.0
    %941 = vmatmul.mubr.f32.gmra.mxu0 %v375
    %v942 = vpop.f32.mrf.mxu0
    %v943 = vadd.f32 %v147, %v942
    %v944 = vpop.f32.mrf.mxu0
    %945 = vmatprep.mubr.f32.mxu0 0.0
    %946 = vmatmul.mubr.f32.gmra.mxu0 %v378
    %v947 = vpop.f32.mrf.mxu0
    %v948 = vadd.f32 %v147, %v947
    %v949 = vpop.f32.mrf.mxu0
    %950 = vmatprep.mubr.f32.mxu0 0.0
    %951 = vmatmul.mubr.f32.gmra.mxu0 %v381
    %v952 = vpop.f32.mrf.mxu0
    %v953 = vadd.f32 %v147, %v952
    %v954 = vpop.f32.mrf.mxu0
    %955 = vmatprep.mubr.f32.mxu0 0.0
    %956 = vmatmul.mubr.f32.gmra.mxu0 %v384
    %v957 = vpop.f32.mrf.mxu0
    %v958 = vadd.f32 %v147, %v957
    %v959 = vpop.f32.mrf.mxu0
    %960 = vmatprep.mubr.f32.mxu0 0.0
    %961 = vmatmul.mubr.f32.gmra.mxu0 %v387
    %v962 = vpop.f32.mrf.mxu0
    %v963 = vadd.f32 %v147, %v962
    %v964 = vpop.f32.mrf.mxu0
    %965 = vmatprep.mubr.f32.mxu0 0.0
    %966 = vmatmul.mubr.f32.gmra.mxu0 %v390
    %v967 = vpop.f32.mrf.mxu0
    %v968 = vadd.f32 %v147, %v967
    %v969 = vpop.f32.mrf.mxu0
    %970 = vmatprep.mubr.f32.mxu0 0.0
    %971 = vmatmul.mubr.f32.gmra.mxu0 %v393
    %v972 = vpop.f32.mrf.mxu0
    %v973 = vadd.f32 %v147, %v972
    %v974 = vpop.f32.mrf.mxu0
    %975 = vmatprep.mubr.f32.mxu0 0.0
    %976 = vmatmul.mubr.f32.gmra.mxu0 %v396
    %v977 = vpop.f32.mrf.mxu0
    %v978 = vadd.f32 %v147, %v977
    %v979 = vpop.f32.mrf.mxu0
    %980 = vmatprep.mubr.f32.mxu0 0.0
    %981 = vmatmul.mubr.f32.gmra.mxu0 %v399
    %v982 = vpop.f32.mrf.mxu0
    %v983 = vadd.f32 %v147, %v982
    %v984 = vpop.f32.mrf.mxu0
    %985 = vmatprep.mubr.f32.mxu0 0.0
    %986 = vmatmul.mubr.f32.gmra.mxu0 %v402
    %v987 = vpop.f32.mrf.mxu0
    %v988 = vadd.f32 %v147, %v987
    %v989 = vpop.f32.mrf.mxu0
    %990 = vmatprep.mubr.f32.mxu0 0.0
    %991 = vmatmul.mubr.f32.gmra.mxu0 %v405
    %v992 = vpop.f32.mrf.mxu0
    %v993 = vadd.f32 %v147, %v992
    %v994 = vpop.f32.mrf.mxu0
    %995 = vmatprep.mubr.f32.mxu0 0.0
    %996 = vmatmul.mubr.f32.gmra.mxu0 %v408
    %v997 = vpop.f32.mrf.mxu0
    %v998 = vadd.f32 %v147, %v997
    %v999 = vpop.f32.mrf.mxu0
    %1000 = vmatprep.mubr.f32.mxu0 0.0
    %1001 = vmatmul.mubr.f32.gmra.mxu0 %v411
    %v1002 = vpop.f32.mrf.mxu0
    %v1003 = vadd.f32 %v147, %v1002
    %v1004 = vpop.f32.mrf.mxu0
    %1005 = vmatprep.mubr.f32.mxu0 0.0
    %1006 = vmatmul.mubr.f32.gmra.mxu0 %v414
    %v1007 = vpop.f32.mrf.mxu0
    %v1008 = vadd.f32 %v147, %v1007
    %v1009 = vpop.f32.mrf.mxu0
    %1010 = vmatprep.mubr.f32.mxu0 0.0
    %1011 = vmatmul.mubr.f32.gmra.mxu0 %v417
    %v1012 = vpop.f32.mrf.mxu0
    %v1013 = vadd.f32 %v147, %v1012
    %v1014 = vpop.f32.mrf.mxu0
    %1015 = vmatprep.mubr.f32.mxu0 0.0
    %1016 = vmatmul.mubr.f32.gmra.mxu0 %v420
    %v1017 = vpop.f32.mrf.mxu0
    %v1018 = vadd.f32 %v147, %v1017
    %v1019 = vpop.f32.mrf.mxu0
    %1020 = vmatprep.mubr.f32.mxu0 0.0
    %1021 = vmatmul.mubr.f32.gmra.mxu0 %v423
    %v1022 = vpop.f32.mrf.mxu0
    %v1023 = vadd.f32 %v147, %v1022
    %v1024 = vpop.f32.mrf.mxu0
    %1025 = vmatprep.mubr.f32.mxu0 0.0
    %1026 = vmatmul.mubr.f32.gmra.mxu0 %v426
    %v1027 = vpop.f32.mrf.mxu0
    %v1028 = vadd.f32 %v147, %v1027
    %v1029 = vpop.f32.mrf.mxu0
    %1030 = vmatprep.mubr.f32.mxu0 0.0
    %1031 = vmatmul.mubr.f32.gmra.mxu0 %v429
    %v1032 = vpop.f32.mrf.mxu0
    %v1033 = vadd.f32 %v147, %v1032
    %v1034 = vpop.f32.mrf.mxu0
    %1035 = vmatprep.mubr.f32.mxu0 0.0
    %1036 = vmatmul.mubr.f32.gmra.mxu0 %v432
    %v1037 = vpop.f32.mrf.mxu0
    %v1038 = vadd.f32 %v147, %v1037
    %v1039 = vpop.f32.mrf.mxu0
    %1040 = vmatprep.mubr.f32.mxu0 0.0
    %1041 = vmatmul.mubr.f32.gmra.mxu0 %v435
    %v1042 = vpop.f32.mrf.mxu0
    %v1043 = vadd.f32 %v147, %v1042
    %v1044 = vpop.f32.mrf.mxu0
    %1045 = vmatprep.mubr.f32.mxu0 0.0
    %1046 = vmatmul.mubr.f32.gmra.mxu0 %v438
    %v1047 = vpop.f32.mrf.mxu0
    %v1048 = vadd.f32 %v147, %v1047
    %v1049 = vpop.f32.mrf.mxu0
    %1050 = vmatprep.mubr.f32.mxu0 0.0
    %1051 = vmatmul.mubr.f32.gmra.mxu0 %v441
    %v1052 = vpop.f32.mrf.mxu0
    %v1053 = vadd.f32 %v147, %v1052
    %v1054 = vpop.f32.mrf.mxu0
    %1055 = vmatprep.mubr.f32.mxu0 0.0
    %1056 = vmatmul.mubr.f32.gmra.mxu0 %v444
    %v1057 = vpop.f32.mrf.mxu0
    %v1058 = vadd.f32 %v147, %v1057
    %v1059 = vpop.f32.mrf.mxu0
    %1060 = vmatprep.mubr.f32.mxu0 0.0
    %1061 = vmatmul.mubr.f32.gmra.mxu0 %v447
    %v1062 = vpop.f32.mrf.mxu0
    %v1063 = vadd.f32 %v147, %v1062
    %v1064 = vpop.f32.mrf.mxu0
    %1065 = vmatprep.mubr.f32.mxu0 0.0
    %1066 = vmatmul.mubr.f32.gmra.mxu0 %v450
    %v1067 = vpop.f32.mrf.mxu0
    %v1068 = vadd.f32 %v147, %v1067
    %v1069 = vpop.f32.mrf.mxu0
    %1070 = vmatprep.mubr.f32.mxu0 0.0
    %1071 = vmatmul.mubr.f32.gmra.mxu0 %v453
    %v1072 = vpop.f32.mrf.mxu0
    %v1073 = vadd.f32 %v147, %v1072
    %v1074 = vpop.f32.mrf.mxu0
    %1075 = vmatprep.mubr.f32.mxu0 0.0
    %1076 = vmatmul.mubr.f32.gmra.mxu0 %v456
    %v1077 = vpop.f32.mrf.mxu0
    %v1078 = vadd.f32 %v147, %v1077
    %v1079 = vpop.f32.mrf.mxu0
    %1080 = vmatprep.mubr.f32.mxu0 0.0
    %1081 = vmatmul.mubr.f32.gmra.mxu0 %v459
    %v1082 = vpop.f32.mrf.mxu0
    %v1083 = vadd.f32 %v147, %v1082
    %v1084 = vpop.f32.mrf.mxu0
    %1085 = vmatprep.mubr.f32.mxu0 0.0
    %1086 = vmatmul.mubr.f32.gmra.mxu0 %v462
    %v1087 = vpop.f32.mrf.mxu0
    %v1088 = vadd.f32 %v147, %v1087
    %v1089 = vpop.f32.mrf.mxu0
    %1090 = vmatprep.mubr.f32.mxu0 0.0
    %1091 = vmatmul.mubr.f32.gmra.mxu0 %v465
    %v1092 = vpop.f32.mrf.mxu0
    %v1093 = vadd.f32 %v147, %v1092
    %v1094 = vpop.f32.mrf.mxu0
    %1095 = vmatprep.mubr.f32.mxu0 0.0
    %1096 = vmatmul.mubr.f32.gmra.mxu0 %v468
    %v1097 = vpop.f32.mrf.mxu0
    %v1098 = vadd.f32 %v147, %v1097
    %v1099 = vpop.f32.mrf.mxu0
    %1100 = vmatprep.mubr.f32.mxu0 0.0
    %1101 = vmatmul.mubr.f32.gmra.mxu0 %v471
    %v1102 = vpop.f32.mrf.mxu0
    %v1103 = vadd.f32 %v147, %v1102
    %v1104 = vpop.f32.mrf.mxu0
    %1105 = vmatprep.mubr.f32.mxu0 0.0
    %1106 = vmatmul.mubr.f32.gmra.mxu0 %v474
    %v1107 = vpop.f32.mrf.mxu0
    %v1108 = vadd.f32 %v147, %v1107
    %v1109 = vpop.f32.mrf.mxu0
    %1110 = vmatprep.mubr.f32.mxu0 0.0
    %1111 = vmatmul.mubr.f32.gmra.mxu0 %v477
    %v1112 = vpop.f32.mrf.mxu0
    %v1113 = vadd.f32 %v147, %v1112
    %v1114 = vpop.f32.mrf.mxu0
    %1115 = vmatprep.mubr.f32.mxu0 0.0
    %1116 = vmatmul.mubr.f32.gmra.mxu0 %v480
    %v1117 = vpop.f32.mrf.mxu0
    %v1118 = vadd.f32 %v147, %v1117
    %v1119 = vpop.f32.mrf.mxu0
    %1120 = vmatprep.mubr.f32.mxu0 0.0
    %1121 = vmatmul.mubr.f32.gmra.mxu0 %v483
    %v1122 = vpop.f32.mrf.mxu0
    %v1123 = vadd.f32 %v147, %v1122
    %v1124 = vpop.f32.mrf.mxu0
    %1125 = vmatprep.mubr.f32.mxu0 0.0
    %1126 = vmatmul.mubr.f32.gmra.mxu0 %v486
    %v1127 = vpop.f32.mrf.mxu0
    %v1128 = vadd.f32 %v147, %v1127
    %v1129 = vpop.f32.mrf.mxu0
    %1130 = vmatprep.mubr.f32.mxu0 0.0
    %1131 = vmatmul.mubr.f32.gmra.mxu0 %v489
    %v1132 = vpop.f32.mrf.mxu0
    %v1133 = vadd.f32 %v147, %v1132
    %v1134 = vpop.f32.mrf.mxu0
    %1135 = vmatprep.mubr.f32.mxu0 0.0
    %1136 = vmatmul.mubr.f32.gmra.mxu0 %v492
    %v1137 = vpop.f32.mrf.mxu0
    %v1138 = vadd.f32 %v147, %v1137
    %v1139 = vpop.f32.mrf.mxu0
    %1140 = vmatprep.mubr.f32.mxu0 0.0
    %1141 = vmatmul.mubr.f32.gmra.mxu0 %v495
    %v1142 = vpop.f32.mrf.mxu0
    %v1143 = vadd.f32 %v147, %v1142
    %v1144 = vpop.f32.mrf.mxu0
    %1145 = vdwg.mxu0
    %vm1146 = vcmp.gt.f32.partialorder %v568, 0.0
    %vm1147 = vcmp.gt.f32.partialorder %v573, 0.0
    %vm1148 = vcmp.gt.f32.partialorder %v578, 0.0
    %vm1149 = vcmp.gt.f32.partialorder %v583, 0.0
    %vm1150 = vcmp.gt.f32.partialorder %v588, 0.0
    %vm1151 = vcmp.gt.f32.partialorder %v593, 0.0
    %vm1152 = vcmp.gt.f32.partialorder %v598, 0.0
    %vm1153 = vcmp.gt.f32.partialorder %v603, 0.0
    %vm1154 = vcmp.gt.f32.partialorder %v608, 0.0
    %vm1155 = vcmp.gt.f32.partialorder %v613, 0.0
    %vm1156 = vcmp.gt.f32.partialorder %v618, 0.0
    %vm1157 = vcmp.gt.f32.partialorder %v623, 0.0
    %vm1158 = vcmp.gt.f32.partialorder %v628, 0.0
    %vm1159 = vcmp.gt.f32.partialorder %v633, 0.0
    %vm1160 = vcmp.gt.f32.partialorder %v638, 0.0
    %vm1161 = vcmp.gt.f32.partialorder %v643, 0.0
    %vm1162 = vcmp.gt.f32.partialorder %v648, 0.0
    %vm1163 = vcmp.gt.f32.partialorder %v653, 0.0
    %vm1164 = vcmp.gt.f32.partialorder %v658, 0.0
    %vm1165 = vcmp.gt.f32.partialorder %v663, 0.0
    %vm1166 = vcmp.gt.f32.partialorder %v668, 0.0
    %vm1167 = vcmp.gt.f32.partialorder %v673, 0.0
    %vm1168 = vcmp.gt.f32.partialorder %v678, 0.0
    %vm1169 = vcmp.gt.f32.partialorder %v683, 0.0
    %vm1170 = vcmp.gt.f32.partialorder %v688, 0.0
    %vm1171 = vcmp.gt.f32.partialorder %v693, 0.0
    %vm1172 = vcmp.gt.f32.partialorder %v698, 0.0
    %vm1173 = vcmp.gt.f32.partialorder %v703, 0.0
    %vm1174 = vcmp.gt.f32.partialorder %v708, 0.0
    %vm1175 = vcmp.gt.f32.partialorder %v713, 0.0
    %vm1176 = vcmp.gt.f32.partialorder %v718, 0.0
    %vm1177 = vcmp.gt.f32.partialorder %v723, 0.0
    %vm1178 = vcmp.gt.f32.partialorder %v728, 0.0
    %vm1179 = vcmp.gt.f32.partialorder %v733, 0.0
    %vm1180 = vcmp.gt.f32.partialorder %v738, 0.0
    %vm1181 = vcmp.gt.f32.partialorder %v743, 0.0
    %vm1182 = vcmp.gt.f32.partialorder %v748, 0.0
    %vm1183 = vcmp.gt.f32.partialorder %v753, 0.0
    %vm1184 = vcmp.gt.f32.partialorder %v758, 0.0
    %vm1185 = vcmp.gt.f32.partialorder %v763, 0.0
    %vm1186 = vcmp.gt.f32.partialorder %v768, 0.0
    %vm1187 = vcmp.gt.f32.partialorder %v773, 0.0
    %vm1188 = vcmp.gt.f32.partialorder %v778, 0.0
    %vm1189 = vcmp.gt.f32.partialorder %v783, 0.0
    %vm1190 = vcmp.gt.f32.partialorder %v788, 0.0
    %vm1191 = vcmp.gt.f32.partialorder %v793, 0.0
    %vm1192 = vcmp.gt.f32.partialorder %v798, 0.0
    %vm1193 = vcmp.gt.f32.partialorder %v803, 0.0
    %vm1194 = vcmp.gt.f32.partialorder %v808, 0.0
    %vm1195 = vcmp.gt.f32.partialorder %v813, 0.0
    %vm1196 = vcmp.gt.f32.partialorder %v818, 0.0
    %vm1197 = vcmp.gt.f32.partialorder %v823, 0.0
    %vm1198 = vcmp.gt.f32.partialorder %v828, 0.0
    %vm1199 = vcmp.gt.f32.partialorder %v833, 0.0
    %vm1200 = vcmp.gt.f32.partialorder %v838, 0.0
    %vm1201 = vcmp.gt.f32.partialorder %v843, 0.0
    %vm1202 = vcmp.gt.f32.partialorder %v848, 0.0
    %vm1203 = vcmp.gt.f32.partialorder %v853, 0.0
    %vm1204 = vcmp.gt.f32.partialorder %v858, 0.0
    %vm1205 = vcmp.gt.f32.partialorder %v863, 0.0
    %vm1206 = vcmp.gt.f32.partialorder %v868, 0.0
    %vm1207 = vcmp.gt.f32.partialorder %v873, 0.0
    %vm1208 = vcmp.gt.f32.partialorder %v878, 0.0
    %vm1209 = vcmp.gt.f32.partialorder %v883, 0.0
    %vm1210 = vcmp.gt.f32.partialorder %v888, 0.0
    %vm1211 = vcmp.gt.f32.partialorder %v893, 0.0
    %vm1212 = vcmp.gt.f32.partialorder %v898, 0.0
    %vm1213 = vcmp.gt.f32.partialorder %v903, 0.0
    %vm1214 = vcmp.gt.f32.partialorder %v908, 0.0
    %vm1215 = vcmp.gt.f32.partialorder %v913, 0.0
    %vm1216 = vcmp.gt.f32.partialorder %v918, 0.0
    %vm1217 = vcmp.gt.f32.partialorder %v923, 0.0
    %vm1218 = vcmp.gt.f32.partialorder %v928, 0.0
    %vm1219 = vcmp.gt.f32.partialorder %v933, 0.0
    %vm1220 = vcmp.gt.f32.partialorder %v938, 0.0
    %vm1221 = vcmp.gt.f32.partialorder %v943, 0.0
    %vm1222 = vcmp.gt.f32.partialorder %v948, 0.0
    %vm1223 = vcmp.gt.f32.partialorder %v953, 0.0
    %vm1224 = vcmp.gt.f32.partialorder %v958, 0.0
    %vm1225 = vcmp.gt.f32.partialorder %v963, 0.0
    %vm1226 = vcmp.gt.f32.partialorder %v968, 0.0
    %vm1227 = vcmp.gt.f32.partialorder %v973, 0.0
    %vm1228 = vcmp.gt.f32.partialorder %v978, 0.0
    %vm1229 = vcmp.gt.f32.partialorder %v983, 0.0
    %vm1230 = vcmp.gt.f32.partialorder %v988, 0.0
    %vm1231 = vcmp.gt.f32.partialorder %v993, 0.0
    %vm1232 = vcmp.gt.f32.partialorder %v998, 0.0
    %vm1233 = vcmp.gt.f32.partialorder %v1003, 0.0
    %vm1234 = vcmp.gt.f32.partialorder %v1008, 0.0
    %vm1235 = vcmp.gt.f32.partialorder %v1013, 0.0
    %vm1236 = vcmp.gt.f32.partialorder %v1018, 0.0
    %vm1237 = vcmp.gt.f32.partialorder %v1023, 0.0
    %vm1238 = vcmp.gt.f32.partialorder %v1028, 0.0
    %vm1239 = vcmp.gt.f32.partialorder %v1033, 0.0
    %vm1240 = vcmp.gt.f32.partialorder %v1038, 0.0
    %vm1241 = vcmp.gt.f32.partialorder %v1043, 0.0
    %vm1242 = vcmp.gt.f32.partialorder %v1048, 0.0
    %vm1243 = vcmp.gt.f32.partialorder %v1053, 0.0
    %vm1244 = vcmp.gt.f32.partialorder %v1058, 0.0
    %vm1245 = vcmp.gt.f32.partialorder %v1063, 0.0
    %vm1246 = vcmp.gt.f32.partialorder %v1068, 0.0
    %vm1247 = vcmp.gt.f32.partialorder %v1073, 0.0
    %vm1248 = vcmp.gt.f32.partialorder %v1078, 0.0
    %vm1249 = vcmp.gt.f32.partialorder %v1083, 0.0
    %vm1250 = vcmp.gt.f32.partialorder %v1088, 0.0
    %vm1251 = vcmp.gt.f32.partialorder %v1093, 0.0
    %vm1252 = vcmp.gt.f32.partialorder %v1098, 0.0
    %vm1253 = vcmp.gt.f32.partialorder %v1103, 0.0
    %vm1254 = vcmp.gt.f32.partialorder %v1108, 0.0
    %vm1255 = vcmp.gt.f32.partialorder %v1113, 0.0
    %vm1256 = vcmp.gt.f32.partialorder %v1118, 0.0
    %vm1257 = vcmp.gt.f32.partialorder %v1123, 0.0
    %vm1258 = vcmp.gt.f32.partialorder %v1128, 0.0
    %vm1259 = vcmp.gt.f32.partialorder %v1133, 0.0
    %vm1260 = vcmp.gt.f32.partialorder %v1138, 0.0
    %vm1261 = vcmp.gt.f32.partialorder %v1143, 0.0
    %v1262 = vmin.f32 %v568, 0.0
    %v1263 = vmin.f32 %v573, 0.0
    %v1264 = vmin.f32 %v578, 0.0
    %v1265 = vmin.f32 %v583, 0.0
    %v1266 = vmin.f32 %v588, 0.0
    %v1267 = vmin.f32 %v593, 0.0
    %v1268 = vmin.f32 %v598, 0.0
    %v1269 = vmin.f32 %v603, 0.0
    %v1270 = vmin.f32 %v608, 0.0
    %v1271 = vmin.f32 %v613, 0.0
    %v1272 = vmin.f32 %v618, 0.0
    %v1273 = vmin.f32 %v623, 0.0
    %v1274 = vmin.f32 %v628, 0.0
    %v1275 = vmin.f32 %v633, 0.0
    %v1276 = vmin.f32 %v638, 0.0
    %v1277 = vmin.f32 %v643, 0.0
    %v1278 = vmin.f32 %v648, 0.0
    %v1279 = vmin.f32 %v653, 0.0
    %v1280 = vmin.f32 %v658, 0.0
    %v1281 = vmin.f32 %v663, 0.0
    %v1282 = vmin.f32 %v668, 0.0
    %v1283 = vmin.f32 %v673, 0.0
    %v1284 = vmin.f32 %v678, 0.0
    %v1285 = vmin.f32 %v683, 0.0
    %v1286 = vmin.f32 %v688, 0.0
    %v1287 = vmin.f32 %v693, 0.0
    %v1288 = vmin.f32 %v698, 0.0
    %v1289 = vmin.f32 %v703, 0.0
    %v1290 = vmin.f32 %v708, 0.0
    %v1291 = vmin.f32 %v713, 0.0
    %v1292 = vmin.f32 %v718, 0.0
    %v1293 = vmin.f32 %v723, 0.0
    %v1294 = vmin.f32 %v728, 0.0
    %v1295 = vmin.f32 %v733, 0.0
    %v1296 = vmin.f32 %v738, 0.0
    %v1297 = vmin.f32 %v743, 0.0
    %v1298 = vmin.f32 %v748, 0.0
    %v1299 = vmin.f32 %v753, 0.0
    %v1300 = vmin.f32 %v758, 0.0
    %v1301 = vmin.f32 %v763, 0.0
    %v1302 = vmin.f32 %v768, 0.0
    %v1303 = vmin.f32 %v773, 0.0
    %v1304 = vmin.f32 %v778, 0.0
    %v1305 = vmin.f32 %v783, 0.0
    %v1306 = vmin.f32 %v788, 0.0
    %v1307 = vmin.f32 %v793, 0.0
    %v1308 = vmin.f32 %v798, 0.0
    %v1309 = vmin.f32 %v803, 0.0
    %v1310 = vmin.f32 %v808, 0.0
    %v1311 = vmin.f32 %v813, 0.0
    %v1312 = vmin.f32 %v818, 0.0
    %v1313 = vmin.f32 %v823, 0.0
    %v1314 = vmin.f32 %v828, 0.0
    %v1315 = vmin.f32 %v833, 0.0
    %v1316 = vmin.f32 %v838, 0.0
    %v1317 = vmin.f32 %v843, 0.0
    %v1318 = vmin.f32 %v848, 0.0
    %v1319 = vmin.f32 %v853, 0.0
    %v1320 = vmin.f32 %v858, 0.0
    %v1321 = vmin.f32 %v863, 0.0
    %v1322 = vmin.f32 %v868, 0.0
    %v1323 = vmin.f32 %v873, 0.0
    %v1324 = vmin.f32 %v878, 0.0
    %v1325 = vmin.f32 %v883, 0.0
    %v1326 = vmin.f32 %v888, 0.0
    %v1327 = vmin.f32 %v893, 0.0
    %v1328 = vmin.f32 %v898, 0.0
    %v1329 = vmin.f32 %v903, 0.0
    %v1330 = vmin.f32 %v908, 0.0
    %v1331 = vmin.f32 %v913, 0.0
    %v1332 = vmin.f32 %v918, 0.0
    %v1333 = vmin.f32 %v923, 0.0
    %v1334 = vmin.f32 %v928, 0.0
    %v1335 = vmin.f32 %v933, 0.0
    %v1336 = vmin.f32 %v938, 0.0
    %v1337 = vmin.f32 %v943, 0.0
    %v1338 = vmin.f32 %v948, 0.0
    %v1339 = vmin.f32 %v953, 0.0
    %v1340 = vmin.f32 %v958, 0.0
    %v1341 = vmin.f32 %v963, 0.0
    %v1342 = vmin.f32 %v968, 0.0
    %v1343 = vmin.f32 %v973, 0.0
    %v1344 = vmin.f32 %v978, 0.0
    %v1345 = vmin.f32 %v983, 0.0
    %v1346 = vmin.f32 %v988, 0.0
    %v1347 = vmin.f32 %v993, 0.0
    %v1348 = vmin.f32 %v998, 0.0
    %v1349 = vmin.f32 %v1003, 0.0
    %v1350 = vmin.f32 %v1008, 0.0
    %v1351 = vmin.f32 %v1013, 0.0
    %v1352 = vmin.f32 %v1018, 0.0
    %v1353 = vmin.f32 %v1023, 0.0
    %v1354 = vmin.f32 %v1028, 0.0
    %v1355 = vmin.f32 %v1033, 0.0
    %v1356 = vmin.f32 %v1038, 0.0
    %v1357 = vmin.f32 %v1043, 0.0
    %v1358 = vmin.f32 %v1048, 0.0
    %v1359 = vmin.f32 %v1053, 0.0
    %v1360 = vmin.f32 %v1058, 0.0
    %v1361 = vmin.f32 %v1063, 0.0
    %v1362 = vmin.f32 %v1068, 0.0
    %v1363 = vmin.f32 %v1073, 0.0
    %v1364 = vmin.f32 %v1078, 0.0
    %v1365 = vmin.f32 %v1083, 0.0
    %v1366 = vmin.f32 %v1088, 0.0
    %v1367 = vmin.f32 %v1093, 0.0
    %v1368 = vmin.f32 %v1098, 0.0
    %v1369 = vmin.f32 %v1103, 0.0
    %v1370 = vmin.f32 %v1108, 0.0
    %v1371 = vmin.f32 %v1113, 0.0
    %v1372 = vmin.f32 %v1118, 0.0
    %v1373 = vmin.f32 %v1123, 0.0
    %v1374 = vmin.f32 %v1128, 0.0
    %v1375 = vmin.f32 %v1133, 0.0
    %v1376 = vmin.f32 %v1138, 0.0
    %v1377 = vmin.f32 %v1143, 0.0
    %v1378 = vmul.f32 %v1262, 1.442695
    %v1379 = vpow.pop %v1378
    %v1380 = vmul.f32 %v1263, 1.442695
    %v1381 = vpow.pop %v1380
    %v1382 = vmul.f32 %v1264, 1.442695
    %v1383 = vpow.pop %v1382
    %v1384 = vmul.f32 %v1265, 1.442695
    %v1385 = vpow.pop %v1384
    %v1386 = vmul.f32 %v1266, 1.442695
    %v1387 = vpow.pop %v1386
    %v1388 = vmul.f32 %v1267, 1.442695
    %v1389 = vpow.pop %v1388
    %v1390 = vmul.f32 %v1268, 1.442695
    %v1391 = vpow.pop %v1390
    %v1392 = vmul.f32 %v1269, 1.442695
    %v1393 = vpow.pop %v1392
    %v1394 = vmul.f32 %v1270, 1.442695
    %v1395 = vpow.pop %v1394
    %v1396 = vmul.f32 %v1271, 1.442695
    %v1397 = vpow.pop %v1396
    %v1398 = vmul.f32 %v1272, 1.442695
    %v1399 = vpow.pop %v1398
    %v1400 = vmul.f32 %v1273, 1.442695
    %v1401 = vpow.pop %v1400
    %v1402 = vmul.f32 %v1274, 1.442695
    %v1403 = vpow.pop %v1402
    %v1404 = vmul.f32 %v1275, 1.442695
    %v1405 = vpow.pop %v1404
    %v1406 = vmul.f32 %v1276, 1.442695
    %v1407 = vpow.pop %v1406
    %v1408 = vmul.f32 %v1277, 1.442695
    %v1409 = vpow.pop %v1408
    %v1410 = vmul.f32 %v1278, 1.442695
    %v1411 = vpow.pop %v1410
    %v1412 = vmul.f32 %v1279, 1.442695
    %v1413 = vpow.pop %v1412
    %v1414 = vmul.f32 %v1280, 1.442695
    %v1415 = vpow.pop %v1414
    %v1416 = vmul.f32 %v1281, 1.442695
    %v1417 = vpow.pop %v1416
    %v1418 = vmul.f32 %v1282, 1.442695
    %v1419 = vpow.pop %v1418
    %v1420 = vmul.f32 %v1283, 1.442695
    %v1421 = vpow.pop %v1420
    %v1422 = vmul.f32 %v1284, 1.442695
    %v1423 = vpow.pop %v1422
    %v1424 = vmul.f32 %v1285, 1.442695
    %v1425 = vpow.pop %v1424
    %v1426 = vmul.f32 %v1286, 1.442695
    %v1427 = vpow.pop %v1426
    %v1428 = vmul.f32 %v1287, 1.442695
    %v1429 = vpow.pop %v1428
    %v1430 = vmul.f32 %v1288, 1.442695
    %v1431 = vpow.pop %v1430
    %v1432 = vmul.f32 %v1289, 1.442695
    %v1433 = vpow.pop %v1432
    %v1434 = vmul.f32 %v1290, 1.442695
    %v1435 = vpow.pop %v1434
    %v1436 = vmul.f32 %v1291, 1.442695
    %v1437 = vpow.pop %v1436
    %v1438 = vmul.f32 %v1292, 1.442695
    %v1439 = vpow.pop %v1438
    %v1440 = vmul.f32 %v1293, 1.442695
    %v1441 = vpow.pop %v1440
    %v1442 = vmul.f32 %v1294, 1.442695
    %v1443 = vpow.pop %v1442
    %v1444 = vmul.f32 %v1295, 1.442695
    %v1445 = vpow.pop %v1444
    %v1446 = vmul.f32 %v1296, 1.442695
    %v1447 = vpow.pop %v1446
    %v1448 = vmul.f32 %v1297, 1.442695
    %v1449 = vpow.pop %v1448
    %v1450 = vmul.f32 %v1298, 1.442695
    %v1451 = vpow.pop %v1450
    %v1452 = vmul.f32 %v1299, 1.442695
    %v1453 = vpow.pop %v1452
    %v1454 = vmul.f32 %v1300, 1.442695
    %v1455 = vpow.pop %v1454
    %v1456 = vmul.f32 %v1301, 1.442695
    %v1457 = vpow.pop %v1456
    %v1458 = vmul.f32 %v1302, 1.442695
    %v1459 = vpow.pop %v1458
    %v1460 = vmul.f32 %v1303, 1.442695
    %v1461 = vpow.pop %v1460
    %v1462 = vmul.f32 %v1304, 1.442695
    %v1463 = vpow.pop %v1462
    %v1464 = vmul.f32 %v1305, 1.442695
    %v1465 = vpow.pop %v1464
    %v1466 = vmul.f32 %v1306, 1.442695
    %v1467 = vpow.pop %v1466
    %v1468 = vmul.f32 %v1307, 1.442695
    %v1469 = vpow.pop %v1468
    %v1470 = vmul.f32 %v1308, 1.442695
    %v1471 = vpow.pop %v1470
    %v1472 = vmul.f32 %v1309, 1.442695
    %v1473 = vpow.pop %v1472
    %v1474 = vmul.f32 %v1310, 1.442695
    %v1475 = vpow.pop %v1474
    %v1476 = vmul.f32 %v1311, 1.442695
    %v1477 = vpow.pop %v1476
    %v1478 = vmul.f32 %v1312, 1.442695
    %v1479 = vpow.pop %v1478
    %v1480 = vmul.f32 %v1313, 1.442695
    %v1481 = vpow.pop %v1480
    %v1482 = vmul.f32 %v1314, 1.442695
    %v1483 = vpow.pop %v1482
    %v1484 = vmul.f32 %v1315, 1.442695
    %v1485 = vpow.pop %v1484
    %v1486 = vmul.f32 %v1316, 1.442695
    %v1487 = vpow.pop %v1486
    %v1488 = vmul.f32 %v1317, 1.442695
    %v1489 = vpow.pop %v1488
    %v1490 = vmul.f32 %v1318, 1.442695
    %v1491 = vpow.pop %v1490
    %v1492 = vmul.f32 %v1319, 1.442695
    %v1493 = vpow.pop %v1492
    %v1494 = vmul.f32 %v1320, 1.442695
    %v1495 = vpow.pop %v1494
    %v1496 = vmul.f32 %v1321, 1.442695
    %v1497 = vpow.pop %v1496
    %v1498 = vmul.f32 %v1322, 1.442695
    %v1499 = vpow.pop %v1498
    %v1500 = vmul.f32 %v1323, 1.442695
    %v1501 = vpow.pop %v1500
    %v1502 = vmul.f32 %v1324, 1.442695
    %v1503 = vpow.pop %v1502
    %v1504 = vmul.f32 %v1325, 1.442695
    %v1505 = vpow.pop %v1504
    %v1506 = vmul.f32 %v1326, 1.442695
    %v1507 = vpow.pop %v1506
    %v1508 = vmul.f32 %v1327, 1.442695
    %v1509 = vpow.pop %v1508
    %v1510 = vmul.f32 %v1328, 1.442695
    %v1511 = vpow.pop %v1510
    %v1512 = vmul.f32 %v1329, 1.442695
    %v1513 = vpow.pop %v1512
    %v1514 = vmul.f32 %v1330, 1.442695
    %v1515 = vpow.pop %v1514
    %v1516 = vmul.f32 %v1331, 1.442695
    %v1517 = vpow.pop %v1516
    %v1518 = vmul.f32 %v1332, 1.442695
    %v1519 = vpow.pop %v1518
    %v1520 = vmul.f32 %v1333, 1.442695
    %v1521 = vpow.pop %v1520
    %v1522 = vmul.f32 %v1334, 1.442695
    %v1523 = vpow.pop %v1522
    %v1524 = vmul.f32 %v1335, 1.442695
    %v1525 = vpow.pop %v1524
    %v1526 = vmul.f32 %v1336, 1.442695
    %v1527 = vpow.pop %v1526
    %v1528 = vmul.f32 %v1337, 1.442695
    %v1529 = vpow.pop %v1528
    %v1530 = vmul.f32 %v1338, 1.442695
    %v1531 = vpow.pop %v1530
    %v1532 = vmul.f32 %v1339, 1.442695
    %v1533 = vpow.pop %v1532
    %v1534 = vmul.f32 %v1340, 1.442695
    %v1535 = vpow.pop %v1534
    %v1536 = vmul.f32 %v1341, 1.442695
    %v1537 = vpow.pop %v1536
    %v1538 = vmul.f32 %v1342, 1.442695
    %v1539 = vpow.pop %v1538
    %v1540 = vmul.f32 %v1343, 1.442695
    %v1541 = vpow.pop %v1540
    %v1542 = vmul.f32 %v1344, 1.442695
    %v1543 = vpow.pop %v1542
    %v1544 = vmul.f32 %v1345, 1.442695
    %v1545 = vpow.pop %v1544
    %v1546 = vmul.f32 %v1346, 1.442695
    %v1547 = vpow.pop %v1546
    %v1548 = vmul.f32 %v1347, 1.442695
    %v1549 = vpow.pop %v1548
    %v1550 = vmul.f32 %v1348, 1.442695
    %v1551 = vpow.pop %v1550
    %v1552 = vmul.f32 %v1349, 1.442695
    %v1553 = vpow.pop %v1552
    %v1554 = vmul.f32 %v1350, 1.442695
    %v1555 = vpow.pop %v1554
    %v1556 = vmul.f32 %v1351, 1.442695
    %v1557 = vpow.pop %v1556
    %v1558 = vmul.f32 %v1352, 1.442695
    %v1559 = vpow.pop %v1558
    %v1560 = vmul.f32 %v1353, 1.442695
    %v1561 = vpow.pop %v1560
    %v1562 = vmul.f32 %v1354, 1.442695
    %v1563 = vpow.pop %v1562
    %v1564 = vmul.f32 %v1355, 1.442695
    %v1565 = vpow.pop %v1564
    %v1566 = vmul.f32 %v1356, 1.442695
    %v1567 = vpow.pop %v1566
    %v1568 = vmul.f32 %v1357, 1.442695
    %v1569 = vpow.pop %v1568
    %v1570 = vmul.f32 %v1358, 1.442695
    %v1571 = vpow.pop %v1570
    %v1572 = vmul.f32 %v1359, 1.442695
    %v1573 = vpow.pop %v1572
    %v1574 = vmul.f32 %v1360, 1.442695
    %v1575 = vpow.pop %v1574
    %v1576 = vmul.f32 %v1361, 1.442695
    %v1577 = vpow.pop %v1576
    %v1578 = vmul.f32 %v1362, 1.442695
    %v1579 = vpow.pop %v1578
    %v1580 = vmul.f32 %v1363, 1.442695
    %v1581 = vpow.pop %v1580
    %v1582 = vmul.f32 %v1364, 1.442695
    %v1583 = vpow.pop %v1582
    %v1584 = vmul.f32 %v1365, 1.442695
    %v1585 = vpow.pop %v1584
    %v1586 = vmul.f32 %v1366, 1.442695
    %v1587 = vpow.pop %v1586
    %v1588 = vmul.f32 %v1367, 1.442695
    %v1589 = vpow.pop %v1588
    %v1590 = vmul.f32 %v1368, 1.442695
    %v1591 = vpow.pop %v1590
    %v1592 = vmul.f32 %v1369, 1.442695
    %v1593 = vpow.pop %v1592
    %v1594 = vmul.f32 %v1370, 1.442695
    %v1595 = vpow.pop %v1594
    %v1596 = vmul.f32 %v1371, 1.442695
    %v1597 = vpow.pop %v1596
    %v1598 = vmul.f32 %v1372, 1.442695
    %v1599 = vpow.pop %v1598
    %v1600 = vmul.f32 %v1373, 1.442695
    %v1601 = vpow.pop %v1600
    %v1602 = vmul.f32 %v1374, 1.442695
    %v1603 = vpow.pop %v1602
    %v1604 = vmul.f32 %v1375, 1.442695
    %v1605 = vpow.pop %v1604
    %v1606 = vmul.f32 %v1376, 1.442695
    %v1607 = vpow.pop %v1606
    %v1608 = vmul.f32 %v1377, 1.442695
    %v1609 = vpow.pop %v1608
    %v1610 = vsub.f32 %v1379, 1.0
    %v1611 = vsub.f32 %v1381, 1.0
    %v1612 = vsub.f32 %v1383, 1.0
    %v1613 = vsub.f32 %v1385, 1.0
    %v1614 = vsub.f32 %v1387, 1.0
    %v1615 = vsub.f32 %v1389, 1.0
    %v1616 = vsub.f32 %v1391, 1.0
    %v1617 = vsub.f32 %v1393, 1.0
    %v1618 = vsub.f32 %v1395, 1.0
    %v1619 = vsub.f32 %v1397, 1.0
    %v1620 = vsub.f32 %v1399, 1.0
    %v1621 = vsub.f32 %v1401, 1.0
    %v1622 = vsub.f32 %v1403, 1.0
    %v1623 = vsub.f32 %v1405, 1.0
    %v1624 = vsub.f32 %v1407, 1.0
    %v1625 = vsub.f32 %v1409, 1.0
    %v1626 = vsub.f32 %v1411, 1.0
    %v1627 = vsub.f32 %v1413, 1.0
    %v1628 = vsub.f32 %v1415, 1.0
    %v1629 = vsub.f32 %v1417, 1.0
    %v1630 = vsub.f32 %v1419, 1.0
    %v1631 = vsub.f32 %v1421, 1.0
    %v1632 = vsub.f32 %v1423, 1.0
    %v1633 = vsub.f32 %v1425, 1.0
    %v1634 = vsub.f32 %v1427, 1.0
    %v1635 = vsub.f32 %v1429, 1.0
    %v1636 = vsub.f32 %v1431, 1.0
    %v1637 = vsub.f32 %v1433, 1.0
    %v1638 = vsub.f32 %v1435, 1.0
    %v1639 = vsub.f32 %v1437, 1.0
    %v1640 = vsub.f32 %v1439, 1.0
    %v1641 = vsub.f32 %v1441, 1.0
    %v1642 = vsub.f32 %v1443, 1.0
    %v1643 = vsub.f32 %v1445, 1.0
    %v1644 = vsub.f32 %v1447, 1.0
    %v1645 = vsub.f32 %v1449, 1.0
    %v1646 = vsub.f32 %v1451, 1.0
    %v1647 = vsub.f32 %v1453, 1.0
    %v1648 = vsub.f32 %v1455, 1.0
    %v1649 = vsub.f32 %v1457, 1.0
    %v1650 = vsub.f32 %v1459, 1.0
    %v1651 = vsub.f32 %v1461, 1.0
    %v1652 = vsub.f32 %v1463, 1.0
    %v1653 = vsub.f32 %v1465, 1.0
    %v1654 = vsub.f32 %v1467, 1.0
    %v1655 = vsub.f32 %v1469, 1.0
    %v1656 = vsub.f32 %v1471, 1.0
    %v1657 = vsub.f32 %v1473, 1.0
    %v1658 = vsub.f32 %v1475, 1.0
    %v1659 = vsub.f32 %v1477, 1.0
    %v1660 = vsub.f32 %v1479, 1.0
    %v1661 = vsub.f32 %v1481, 1.0
    %v1662 = vsub.f32 %v1483, 1.0
    %v1663 = vsub.f32 %v1485, 1.0
    %v1664 = vsub.f32 %v1487, 1.0
    %v1665 = vsub.f32 %v1489, 1.0
    %v1666 = vsub.f32 %v1491, 1.0
    %v1667 = vsub.f32 %v1493, 1.0
    %v1668 = vsub.f32 %v1495, 1.0
    %v1669 = vsub.f32 %v1497, 1.0
    %v1670 = vsub.f32 %v1499, 1.0
    %v1671 = vsub.f32 %v1501, 1.0
    %v1672 = vsub.f32 %v1503, 1.0
    %v1673 = vsub.f32 %v1505, 1.0
    %v1674 = vsub.f32 %v1507, 1.0
    %v1675 = vsub.f32 %v1509, 1.0
    %v1676 = vsub.f32 %v1511, 1.0
    %v1677 = vsub.f32 %v1513, 1.0
    %v1678 = vsub.f32 %v1515, 1.0
    %v1679 = vsub.f32 %v1517, 1.0
    %v1680 = vsub.f32 %v1519, 1.0
    %v1681 = vsub.f32 %v1521, 1.0
    %v1682 = vsub.f32 %v1523, 1.0
    %v1683 = vsub.f32 %v1525, 1.0
    %v1684 = vsub.f32 %v1527, 1.0
    %v1685 = vsub.f32 %v1529, 1.0
    %v1686 = vsub.f32 %v1531, 1.0
    %v1687 = vsub.f32 %v1533, 1.0
    %v1688 = vsub.f32 %v1535, 1.0
    %v1689 = vsub.f32 %v1537, 1.0
    %v1690 = vsub.f32 %v1539, 1.0
    %v1691 = vsub.f32 %v1541, 1.0
    %v1692 = vsub.f32 %v1543, 1.0
    %v1693 = vsub.f32 %v1545, 1.0
    %v1694 = vsub.f32 %v1547, 1.0
    %v1695 = vsub.f32 %v1549, 1.0
    %v1696 = vsub.f32 %v1551, 1.0
    %v1697 = vsub.f32 %v1553, 1.0
    %v1698 = vsub.f32 %v1555, 1.0
    %v1699 = vsub.f32 %v1557, 1.0
    %v1700 = vsub.f32 %v1559, 1.0
    %v1701 = vsub.f32 %v1561, 1.0
    %v1702 = vsub.f32 %v1563, 1.0
    %v1703 = vsub.f32 %v1565, 1.0
    %v1704 = vsub.f32 %v1567, 1.0
    %v1705 = vsub.f32 %v1569, 1.0
    %v1706 = vsub.f32 %v1571, 1.0
    %v1707 = vsub.f32 %v1573, 1.0
    %v1708 = vsub.f32 %v1575, 1.0
    %v1709 = vsub.f32 %v1577, 1.0
    %v1710 = vsub.f32 %v1579, 1.0
    %v1711 = vsub.f32 %v1581, 1.0
    %v1712 = vsub.f32 %v1583, 1.0
    %v1713 = vsub.f32 %v1585, 1.0
    %v1714 = vsub.f32 %v1587, 1.0
    %v1715 = vsub.f32 %v1589, 1.0
    %v1716 = vsub.f32 %v1591, 1.0
    %v1717 = vsub.f32 %v1593, 1.0
    %v1718 = vsub.f32 %v1595, 1.0
    %v1719 = vsub.f32 %v1597, 1.0
    %v1720 = vsub.f32 %v1599, 1.0
    %v1721 = vsub.f32 %v1601, 1.0
    %v1722 = vsub.f32 %v1603, 1.0
    %v1723 = vsub.f32 %v1605, 1.0
    %v1724 = vsub.f32 %v1607, 1.0
    %v1725 = vsub.f32 %v1609, 1.0
    %v1726 = vsel %vm1146, %v568, %v1610
    %v1727 = vsel %vm1147, %v573, %v1611
    %v1728 = vsel %vm1148, %v578, %v1612
    %v1729 = vsel %vm1149, %v583, %v1613
    %v1730 = vsel %vm1150, %v588, %v1614
    %v1731 = vsel %vm1151, %v593, %v1615
    %v1732 = vsel %vm1152, %v598, %v1616
    %v1733 = vsel %vm1153, %v603, %v1617
    %v1734 = vsel %vm1154, %v608, %v1618
    %v1735 = vsel %vm1155, %v613, %v1619
    %v1736 = vsel %vm1156, %v618, %v1620
    %v1737 = vsel %vm1157, %v623, %v1621
    %v1738 = vsel %vm1158, %v628, %v1622
    %v1739 = vsel %vm1159, %v633, %v1623
    %v1740 = vsel %vm1160, %v638, %v1624
    %v1741 = vsel %vm1161, %v643, %v1625
    %v1742 = vsel %vm1162, %v648, %v1626
    %v1743 = vsel %vm1163, %v653, %v1627
    %v1744 = vsel %vm1164, %v658, %v1628
    %v1745 = vsel %vm1165, %v663, %v1629
    %v1746 = vsel %vm1166, %v668, %v1630
    %v1747 = vsel %vm1167, %v673, %v1631
    %v1748 = vsel %vm1168, %v678, %v1632
    %v1749 = vsel %vm1169, %v683, %v1633
    %v1750 = vsel %vm1170, %v688, %v1634
    %v1751 = vsel %vm1171, %v693, %v1635
    %v1752 = vsel %vm1172, %v698, %v1636
    %v1753 = vsel %vm1173, %v703, %v1637
    %v1754 = vsel %vm1174, %v708, %v1638
    %v1755 = vsel %vm1175, %v713, %v1639
    %v1756 = vsel %vm1176, %v718, %v1640
    %v1757 = vsel %vm1177, %v723, %v1641
    %v1758 = vsel %vm1178, %v728, %v1642
    %v1759 = vsel %vm1179, %v733, %v1643
    %v1760 = vsel %vm1180, %v738, %v1644
    %v1761 = vsel %vm1181, %v743, %v1645
    %v1762 = vsel %vm1182, %v748, %v1646
    %v1763 = vsel %vm1183, %v753, %v1647
    %v1764 = vsel %vm1184, %v758, %v1648
    %v1765 = vsel %vm1185, %v763, %v1649
    %v1766 = vsel %vm1186, %v768, %v1650
    %v1767 = vsel %vm1187, %v773, %v1651
    %v1768 = vsel %vm1188, %v778, %v1652
    %v1769 = vsel %vm1189, %v783, %v1653
    %v1770 = vsel %vm1190, %v788, %v1654
    %v1771 = vsel %vm1191, %v793, %v1655
    %v1772 = vsel %vm1192, %v798, %v1656
    %v1773 = vsel %vm1193, %v803, %v1657
    %v1774 = vsel %vm1194, %v808, %v1658
    %v1775 = vsel %vm1195, %v813, %v1659
    %v1776 = vsel %vm1196, %v818, %v1660
    %v1777 = vsel %vm1197, %v823, %v1661
    %v1778 = vsel %vm1198, %v828, %v1662
    %v1779 = vsel %vm1199, %v833, %v1663
    %v1780 = vsel %vm1200, %v838, %v1664
    %v1781 = vsel %vm1201, %v843, %v1665
    %v1782 = vsel %vm1202, %v848, %v1666
    %v1783 = vsel %vm1203, %v853, %v1667
    %v1784 = vsel %vm1204, %v858, %v1668
    %v1785 = vsel %vm1205, %v863, %v1669
    %v1786 = vsel %vm1206, %v868, %v1670
    %v1787 = vsel %vm1207, %v873, %v1671
    %v1788 = vsel %vm1208, %v878, %v1672
    %v1789 = vsel %vm1209, %v883, %v1673
    %v1790 = vsel %vm1210, %v888, %v1674
    %v1791 = vsel %vm1211, %v893, %v1675
    %v1792 = vsel %vm1212, %v898, %v1676
    %v1793 = vsel %vm1213, %v903, %v1677
    %v1794 = vsel %vm1214, %v908, %v1678
    %v1795 = vsel %vm1215, %v913, %v1679
    %v1796 = vsel %vm1216, %v918, %v1680
    %v1797 = vsel %vm1217, %v923, %v1681
    %v1798 = vsel %vm1218, %v928, %v1682
    %v1799 = vsel %vm1219, %v933, %v1683
    %v1800 = vsel %vm1220, %v938, %v1684
    %v1801 = vsel %vm1221, %v943, %v1685
    %v1802 = vsel %vm1222, %v948, %v1686
    %v1803 = vsel %vm1223, %v953, %v1687
    %v1804 = vsel %vm1224, %v958, %v1688
    %v1805 = vsel %vm1225, %v963, %v1689
    %v1806 = vsel %vm1226, %v968, %v1690
    %v1807 = vsel %vm1227, %v973, %v1691
    %v1808 = vsel %vm1228, %v978, %v1692
    %v1809 = vsel %vm1229, %v983, %v1693
    %v1810 = vsel %vm1230, %v988, %v1694
    %v1811 = vsel %vm1231, %v993, %v1695
    %v1812 = vsel %vm1232, %v998, %v1696
    %v1813 = vsel %vm1233, %v1003, %v1697
    %v1814 = vsel %vm1234, %v1008, %v1698
    %v1815 = vsel %vm1235, %v1013, %v1699
    %v1816 = vsel %vm1236, %v1018, %v1700
    %v1817 = vsel %vm1237, %v1023, %v1701
    %v1818 = vsel %vm1238, %v1028, %v1702
    %v1819 = vsel %vm1239, %v1033, %v1703
    %v1820 = vsel %vm1240, %v1038, %v1704
    %v1821 = vsel %vm1241, %v1043, %v1705
    %v1822 = vsel %vm1242, %v1048, %v1706
    %v1823 = vsel %vm1243, %v1053, %v1707
    %v1824 = vsel %vm1244, %v1058, %v1708
    %v1825 = vsel %vm1245, %v1063, %v1709
    %v1826 = vsel %vm1246, %v1068, %v1710
    %v1827 = vsel %vm1247, %v1073, %v1711
    %v1828 = vsel %vm1248, %v1078, %v1712
    %v1829 = vsel %vm1249, %v1083, %v1713
    %v1830 = vsel %vm1250, %v1088, %v1714
    %v1831 = vsel %vm1251, %v1093, %v1715
    %v1832 = vsel %vm1252, %v1098, %v1716
    %v1833 = vsel %vm1253, %v1103, %v1717
    %v1834 = vsel %vm1254, %v1108, %v1718
    %v1835 = vsel %vm1255, %v1113, %v1719
    %v1836 = vsel %vm1256, %v1118, %v1720
    %v1837 = vsel %vm1257, %v1123, %v1721
    %v1838 = vsel %vm1258, %v1128, %v1722
    %v1839 = vsel %vm1259, %v1133, %v1723
    %v1840 = vsel %vm1260, %v1138, %v1724
    %v1841 = vsel %vm1261, %v1143, %v1725
    %vm1842 = vcmask 523264
    %1843 = vst.msk [vmem:[#allocation2] sm:$0xff] %vm1842, %v1726
    %1844 = vst.msk [vmem:[#allocation2 + $0x8] sm:$0xff] %vm1842, %v1727
    %1845 = vst.msk [vmem:[#allocation2 + $0x10] sm:$0xff] %vm1842, %v1728
    %1846 = vst.msk [vmem:[#allocation2 + $0x18] sm:$0xff] %vm1842, %v1729
    %1847 = vst.msk [vmem:[#allocation2 + $0x20] sm:$0xff] %vm1842, %v1730
    %1848 = vst.msk [vmem:[#allocation2 + $0x28] sm:$0xff] %vm1842, %v1731
    %1849 = vst.msk [vmem:[#allocation2 + $0x30] sm:$0xff] %vm1842, %v1732
    %1850 = vst.msk [vmem:[#allocation2 + $0x38] sm:$0xff] %vm1842, %v1733
    %1851 = vst.msk [vmem:[#allocation2 + $0x40] sm:$0xff] %vm1842, %v1734
    %1852 = vst.msk [vmem:[#allocation2 + $0x48] sm:$0xff] %vm1842, %v1735
    %1853 = vst.msk [vmem:[#allocation2 + $0x50] sm:$0xff] %vm1842, %v1736
    %1854 = vst.msk [vmem:[#allocation2 + $0x58] sm:$0xff] %vm1842, %v1737
    %1855 = vst.msk [vmem:[#allocation2 + $0x60] sm:$0xff] %vm1842, %v1738
    %1856 = vst.msk [vmem:[#allocation2 + $0x68] sm:$0xff] %vm1842, %v1739
    %1857 = vst.msk [vmem:[#allocation2 + $0x70] sm:$0xff] %vm1842, %v1740
    %1858 = vst.msk [vmem:[#allocation2 + $0x78] sm:$0xff] %vm1842, %v1741
    %1859 = vst.msk [vmem:[#allocation2 + $0x80] sm:$0xff] %vm1842, %v1742
    %1860 = vst.msk [vmem:[#allocation2 + $0x88] sm:$0xff] %vm1842, %v1743
    %1861 = vst.msk [vmem:[#allocation2 + $0x90] sm:$0xff] %vm1842, %v1744
    %1862 = vst.msk [vmem:[#allocation2 + $0x98] sm:$0xff] %vm1842, %v1745
    %1863 = vst.msk [vmem:[#allocation2 + $0xa0] sm:$0xff] %vm1842, %v1746
    %1864 = vst.msk [vmem:[#allocation2 + $0xa8] sm:$0xff] %vm1842, %v1747
    %1865 = vst.msk [vmem:[#allocation2 + $0xb0] sm:$0xff] %vm1842, %v1748
    %1866 = vst.msk [vmem:[#allocation2 + $0xb8] sm:$0xff] %vm1842, %v1749
    %1867 = vst.msk [vmem:[#allocation2 + $0xc0] sm:$0xff] %vm1842, %v1750
    %1868 = vst.msk [vmem:[#allocation2 + $0xc8] sm:$0xff] %vm1842, %v1751
    %1869 = vst.msk [vmem:[#allocation2 + $0xd0] sm:$0xff] %vm1842, %v1752
    %1870 = vst.msk [vmem:[#allocation2 + $0xd8] sm:$0xff] %vm1842, %v1753
    %1871 = vst.msk [vmem:[#allocation2 + $0xe0] sm:$0xff] %vm1842, %v1754
    %1872 = vst.msk [vmem:[#allocation2 + $0xe8] sm:$0xff] %vm1842, %v1755
    %1873 = vst.msk [vmem:[#allocation2 + $0xf0] sm:$0xff] %vm1842, %v1756
    %1874 = vst.msk [vmem:[#allocation2 + $0xf8] sm:$0xff] %vm1842, %v1757
    %1875 = vst.msk [vmem:[#allocation2 + $0x100] sm:$0xff] %vm1842, %v1758
    %1876 = vst.msk [vmem:[#allocation2 + $0x108] sm:$0xff] %vm1842, %v1759
    %1877 = vst.msk [vmem:[#allocation2 + $0x110] sm:$0xff] %vm1842, %v1760
    %1878 = vst.msk [vmem:[#allocation2 + $0x118] sm:$0xff] %vm1842, %v1761
    %1879 = vst.msk [vmem:[#allocation2 + $0x120] sm:$0xff] %vm1842, %v1762
    %1880 = vst.msk [vmem:[#allocation2 + $0x128] sm:$0xff] %vm1842, %v1763
    %1881 = vst.msk [vmem:[#allocation2 + $0x130] sm:$0xff] %vm1842, %v1764
    %1882 = vst.msk [vmem:[#allocation2 + $0x138] sm:$0xff] %vm1842, %v1765
    %1883 = vst.msk [vmem:[#allocation2 + $0x140] sm:$0xff] %vm1842, %v1766
    %1884 = vst.msk [vmem:[#allocation2 + $0x148] sm:$0xff] %vm1842, %v1767
    %1885 = vst.msk [vmem:[#allocation2 + $0x150] sm:$0xff] %vm1842, %v1768
    %1886 = vst.msk [vmem:[#allocation2 + $0x158] sm:$0xff] %vm1842, %v1769
    %1887 = vst.msk [vmem:[#allocation2 + $0x160] sm:$0xff] %vm1842, %v1770
    %1888 = vst.msk [vmem:[#allocation2 + $0x168] sm:$0xff] %vm1842, %v1771
    %1889 = vst.msk [vmem:[#allocation2 + $0x170] sm:$0xff] %vm1842, %v1772
    %1890 = vst.msk [vmem:[#allocation2 + $0x178] sm:$0xff] %vm1842, %v1773
    %1891 = vst.msk [vmem:[#allocation2 + $0x180] sm:$0xff] %vm1842, %v1774
    %1892 = vst.msk [vmem:[#allocation2 + $0x188] sm:$0xff] %vm1842, %v1775
    %1893 = vst.msk [vmem:[#allocation2 + $0x190] sm:$0xff] %vm1842, %v1776
    %1894 = vst.msk [vmem:[#allocation2 + $0x198] sm:$0xff] %vm1842, %v1777
    %1895 = vst.msk [vmem:[#allocation2 + $0x1a0] sm:$0xff] %vm1842, %v1778
    %1896 = vst.msk [vmem:[#allocation2 + $0x1a8] sm:$0xff] %vm1842, %v1779
    %1897 = vst.msk [vmem:[#allocation2 + $0x1b0] sm:$0xff] %vm1842, %v1780
    %1898 = vst.msk [vmem:[#allocation2 + $0x1b8] sm:$0xff] %vm1842, %v1781
    %1899 = vst.msk [vmem:[#allocation2 + $0x1c0] sm:$0xff] %vm1842, %v1782
    %1900 = vst.msk [vmem:[#allocation2 + $0x1c8] sm:$0xff] %vm1842, %v1783
    %1901 = vst.msk [vmem:[#allocation2 + $0x1d0] sm:$0xff] %vm1842, %v1784
    %1902 = vst.msk [vmem:[#allocation2 + $0x1d8] sm:$0xff] %vm1842, %v1785
    %1903 = vst.msk [vmem:[#allocation2 + $0x1e0] sm:$0xff] %vm1842, %v1786
    %1904 = vst.msk [vmem:[#allocation2 + $0x1e8] sm:$0xff] %vm1842, %v1787
    %1905 = vst.msk [vmem:[#allocation2 + $0x1f0] sm:$0xff] %vm1842, %v1788
    %1906 = vst.msk [vmem:[#allocation2 + $0x1f8] sm:$0xff] %vm1842, %v1789
    %1907 = vst.msk [vmem:[#allocation2 + $0x200] sm:$0xff] %vm1842, %v1790
    %1908 = vst.msk [vmem:[#allocation2 + $0x208] sm:$0xff] %vm1842, %v1791
    %1909 = vst.msk [vmem:[#allocation2 + $0x210] sm:$0xff] %vm1842, %v1792
    %1910 = vst.msk [vmem:[#allocation2 + $0x218] sm:$0xff] %vm1842, %v1793
    %1911 = vst.msk [vmem:[#allocation2 + $0x220] sm:$0xff] %vm1842, %v1794
    %1912 = vst.msk [vmem:[#allocation2 + $0x228] sm:$0xff] %vm1842, %v1795
    %1913 = vst.msk [vmem:[#allocation2 + $0x230] sm:$0xff] %vm1842, %v1796
    %1914 = vst.msk [vmem:[#allocation2 + $0x238] sm:$0xff] %vm1842, %v1797
    %1915 = vst.msk [vmem:[#allocation2 + $0x240] sm:$0xff] %vm1842, %v1798
    %1916 = vst.msk [vmem:[#allocation2 + $0x248] sm:$0xff] %vm1842, %v1799
    %1917 = vst.msk [vmem:[#allocation2 + $0x250] sm:$0xff] %vm1842, %v1800
    %1918 = vst.msk [vmem:[#allocation2 + $0x258] sm:$0xff] %vm1842, %v1801
    %1919 = vst.msk [vmem:[#allocation2 + $0x260] sm:$0xff] %vm1842, %v1802
    %1920 = vst.msk [vmem:[#allocation2 + $0x268] sm:$0xff] %vm1842, %v1803
    %1921 = vst.msk [vmem:[#allocation2 + $0x270] sm:$0xff] %vm1842, %v1804
    %1922 = vst.msk [vmem:[#allocation2 + $0x278] sm:$0xff] %vm1842, %v1805
    %1923 = vst.msk [vmem:[#allocation2 + $0x280] sm:$0xff] %vm1842, %v1806
    %1924 = vst.msk [vmem:[#allocation2 + $0x288] sm:$0xff] %vm1842, %v1807
    %1925 = vst.msk [vmem:[#allocation2 + $0x290] sm:$0xff] %vm1842, %v1808
    %1926 = vst.msk [vmem:[#allocation2 + $0x298] sm:$0xff] %vm1842, %v1809
    %1927 = vst.msk [vmem:[#allocation2 + $0x2a0] sm:$0xff] %vm1842, %v1810
    %1928 = vst.msk [vmem:[#allocation2 + $0x2a8] sm:$0xff] %vm1842, %v1811
    %1929 = vst.msk [vmem:[#allocation2 + $0x2b0] sm:$0xff] %vm1842, %v1812
    %1930 = vst.msk [vmem:[#allocation2 + $0x2b8] sm:$0xff] %vm1842, %v1813
    %1931 = vst.msk [vmem:[#allocation2 + $0x2c0] sm:$0xff] %vm1842, %v1814
    %1932 = vst.msk [vmem:[#allocation2 + $0x2c8] sm:$0xff] %vm1842, %v1815
    %1933 = vst.msk [vmem:[#allocation2 + $0x2d0] sm:$0xff] %vm1842, %v1816
    %1934 = vst.msk [vmem:[#allocation2 + $0x2d8] sm:$0xff] %vm1842, %v1817
    %1935 = vst.msk [vmem:[#allocation2 + $0x2e0] sm:$0xff] %vm1842, %v1818
    %1936 = vst.msk [vmem:[#allocation2 + $0x2e8] sm:$0xff] %vm1842, %v1819
    %1937 = vst.msk [vmem:[#allocation2 + $0x2f0] sm:$0xff] %vm1842, %v1820
    %1938 = vst.msk [vmem:[#allocation2 + $0x2f8] sm:$0xff] %vm1842, %v1821
    %1939 = vst.msk [vmem:[#allocation2 + $0x300] sm:$0xff] %vm1842, %v1822
    %1940 = vst.msk [vmem:[#allocation2 + $0x308] sm:$0xff] %vm1842, %v1823
    %1941 = vst.msk [vmem:[#allocation2 + $0x310] sm:$0xff] %vm1842, %v1824
    %1942 = vst.msk [vmem:[#allocation2 + $0x318] sm:$0xff] %vm1842, %v1825
    %1943 = vst.msk [vmem:[#allocation2 + $0x320] sm:$0xff] %vm1842, %v1826
    %1944 = vst.msk [vmem:[#allocation2 + $0x328] sm:$0xff] %vm1842, %v1827
    %1945 = vst.msk [vmem:[#allocation2 + $0x330] sm:$0xff] %vm1842, %v1828
    %1946 = vst.msk [vmem:[#allocation2 + $0x338] sm:$0xff] %vm1842, %v1829
    %1947 = vst.msk [vmem:[#allocation2 + $0x340] sm:$0xff] %vm1842, %v1830
    %1948 = vst.msk [vmem:[#allocation2 + $0x348] sm:$0xff] %vm1842, %v1831
    %1949 = vst.msk [vmem:[#allocation2 + $0x350] sm:$0xff] %vm1842, %v1832
    %1950 = vst.msk [vmem:[#allocation2 + $0x358] sm:$0xff] %vm1842, %v1833
    %1951 = vst.msk [vmem:[#allocation2 + $0x360] sm:$0xff] %vm1842, %v1834
    %1952 = vst.msk [vmem:[#allocation2 + $0x368] sm:$0xff] %vm1842, %v1835
    %1953 = vst.msk [vmem:[#allocation2 + $0x370] sm:$0xff] %vm1842, %v1836
    %1954 = vst.msk [vmem:[#allocation2 + $0x378] sm:$0xff] %vm1842, %v1837
    %1955 = vst.msk [vmem:[#allocation2 + $0x380] sm:$0xff] %vm1842, %v1838
    %1956 = vst.msk [vmem:[#allocation2 + $0x388] sm:$0xff] %vm1842, %v1839
    %1957 = vst.msk [vmem:[#allocation2 + $0x390] sm:$0xff] %vm1842, %v1840
    %1958 = vst.msk [vmem:[#allocation2 + $0x398] sm:$0xff] %vm1842, %v1841
    %v1959 = vld [vmem:[#allocation2] sm:$0xff]
    %v1960 = vld [vmem:[#allocation2 + $0x8] sm:$0xff]
    %v1961 = vld [vmem:[#allocation2 + $0x20] sm:$0xff]
    %v1962 = vld [vmem:[#allocation2 + $0x28] sm:$0xff]
    %v1963 = vld [vmem:[#allocation2 + $0x40] sm:$0xff]
    %v1964 = vld [vmem:[#allocation2 + $0x48] sm:$0xff]
    %v1965 = vld [vmem:[#allocation2 + $0x60] sm:$0xff]
    %v1966 = vld [vmem:[#allocation2 + $0x68] sm:$0xff]
    %v1967 = vld [vmem:[#allocation2 + $0x80] sm:$0xff]
    %v1968 = vld [vmem:[#allocation2 + $0x88] sm:$0xff]
    %v1969 = vld [vmem:[#allocation2 + $0xa0] sm:$0xff]
    %v1970 = vld [vmem:[#allocation2 + $0xa8] sm:$0xff]
    %v1971 = vld [vmem:[#allocation2 + $0xc0] sm:$0xff]
    %v1972 = vld [vmem:[#allocation2 + $0xc8] sm:$0xff]
    %v1973 = vld [vmem:[#allocation2 + $0xe0] sm:$0xff]
    %v1974 = vld [vmem:[#allocation2 + $0xe8] sm:$0xff]
    %v1975 = vld [vmem:[#allocation2 + $0x100] sm:$0xff]
    %v1976 = vld [vmem:[#allocation2 + $0x108] sm:$0xff]
    %v1977 = vld [vmem:[#allocation2 + $0x120] sm:$0xff]
    %v1978 = vld [vmem:[#allocation2 + $0x128] sm:$0xff]
    %v1979 = vld [vmem:[#allocation2 + $0x140] sm:$0xff]
    %v1980 = vld [vmem:[#allocation2 + $0x148] sm:$0xff]
    %v1981 = vld [vmem:[#allocation2 + $0x160] sm:$0xff]
    %v1982 = vld [vmem:[#allocation2 + $0x168] sm:$0xff]
    %v1983 = vld [vmem:[#allocation2 + $0x180] sm:$0xff]
    %v1984 = vld [vmem:[#allocation2 + $0x188] sm:$0xff]
    %v1985 = vld [vmem:[#allocation2 + $0x1a0] sm:$0xff]
    %v1986 = vld [vmem:[#allocation2 + $0x1a8] sm:$0xff]
    %v1987 = vld [vmem:[#allocation2 + $0x1c0] sm:$0xff]
    %v1988 = vld [vmem:[#allocation2 + $0x1c8] sm:$0xff]
    %v1989 = vld [vmem:[#allocation2 + $0x1e0] sm:$0xff]
    %v1990 = vld [vmem:[#allocation2 + $0x1e8] sm:$0xff]
    %v1991 = vld [vmem:[#allocation2 + $0x200] sm:$0xff]
    %v1992 = vld [vmem:[#allocation2 + $0x208] sm:$0xff]
    %v1993 = vld [vmem:[#allocation2 + $0x220] sm:$0xff]
    %v1994 = vld [vmem:[#allocation2 + $0x228] sm:$0xff]
    %v1995 = vld [vmem:[#allocation2 + $0x240] sm:$0xff]
    %v1996 = vld [vmem:[#allocation2 + $0x248] sm:$0xff]
    %v1997 = vld [vmem:[#allocation2 + $0x260] sm:$0xff]
    %v1998 = vld [vmem:[#allocation2 + $0x268] sm:$0xff]
    %v1999 = vld [vmem:[#allocation2 + $0x280] sm:$0xff]
    %v2000 = vld [vmem:[#allocation2 + $0x288] sm:$0xff]
    %v2001 = vld [vmem:[#allocation2 + $0x2a0] sm:$0xff]
    %v2002 = vld [vmem:[#allocation2 + $0x2a8] sm:$0xff]
    %v2003 = vld [vmem:[#allocation2 + $0x2c0] sm:$0xff]
    %v2004 = vld [vmem:[#allocation2 + $0x2c8] sm:$0xff]
    %v2005 = vld [vmem:[#allocation2 + $0x2e0] sm:$0xff]
    %v2006 = vld [vmem:[#allocation2 + $0x2e8] sm:$0xff]
    %v2007 = vld [vmem:[#allocation2 + $0x300] sm:$0xff]
    %v2008 = vld [vmem:[#allocation2 + $0x308] sm:$0xff]
    %v2009 = vld [vmem:[#allocation2 + $0x320] sm:$0xff]
    %v2010 = vld [vmem:[#allocation2 + $0x328] sm:$0xff]
    %v2011 = vld [vmem:[#allocation2 + $0x340] sm:$0xff]
    %v2012 = vld [vmem:[#allocation2 + $0x348] sm:$0xff]
    %v2013 = vld [vmem:[#allocation2 + $0x360] sm:$0xff]
    %v2014 = vld [vmem:[#allocation2 + $0x368] sm:$0xff]
    %s2015 = scalar_lea.vmem [#allocation2], 16
    %v2016 = vld [vmem:[%s2015] sm:$0xff]
    %v2017 = vld [vmem:[%s2015 + $0x8] sm:$0xff]
    %v2018 = vld [vmem:[%s2015 + $0x20] sm:$0xff]
    %v2019 = vld [vmem:[%s2015 + $0x28] sm:$0xff]
    %v2020 = vld [vmem:[%s2015 + $0x40] sm:$0xff]
    %v2021 = vld [vmem:[%s2015 + $0x48] sm:$0xff]
    %v2022 = vld [vmem:[%s2015 + $0x60] sm:$0xff]
    %v2023 = vld [vmem:[%s2015 + $0x68] sm:$0xff]
    %v2024 = vld [vmem:[%s2015 + $0x80] sm:$0xff]
    %v2025 = vld [vmem:[%s2015 + $0x88] sm:$0xff]
    %v2026 = vld [vmem:[%s2015 + $0xa0] sm:$0xff]
    %v2027 = vld [vmem:[%s2015 + $0xa8] sm:$0xff]
    %v2028 = vld [vmem:[%s2015 + $0xc0] sm:$0xff]
    %v2029 = vld [vmem:[%s2015 + $0xc8] sm:$0xff]
    %v2030 = vld [vmem:[%s2015 + $0xe0] sm:$0xff]
    %v2031 = vld [vmem:[%s2015 + $0xe8] sm:$0xff]
    %v2032 = vld [vmem:[%s2015 + $0x100] sm:$0xff]
    %v2033 = vld [vmem:[%s2015 + $0x108] sm:$0xff]
    %v2034 = vld [vmem:[%s2015 + $0x120] sm:$0xff]
    %v2035 = vld [vmem:[%s2015 + $0x128] sm:$0xff]
    %v2036 = vld [vmem:[%s2015 + $0x140] sm:$0xff]
    %v2037 = vld [vmem:[%s2015 + $0x148] sm:$0xff]
    %v2038 = vld [vmem:[%s2015 + $0x160] sm:$0xff]
    %v2039 = vld [vmem:[%s2015 + $0x168] sm:$0xff]
    %v2040 = vld [vmem:[%s2015 + $0x180] sm:$0xff]
    %v2041 = vld [vmem:[%s2015 + $0x188] sm:$0xff]
    %v2042 = vld [vmem:[%s2015 + $0x1a0] sm:$0xff]
    %v2043 = vld [vmem:[%s2015 + $0x1a8] sm:$0xff]
    %v2044 = vld [vmem:[%s2015 + $0x1c0] sm:$0xff]
    %v2045 = vld [vmem:[%s2015 + $0x1c8] sm:$0xff]
    %v2046 = vld [vmem:[%s2015 + $0x1e0] sm:$0xff]
    %v2047 = vld [vmem:[%s2015 + $0x1e8] sm:$0xff]
    %v2048 = vld [vmem:[%s2015 + $0x200] sm:$0xff]
    %v2049 = vld [vmem:[%s2015 + $0x208] sm:$0xff]
    %v2050 = vld [vmem:[%s2015 + $0x220] sm:$0xff]
    %v2051 = vld [vmem:[%s2015 + $0x228] sm:$0xff]
    %v2052 = vld [vmem:[%s2015 + $0x240] sm:$0xff]
    %v2053 = vld [vmem:[%s2015 + $0x248] sm:$0xff]
    %v2054 = vld [vmem:[%s2015 + $0x260] sm:$0xff]
    %v2055 = vld [vmem:[%s2015 + $0x268] sm:$0xff]
    %v2056 = vld [vmem:[%s2015 + $0x280] sm:$0xff]
    %v2057 = vld [vmem:[%s2015 + $0x288] sm:$0xff]
    %v2058 = vld [vmem:[%s2015 + $0x2a0] sm:$0xff]
    %v2059 = vld [vmem:[%s2015 + $0x2a8] sm:$0xff]
    %v2060 = vld [vmem:[%s2015 + $0x2c0] sm:$0xff]
    %v2061 = vld [vmem:[%s2015 + $0x2c8] sm:$0xff]
    %v2062 = vld [vmem:[%s2015 + $0x2e0] sm:$0xff]
    %v2063 = vld [vmem:[%s2015 + $0x2e8] sm:$0xff]
    %v2064 = vld [vmem:[%s2015 + $0x300] sm:$0xff]
    %v2065 = vld [vmem:[%s2015 + $0x308] sm:$0xff]
    %v2066 = vld [vmem:[%s2015 + $0x320] sm:$0xff]
    %v2067 = vld [vmem:[%s2015 + $0x328] sm:$0xff]
    %v2068 = vld [vmem:[%s2015 + $0x340] sm:$0xff]
    %v2069 = vld [vmem:[%s2015 + $0x348] sm:$0xff]
    %v2070 = vld [vmem:[%s2015 + $0x360] sm:$0xff]
    %v2071 = vld [vmem:[%s2015 + $0x368] sm:$0xff]
    %v2072 = vadd.f32 %v1959, %v2016
    %v2073 = vadd.f32 %v1960, %v2017
    %v2074 = vadd.f32 %v1961, %v2018
    %v2075 = vadd.f32 %v1962, %v2019
    %v2076 = vadd.f32 %v1963, %v2020
    %v2077 = vadd.f32 %v1964, %v2021
    %v2078 = vadd.f32 %v1965, %v2022
    %v2079 = vadd.f32 %v1966, %v2023
    %v2080 = vadd.f32 %v1967, %v2024
    %v2081 = vadd.f32 %v1968, %v2025
    %v2082 = vadd.f32 %v1969, %v2026
    %v2083 = vadd.f32 %v1970, %v2027
    %v2084 = vadd.f32 %v1971, %v2028
    %v2085 = vadd.f32 %v1972, %v2029
    %v2086 = vadd.f32 %v1973, %v2030
    %v2087 = vadd.f32 %v1974, %v2031
    %v2088 = vadd.f32 %v1975, %v2032
    %v2089 = vadd.f32 %v1976, %v2033
    %v2090 = vadd.f32 %v1977, %v2034
    %v2091 = vadd.f32 %v1978, %v2035
    %v2092 = vadd.f32 %v1979, %v2036
    %v2093 = vadd.f32 %v1980, %v2037
    %v2094 = vadd.f32 %v1981, %v2038
    %v2095 = vadd.f32 %v1982, %v2039
    %v2096 = vadd.f32 %v1983, %v2040
    %v2097 = vadd.f32 %v1984, %v2041
    %v2098 = vadd.f32 %v1985, %v2042
    %v2099 = vadd.f32 %v1986, %v2043
    %v2100 = vadd.f32 %v1987, %v2044
    %v2101 = vadd.f32 %v1988, %v2045
    %v2102 = vadd.f32 %v1989, %v2046
    %v2103 = vadd.f32 %v1990, %v2047
    %v2104 = vadd.f32 %v1991, %v2048
    %v2105 = vadd.f32 %v1992, %v2049
    %v2106 = vadd.f32 %v1993, %v2050
    %v2107 = vadd.f32 %v1994, %v2051
    %v2108 = vadd.f32 %v1995, %v2052
    %v2109 = vadd.f32 %v1996, %v2053
    %v2110 = vadd.f32 %v1997, %v2054
    %v2111 = vadd.f32 %v1998, %v2055
    %v2112 = vadd.f32 %v1999, %v2056
    %v2113 = vadd.f32 %v2000, %v2057
    %v2114 = vadd.f32 %v2001, %v2058
    %v2115 = vadd.f32 %v2002, %v2059
    %v2116 = vadd.f32 %v2003, %v2060
    %v2117 = vadd.f32 %v2004, %v2061
    %v2118 = vadd.f32 %v2005, %v2062
    %v2119 = vadd.f32 %v2006, %v2063
    %v2120 = vadd.f32 %v2007, %v2064
    %v2121 = vadd.f32 %v2008, %v2065
    %v2122 = vadd.f32 %v2009, %v2066
    %v2123 = vadd.f32 %v2010, %v2067
    %v2124 = vadd.f32 %v2011, %v2068
    %v2125 = vadd.f32 %v2012, %v2069
    %v2126 = vadd.f32 %v2013, %v2070
    %v2127 = vadd.f32 %v2014, %v2071
    %s2128 = scalar_lea.vmem [#allocation2], 32
    %v2129 = vld [vmem:[%s2128] sm:$0xff]
    %v2130 = vld [vmem:[%s2128 + $0x8] sm:$0xff]
    %v2131 = vld [vmem:[%s2128 + $0x20] sm:$0xff]
    %v2132 = vld [vmem:[%s2128 + $0x28] sm:$0xff]
    %v2133 = vld [vmem:[%s2128 + $0x40] sm:$0xff]
    %v2134 = vld [vmem:[%s2128 + $0x48] sm:$0xff]
    %v2135 = vld [vmem:[%s2128 + $0x60] sm:$0xff]
    %v2136 = vld [vmem:[%s2128 + $0x68] sm:$0xff]
    %v2137 = vld [vmem:[%s2128 + $0x80] sm:$0xff]
    %v2138 = vld [vmem:[%s2128 + $0x88] sm:$0xff]
    %v2139 = vld [vmem:[%s2128 + $0xa0] sm:$0xff]
    %v2140 = vld [vmem:[%s2128 + $0xa8] sm:$0xff]
    %v2141 = vld [vmem:[%s2128 + $0xc0] sm:$0xff]
    %v2142 = vld [vmem:[%s2128 + $0xc8] sm:$0xff]
    %v2143 = vld [vmem:[%s2128 + $0xe0] sm:$0xff]
    %v2144 = vld [vmem:[%s2128 + $0xe8] sm:$0xff]
    %v2145 = vld [vmem:[%s2128 + $0x100] sm:$0xff]
    %v2146 = vld [vmem:[%s2128 + $0x108] sm:$0xff]
    %v2147 = vld [vmem:[%s2128 + $0x120] sm:$0xff]
    %v2148 = vld [vmem:[%s2128 + $0x128] sm:$0xff]
    %v2149 = vld [vmem:[%s2128 + $0x140] sm:$0xff]
    %v2150 = vld [vmem:[%s2128 + $0x148] sm:$0xff]
    %v2151 = vld [vmem:[%s2128 + $0x160] sm:$0xff]
    %v2152 = vld [vmem:[%s2128 + $0x168] sm:$0xff]
    %v2153 = vld [vmem:[%s2128 + $0x180] sm:$0xff]
    %v2154 = vld [vmem:[%s2128 + $0x188] sm:$0xff]
    %v2155 = vld [vmem:[%s2128 + $0x1a0] sm:$0xff]
    %v2156 = vld [vmem:[%s2128 + $0x1a8] sm:$0xff]
    %v2157 = vld [vmem:[%s2128 + $0x1c0] sm:$0xff]
    %v2158 = vld [vmem:[%s2128 + $0x1c8] sm:$0xff]
    %v2159 = vld [vmem:[%s2128 + $0x1e0] sm:$0xff]
    %v2160 = vld [vmem:[%s2128 + $0x1e8] sm:$0xff]
    %v2161 = vld [vmem:[%s2128 + $0x200] sm:$0xff]
    %v2162 = vld [vmem:[%s2128 + $0x208] sm:$0xff]
    %v2163 = vld [vmem:[%s2128 + $0x220] sm:$0xff]
    %v2164 = vld [vmem:[%s2128 + $0x228] sm:$0xff]
    %v2165 = vld [vmem:[%s2128 + $0x240] sm:$0xff]
    %v2166 = vld [vmem:[%s2128 + $0x248] sm:$0xff]
    %v2167 = vld [vmem:[%s2128 + $0x260] sm:$0xff]
    %v2168 = vld [vmem:[%s2128 + $0x268] sm:$0xff]
    %v2169 = vld [vmem:[%s2128 + $0x280] sm:$0xff]
    %v2170 = vld [vmem:[%s2128 + $0x288] sm:$0xff]
    %v2171 = vld [vmem:[%s2128 + $0x2a0] sm:$0xff]
    %v2172 = vld [vmem:[%s2128 + $0x2a8] sm:$0xff]
    %v2173 = vld [vmem:[%s2128 + $0x2c0] sm:$0xff]
    %v2174 = vld [vmem:[%s2128 + $0x2c8] sm:$0xff]
    %v2175 = vld [vmem:[%s2128 + $0x2e0] sm:$0xff]
    %v2176 = vld [vmem:[%s2128 + $0x2e8] sm:$0xff]
    %v2177 = vld [vmem:[%s2128 + $0x300] sm:$0xff]
    %v2178 = vld [vmem:[%s2128 + $0x308] sm:$0xff]
    %v2179 = vld [vmem:[%s2128 + $0x320] sm:$0xff]
    %v2180 = vld [vmem:[%s2128 + $0x328] sm:$0xff]
    %v2181 = vld [vmem:[%s2128 + $0x340] sm:$0xff]
    %v2182 = vld [vmem:[%s2128 + $0x348] sm:$0xff]
    %v2183 = vld [vmem:[%s2128 + $0x360] sm:$0xff]
    %v2184 = vld [vmem:[%s2128 + $0x368] sm:$0xff]
    %v2185 = vadd.f32 %v2072, %v2129
    %v2186 = vadd.f32 %v2073, %v2130
    %v2187 = vadd.f32 %v2074, %v2131
    %v2188 = vadd.f32 %v2075, %v2132
    %v2189 = vadd.f32 %v2076, %v2133
    %v2190 = vadd.f32 %v2077, %v2134
    %v2191 = vadd.f32 %v2078, %v2135
    %v2192 = vadd.f32 %v2079, %v2136
    %v2193 = vadd.f32 %v2080, %v2137
    %v2194 = vadd.f32 %v2081, %v2138
    %v2195 = vadd.f32 %v2082, %v2139
    %v2196 = vadd.f32 %v2083, %v2140
    %v2197 = vadd.f32 %v2084, %v2141
    %v2198 = vadd.f32 %v2085, %v2142
    %v2199 = vadd.f32 %v2086, %v2143
    %v2200 = vadd.f32 %v2087, %v2144
    %v2201 = vadd.f32 %v2088, %v2145
    %v2202 = vadd.f32 %v2089, %v2146
    %v2203 = vadd.f32 %v2090, %v2147
    %v2204 = vadd.f32 %v2091, %v2148
    %v2205 = vadd.f32 %v2092, %v2149
    %v2206 = vadd.f32 %v2093, %v2150
    %v2207 = vadd.f32 %v2094, %v2151
    %v2208 = vadd.f32 %v2095, %v2152
    %v2209 = vadd.f32 %v2096, %v2153
    %v2210 = vadd.f32 %v2097, %v2154
    %v2211 = vadd.f32 %v2098, %v2155
    %v2212 = vadd.f32 %v2099, %v2156
    %v2213 = vadd.f32 %v2100, %v2157
    %v2214 = vadd.f32 %v2101, %v2158
    %v2215 = vadd.f32 %v2102, %v2159
    %v2216 = vadd.f32 %v2103, %v2160
    %v2217 = vadd.f32 %v2104, %v2161
    %v2218 = vadd.f32 %v2105, %v2162
    %v2219 = vadd.f32 %v2106, %v2163
    %v2220 = vadd.f32 %v2107, %v2164
    %v2221 = vadd.f32 %v2108, %v2165
    %v2222 = vadd.f32 %v2109, %v2166
    %v2223 = vadd.f32 %v2110, %v2167
    %v2224 = vadd.f32 %v2111, %v2168
    %v2225 = vadd.f32 %v2112, %v2169
    %v2226 = vadd.f32 %v2113, %v2170
    %v2227 = vadd.f32 %v2114, %v2171
    %v2228 = vadd.f32 %v2115, %v2172
    %v2229 = vadd.f32 %v2116, %v2173
    %v2230 = vadd.f32 %v2117, %v2174
    %v2231 = vadd.f32 %v2118, %v2175
    %v2232 = vadd.f32 %v2119, %v2176
    %v2233 = vadd.f32 %v2120, %v2177
    %v2234 = vadd.f32 %v2121, %v2178
    %v2235 = vadd.f32 %v2122, %v2179
    %v2236 = vadd.f32 %v2123, %v2180
    %v2237 = vadd.f32 %v2124, %v2181
    %v2238 = vadd.f32 %v2125, %v2182
    %v2239 = vadd.f32 %v2126, %v2183
    %v2240 = vadd.f32 %v2127, %v2184
    %v2241 = vmul.f32 %v2185, 0.33333334
    %v2242 = vmul.f32 %v2186, 0.33333334
    %v2243 = vmul.f32 %v2187, 0.33333334
    %v2244 = vmul.f32 %v2188, 0.33333334
    %v2245 = vmul.f32 %v2189, 0.33333334
    %v2246 = vmul.f32 %v2190, 0.33333334
    %v2247 = vmul.f32 %v2191, 0.33333334
    %v2248 = vmul.f32 %v2192, 0.33333334
    %v2249 = vmul.f32 %v2193, 0.33333334
    %v2250 = vmul.f32 %v2194, 0.33333334
    %v2251 = vmul.f32 %v2195, 0.33333334
    %v2252 = vmul.f32 %v2196, 0.33333334
    %v2253 = vmul.f32 %v2197, 0.33333334
    %v2254 = vmul.f32 %v2198, 0.33333334
    %v2255 = vmul.f32 %v2199, 0.33333334
    %v2256 = vmul.f32 %v2200, 0.33333334
    %v2257 = vmul.f32 %v2201, 0.33333334
    %v2258 = vmul.f32 %v2202, 0.33333334
    %v2259 = vmul.f32 %v2203, 0.33333334
    %v2260 = vmul.f32 %v2204, 0.33333334
    %v2261 = vmul.f32 %v2205, 0.33333334
    %v2262 = vmul.f32 %v2206, 0.33333334
    %v2263 = vmul.f32 %v2207, 0.33333334
    %v2264 = vmul.f32 %v2208, 0.33333334
    %v2265 = vmul.f32 %v2209, 0.33333334
    %v2266 = vmul.f32 %v2210, 0.33333334
    %v2267 = vmul.f32 %v2211, 0.33333334
    %v2268 = vmul.f32 %v2212, 0.33333334
    %v2269 = vmul.f32 %v2213, 0.33333334
    %v2270 = vmul.f32 %v2214, 0.33333334
    %v2271 = vmul.f32 %v2215, 0.33333334
    %v2272 = vmul.f32 %v2216, 0.33333334
    %v2273 = vmul.f32 %v2217, 0.33333334
    %v2274 = vmul.f32 %v2218, 0.33333334
    %v2275 = vmul.f32 %v2219, 0.33333334
    %v2276 = vmul.f32 %v2220, 0.33333334
    %v2277 = vmul.f32 %v2221, 0.33333334
    %v2278 = vmul.f32 %v2222, 0.33333334
    %v2279 = vmul.f32 %v2223, 0.33333334
    %v2280 = vmul.f32 %v2224, 0.33333334
    %v2281 = vmul.f32 %v2225, 0.33333334
    %v2282 = vmul.f32 %v2226, 0.33333334
    %v2283 = vmul.f32 %v2227, 0.33333334
    %v2284 = vmul.f32 %v2228, 0.33333334
    %v2285 = vmul.f32 %v2229, 0.33333334
    %v2286 = vmul.f32 %v2230, 0.33333334
    %v2287 = vmul.f32 %v2231, 0.33333334
    %v2288 = vmul.f32 %v2232, 0.33333334
    %v2289 = vmul.f32 %v2233, 0.33333334
    %v2290 = vmul.f32 %v2234, 0.33333334
    %v2291 = vmul.f32 %v2235, 0.33333334
    %v2292 = vmul.f32 %v2236, 0.33333334
    %v2293 = vmul.f32 %v2237, 0.33333334
    %v2294 = vmul.f32 %v2238, 0.33333334
    %v2295 = vmul.f32 %v2239, 0.33333334
    %v2296 = vmul.f32 %v2240, 0.33333334
    %2349 = vrot.lane.b32.xlu0 %v2243, 64
    %v2350 = vpop.permute.xlu0 %2349
    %2351 = vrot.lane.b32.xlu0 %v2244, 64
    %v2352 = vpop.permute.xlu0 %2351
    %2353 = vrot.lane.b32.xlu0 %v2245, 64
    %v2354 = vpop.permute.xlu0 %2353
    %2355 = vrot.lane.b32.xlu0 %v2246, 64
    %v2356 = vpop.permute.xlu0 %2355
    %2357 = vrot.lane.b32.xlu0 %v2247, 64
    %v2358 = vpop.permute.xlu0 %2357
    %2359 = vrot.lane.b32.xlu0 %v2248, 64
    %v2360 = vpop.permute.xlu0 %2359
    %2361 = vrot.lane.b32.xlu0 %v2249, 64
    %v2362 = vpop.permute.xlu0 %2361
    %2363 = vrot.lane.b32.xlu0 %v2250, 64
    %v2364 = vpop.permute.xlu0 %2363
    %2365 = vrot.lane.b32.xlu0 %v2251, 64
    %v2366 = vpop.permute.xlu0 %2365
    %2367 = vrot.lane.b32.xlu0 %v2252, 64
    %v2368 = vpop.permute.xlu0 %2367
    %2369 = vrot.lane.b32.xlu0 %v2253, 64
    %v2370 = vpop.permute.xlu0 %2369
    %2371 = vrot.lane.b32.xlu0 %v2254, 64
    %v2372 = vpop.permute.xlu0 %2371
    %2373 = vrot.lane.b32.xlu0 %v2255, 64
    %v2374 = vpop.permute.xlu0 %2373
    %2375 = vrot.lane.b32.xlu0 %v2256, 64
    %v2376 = vpop.permute.xlu0 %2375
    %2377 = vrot.lane.b32.xlu0 %v2257, 64
    %v2378 = vpop.permute.xlu0 %2377
    %2379 = vrot.lane.b32.xlu0 %v2258, 64
    %v2380 = vpop.permute.xlu0 %2379
    %2381 = vrot.lane.b32.xlu0 %v2259, 64
    %v2382 = vpop.permute.xlu0 %2381
    %2383 = vrot.lane.b32.xlu0 %v2260, 64
    %v2384 = vpop.permute.xlu0 %2383
    %2385 = vrot.lane.b32.xlu0 %v2261, 64
    %v2386 = vpop.permute.xlu0 %2385
    %2387 = vrot.lane.b32.xlu0 %v2262, 64
    %v2388 = vpop.permute.xlu0 %2387
    %2389 = vrot.lane.b32.xlu0 %v2263, 64
    %v2390 = vpop.permute.xlu0 %2389
    %2391 = vrot.lane.b32.xlu0 %v2264, 64
    %v2392 = vpop.permute.xlu0 %2391
    %2393 = vrot.lane.b32.xlu0 %v2265, 64
    %v2394 = vpop.permute.xlu0 %2393
    %2395 = vrot.lane.b32.xlu0 %v2266, 64
    %v2396 = vpop.permute.xlu0 %2395
    %2397 = vrot.lane.b32.xlu0 %v2267, 64
    %v2398 = vpop.permute.xlu0 %2397
    %2399 = vrot.lane.b32.xlu0 %v2268, 64
    %v2400 = vpop.permute.xlu0 %2399
    %2401 = vrot.lane.b32.xlu0 %v2269, 64
    %v2402 = vpop.permute.xlu0 %2401
    %2403 = vrot.lane.b32.xlu0 %v2270, 64
    %v2404 = vpop.permute.xlu0 %2403
    %2405 = vrot.lane.b32.xlu0 %v2271, 64
    %v2406 = vpop.permute.xlu0 %2405
    %2407 = vrot.lane.b32.xlu0 %v2272, 64
    %v2408 = vpop.permute.xlu0 %2407
    %2409 = vrot.lane.b32.xlu0 %v2273, 64
    %v2410 = vpop.permute.xlu0 %2409
    %2411 = vrot.lane.b32.xlu0 %v2274, 64
    %v2412 = vpop.permute.xlu0 %2411
    %2413 = vrot.lane.b32.xlu0 %v2275, 64
    %v2414 = vpop.permute.xlu0 %2413
    %2415 = vrot.lane.b32.xlu0 %v2276, 64
    %v2416 = vpop.permute.xlu0 %2415
    %2417 = vrot.lane.b32.xlu0 %v2277, 64
    %v2418 = vpop.permute.xlu0 %2417
    %2419 = vrot.lane.b32.xlu0 %v2278, 64
    %v2420 = vpop.permute.xlu0 %2419
    %2421 = vrot.lane.b32.xlu0 %v2279, 64
    %v2422 = vpop.permute.xlu0 %2421
    %2423 = vrot.lane.b32.xlu0 %v2280, 64
    %v2424 = vpop.permute.xlu0 %2423
    %2425 = vrot.lane.b32.xlu0 %v2281, 64
    %v2426 = vpop.permute.xlu0 %2425
    %2427 = vrot.lane.b32.xlu0 %v2282, 64
    %v2428 = vpop.permute.xlu0 %2427
    %2429 = vrot.lane.b32.xlu0 %v2283, 64
    %v2430 = vpop.permute.xlu0 %2429
    %2431 = vrot.lane.b32.xlu0 %v2284, 64
    %v2432 = vpop.permute.xlu0 %2431
    %2433 = vrot.lane.b32.xlu0 %v2285, 64
    %v2434 = vpop.permute.xlu0 %2433
    %2435 = vrot.lane.b32.xlu0 %v2286, 64
    %v2436 = vpop.permute.xlu0 %2435
    %2437 = vrot.lane.b32.xlu0 %v2287, 64
    %v2438 = vpop.permute.xlu0 %2437
    %2439 = vrot.lane.b32.xlu0 %v2288, 64
    %v2440 = vpop.permute.xlu0 %2439
    %2441 = vrot.lane.b32.xlu0 %v2289, 64
    %v2442 = vpop.permute.xlu0 %2441
    %2443 = vrot.lane.b32.xlu0 %v2290, 64
    %v2444 = vpop.permute.xlu0 %2443
    %2445 = vrot.lane.b32.xlu0 %v2291, 64
    %v2446 = vpop.permute.xlu0 %2445
    %2447 = vrot.lane.b32.xlu0 %v2292, 64
    %v2448 = vpop.permute.xlu0 %2447
    %2449 = vrot.lane.b32.xlu0 %v2293, 64
    %v2450 = vpop.permute.xlu0 %2449
    %2451 = vrot.lane.b32.xlu0 %v2294, 64
    %v2452 = vpop.permute.xlu0 %2451
    %v2505 = vsel %vm1842, %v2241, %v2350
    %v2506 = vsel %vm1842, %v2242, %v2352
    %v2507 = vsel %vm1842, %v2243, %v2354
    %v2508 = vsel %vm1842, %v2244, %v2356
    %v2509 = vsel %vm1842, %v2245, %v2358
    %v2510 = vsel %vm1842, %v2246, %v2360
    %v2511 = vsel %vm1842, %v2247, %v2362
    %v2512 = vsel %vm1842, %v2248, %v2364
    %v2513 = vsel %vm1842, %v2249, %v2366
    %v2514 = vsel %vm1842, %v2250, %v2368
    %v2515 = vsel %vm1842, %v2251, %v2370
    %v2516 = vsel %vm1842, %v2252, %v2372
    %v2517 = vsel %vm1842, %v2253, %v2374
    %v2518 = vsel %vm1842, %v2254, %v2376
    %v2519 = vsel %vm1842, %v2255, %v2378
    %v2520 = vsel %vm1842, %v2256, %v2380
    %v2521 = vsel %vm1842, %v2257, %v2382
    %v2522 = vsel %vm1842, %v2258, %v2384
    %v2523 = vsel %vm1842, %v2259, %v2386
    %v2524 = vsel %vm1842, %v2260, %v2388
    %v2525 = vsel %vm1842, %v2261, %v2390
    %v2526 = vsel %vm1842, %v2262, %v2392
    %v2527 = vsel %vm1842, %v2263, %v2394
    %v2528 = vsel %vm1842, %v2264, %v2396
    %v2529 = vsel %vm1842, %v2265, %v2398
    %v2530 = vsel %vm1842, %v2266, %v2400
    %v2531 = vsel %vm1842, %v2267, %v2402
    %v2532 = vsel %vm1842, %v2268, %v2404
    %v2533 = vsel %vm1842, %v2269, %v2406
    %v2534 = vsel %vm1842, %v2270, %v2408
    %v2535 = vsel %vm1842, %v2271, %v2410
    %v2536 = vsel %vm1842, %v2272, %v2412
    %v2537 = vsel %vm1842, %v2273, %v2414
    %v2538 = vsel %vm1842, %v2274, %v2416
    %v2539 = vsel %vm1842, %v2275, %v2418
    %v2540 = vsel %vm1842, %v2276, %v2420
    %v2541 = vsel %vm1842, %v2277, %v2422
    %v2542 = vsel %vm1842, %v2278, %v2424
    %v2543 = vsel %vm1842, %v2279, %v2426
    %v2544 = vsel %vm1842, %v2280, %v2428
    %v2545 = vsel %vm1842, %v2281, %v2430
    %v2546 = vsel %vm1842, %v2282, %v2432
    %v2547 = vsel %vm1842, %v2283, %v2434
    %v2548 = vsel %vm1842, %v2284, %v2436
    %v2549 = vsel %vm1842, %v2285, %v2438
    %v2550 = vsel %vm1842, %v2286, %v2440
    %v2551 = vsel %vm1842, %v2287, %v2442
    %v2552 = vsel %vm1842, %v2288, %v2444
    %v2553 = vsel %vm1842, %v2289, %v2446
    %v2554 = vsel %vm1842, %v2290, %v2448
    %v2555 = vsel %vm1842, %v2291, %v2450
    %v2556 = vsel %vm1842, %v2292, %v2452
    %v2557 = vld [vmem:[%s2] sm:$0xff]
    %v2558 = vld [vmem:[%s2 + $0x8] sm:$0xff]
    %v2559 = vld [vmem:[%s2 + $0x10] sm:$0xff]
    %v2560 = vld [vmem:[%s2 + $0x18] sm:$0xff]
    %v2561 = vld [vmem:[%s2 + $0x20] sm:$0xff]
    %v2562 = vld [vmem:[%s2 + $0x28] sm:$0xff]
    %v2563 = vld [vmem:[%s2 + $0x30] sm:$0xff]
    %v2564 = vld [vmem:[%s2 + $0x38] sm:$0xff]
    %v2565 = vld [vmem:[%s2 + $0x40] sm:$0xff]
    %v2566 = vld [vmem:[%s2 + $0x48] sm:$0xff]
    %v2567 = vld [vmem:[%s2 + $0x50] sm:$0xff]
    %v2568 = vld [vmem:[%s2 + $0x58] sm:$0xff]
    %v2569 = vld [vmem:[%s2 + $0x60] sm:$0xff]
    %v2570 = vld [vmem:[%s2 + $0x68] sm:$0xff]
    %v2571 = vld [vmem:[%s2 + $0x70] sm:$0xff]
    %v2572 = vld [vmem:[%s2 + $0x78] sm:$0xff]
    %v2573 = vld [vmem:[%s2 + $0x80] sm:$0xff]
    %v2574 = vld [vmem:[%s2 + $0x88] sm:$0xff]
    %v2575 = vld [vmem:[%s2 + $0x90] sm:$0xff]
    %v2576 = vld [vmem:[%s2 + $0x98] sm:$0xff]
    %v2577 = vld [vmem:[%s2 + $0xa0] sm:$0xff]
    %v2578 = vld [vmem:[%s2 + $0xa8] sm:$0xff]
    %v2579 = vld [vmem:[%s2 + $0xb0] sm:$0xff]
    %v2580 = vld [vmem:[%s2 + $0xb8] sm:$0xff]
    %v2581 = vlaneseq
    %v2582 = vshrl.u32 %v2581, 7
    %v2583 = vsub.s32 0, %v2582
    %v2584 = vrot.slane %v22, %v2583
    %v2585 = vsel %vm1842, %v2245, 0
    %v2587 = vsel %vm1842, %v2246, 0
    %v2589 = vsel %vm1842, %v2247, 0
    %v2591 = vsel %vm1842, %v2248, 0
    %v2593 = vsel %vm1842, %v2249, 0
    %v2595 = vsel %vm1842, %v2250, 0
    %v2597 = vsel %vm1842, %v2251, 0
    %v2599 = vsel %vm1842, %v2252, 0
    %v2601 = vsel %vm1842, %v2253, 0
    %v2603 = vsel %vm1842, %v2254, 0
    %v2605 = vsel %vm1842, %v2255, 0
    %v2607 = vsel %vm1842, %v2256, 0
    %v2609 = vsel %vm1842, %v2257, 0
    %v2611 = vsel %vm1842, %v2258, 0
    %v2613 = vsel %vm1842, %v2259, 0
    %v2615 = vsel %vm1842, %v2260, 0
    %v2617 = vsel %vm1842, %v2261, 0
    %v2619 = vsel %vm1842, %v2262, 0
    %v2621 = vsel %vm1842, %v2263, 0
    %v2623 = vsel %vm1842, %v2264, 0
    %v2625 = vsel %vm1842, %v2265, 0
    %v2627 = vsel %vm1842, %v2266, 0
    %v2629 = vsel %vm1842, %v2267, 0
    %v2631 = vsel %vm1842, %v2268, 0
    %v2633 = vsel %vm1842, %v2269, 0
    %v2635 = vsel %vm1842, %v2270, 0
    %v2637 = vsel %vm1842, %v2271, 0
    %v2639 = vsel %vm1842, %v2272, 0
    %v2641 = vsel %vm1842, %v2273, 0
    %v2643 = vsel %vm1842, %v2274, 0
    %v2645 = vsel %vm1842, %v2275, 0
    %v2647 = vsel %vm1842, %v2276, 0
    %v2649 = vsel %vm1842, %v2277, 0
    %v2651 = vsel %vm1842, %v2278, 0
    %v2653 = vsel %vm1842, %v2279, 0
    %v2655 = vsel %vm1842, %v2280, 0
    %v2657 = vsel %vm1842, %v2281, 0
    %v2659 = vsel %vm1842, %v2282, 0
    %v2661 = vsel %vm1842, %v2283, 0
    %v2663 = vsel %vm1842, %v2284, 0
    %v2665 = vsel %vm1842, %v2285, 0
    %v2667 = vsel %vm1842, %v2286, 0
    %v2669 = vsel %vm1842, %v2287, 0
    %v2671 = vsel %vm1842, %v2288, 0
    %v2673 = vsel %vm1842, %v2289, 0
    %v2675 = vsel %vm1842, %v2290, 0
    %v2677 = vsel %vm1842, %v2291, 0
    %v2679 = vsel %vm1842, %v2292, 0
    %v2681 = vsel %vm1842, %v2293, 0
    %v2683 = vsel %vm1842, %v2294, 0
    %v2686 = vsel %vm1842, %v2295, 0
    %v2689 = vsel %vm1842, %v2296, 0
    %2691 = vmatprep.subr.mxu0 0.0
    %2692 = vmatpush1.msra.mxu0 %v2572
    %2693 = vmatprep.subr.mxu0 0.0
    %2694 = vmatpush1.msra.mxu0 %v2571
    %2695 = vmatprep.subr.mxu0 0.0
    %2696 = vmatpush1.msra.mxu0 %v2570
    %2697 = vmatprep.subr.mxu0 0.0
    %2698 = vmatpush1.msra.mxu0 %v2569
    %2699 = vmatprep.subr.mxu0 0.0
    %2700 = vmatpush1.msra.mxu0 %v2568
    %2701 = vmatprep.subr.mxu0 0.0
    %2702 = vmatpush1.msra.mxu0 %v2567
    %2703 = vmatprep.subr.mxu0 0.0
    %2704 = vmatpush1.msra.mxu0 %v2566
    %2705 = vmatprep.subr.mxu0 0.0
    %2706 = vmatpush1.msra.mxu0 %v2565
    %2707 = vmatprep.subr.mxu0 0.0
    %2708 = vmatpush1.msra.mxu0 %v2564
    %2709 = vmatprep.subr.mxu0 0.0
    %2710 = vmatpush1.msra.mxu0 %v2563
    %2711 = vmatprep.subr.mxu0 0.0
    %2712 = vmatpush1.msra.mxu0 %v2562
    %2713 = vmatprep.subr.mxu0 0.0
    %2714 = vmatpush1.msra.mxu0 %v2561
    %2715 = vmatprep.subr.mxu0 0.0
    %2716 = vmatpush1.msra.mxu0 %v2560
    %2717 = vmatprep.subr.mxu0 0.0
    %2718 = vmatpush1.msra.mxu0 %v2559
    %2719 = vmatprep.subr.mxu0 0.0
    %2720 = vmatpush1.msra.mxu0 %v2558
    %2721 = vmatprep.subr.mxu0 0.0
    %2722 = vmatpush1.msra.mxu0 %v2557
    %2723 = vmatprep.subr.mxu0 0.0
    %2724 = vmatpush2.msra.mxu0 0.0
    %2725 = vmatprep.subr.mxu0 0.0
    %2726 = vmatpush2.msra.mxu0 0.0
    %2727 = vmatprep.subr.mxu0 0.0
    %2728 = vmatpush2.msra.mxu0 0.0
    %2729 = vmatprep.subr.mxu0 0.0
    %2730 = vmatpush2.msra.mxu0 0.0
    %2731 = vmatprep.subr.mxu0 0.0
    %2732 = vmatpush2.msra.mxu0 0.0
    %2733 = vmatprep.subr.mxu0 0.0
    %2734 = vmatpush2.msra.mxu0 0.0
    %2735 = vmatprep.subr.mxu0 0.0
    %2736 = vmatpush2.msra.mxu0 0.0
    %2737 = vmatprep.subr.mxu0 0.0
    %2738 = vmatpush2.msra.mxu0 0.0
    %2739 = vmatprep.subr.mxu0 0.0
    %2740 = vmatpush2.msra.mxu0 %v2580
    %2741 = vmatprep.subr.mxu0 0.0
    %2742 = vmatpush2.msra.mxu0 %v2579
    %2743 = vmatprep.subr.mxu0 0.0
    %2744 = vmatpush2.msra.mxu0 %v2578
    %2745 = vmatprep.subr.mxu0 0.0
    %2746 = vmatpush2.msra.mxu0 %v2577
    %2747 = vmatprep.subr.mxu0 0.0
    %2748 = vmatpush2.msra.mxu0 %v2576
    %2749 = vmatprep.subr.mxu0 0.0
    %2750 = vmatpush2.msra.mxu0 %v2575
    %2751 = vmatprep.subr.mxu0 0.0
    %2752 = vmatpush2.msra.mxu0 %v2574
    %2753 = vmatprep.subr.mxu0 0.0
    %2754 = vmatpush2.msra.mxu0 %v2573
    %2755 = vmatprep.mubr.f32.mxu0 %v2585
    %2756 = vmatmul.mubr.f32.gmra.mxu0 %v2505
    %v2757 = vpop.f32.mrf.mxu0
    %v2758 = vadd.f32 %v2584, %v2757
    %v2759 = vpop.f32.mrf.mxu0
    %2760 = vmatprep.mubr.f32.mxu0 %v2587
    %2761 = vmatmul.mubr.f32.gmra.mxu0 %v2506
    %v2762 = vpop.f32.mrf.mxu0
    %v2763 = vadd.f32 %v2584, %v2762
    %v2764 = vpop.f32.mrf.mxu0
    %2765 = vmatprep.mubr.f32.mxu0 %v2589
    %2766 = vmatmul.mubr.f32.gmra.mxu0 %v2507
    %v2767 = vpop.f32.mrf.mxu0
    %v2768 = vadd.f32 %v2584, %v2767
    %v2769 = vpop.f32.mrf.mxu0
    %2770 = vmatprep.mubr.f32.mxu0 %v2591
    %2771 = vmatmul.mubr.f32.gmra.mxu0 %v2508
    %v2772 = vpop.f32.mrf.mxu0
    %v2773 = vadd.f32 %v2584, %v2772
    %v2774 = vpop.f32.mrf.mxu0
    %2775 = vmatprep.mubr.f32.mxu0 %v2593
    %2776 = vmatmul.mubr.f32.gmra.mxu0 %v2509
    %v2777 = vpop.f32.mrf.mxu0
    %v2778 = vadd.f32 %v2584, %v2777
    %v2779 = vpop.f32.mrf.mxu0
    %2780 = vmatprep.mubr.f32.mxu0 %v2595
    %2781 = vmatmul.mubr.f32.gmra.mxu0 %v2510
    %v2782 = vpop.f32.mrf.mxu0
    %v2783 = vadd.f32 %v2584, %v2782
    %v2784 = vpop.f32.mrf.mxu0
    %2785 = vmatprep.mubr.f32.mxu0 %v2597
    %2786 = vmatmul.mubr.f32.gmra.mxu0 %v2511
    %v2787 = vpop.f32.mrf.mxu0
    %v2788 = vadd.f32 %v2584, %v2787
    %v2789 = vpop.f32.mrf.mxu0
    %2790 = vmatprep.mubr.f32.mxu0 %v2599
    %2791 = vmatmul.mubr.f32.gmra.mxu0 %v2512
    %v2792 = vpop.f32.mrf.mxu0
    %v2793 = vadd.f32 %v2584, %v2792
    %v2794 = vpop.f32.mrf.mxu0
    %2795 = vmatprep.mubr.f32.mxu0 %v2601
    %2796 = vmatmul.mubr.f32.gmra.mxu0 %v2513
    %v2797 = vpop.f32.mrf.mxu0
    %v2798 = vadd.f32 %v2584, %v2797
    %v2799 = vpop.f32.mrf.mxu0
    %2800 = vmatprep.mubr.f32.mxu0 %v2603
    %2801 = vmatmul.mubr.f32.gmra.mxu0 %v2514
    %v2802 = vpop.f32.mrf.mxu0
    %v2803 = vadd.f32 %v2584, %v2802
    %v2804 = vpop.f32.mrf.mxu0
    %2805 = vmatprep.mubr.f32.mxu0 %v2605
    %2806 = vmatmul.mubr.f32.gmra.mxu0 %v2515
    %v2807 = vpop.f32.mrf.mxu0
    %v2808 = vadd.f32 %v2584, %v2807
    %v2809 = vpop.f32.mrf.mxu0
    %2810 = vmatprep.mubr.f32.mxu0 %v2607
    %2811 = vmatmul.mubr.f32.gmra.mxu0 %v2516
    %v2812 = vpop.f32.mrf.mxu0
    %v2813 = vadd.f32 %v2584, %v2812
    %v2814 = vpop.f32.mrf.mxu0
    %2815 = vmatprep.mubr.f32.mxu0 %v2609
    %2816 = vmatmul.mubr.f32.gmra.mxu0 %v2517
    %v2817 = vpop.f32.mrf.mxu0
    %v2818 = vadd.f32 %v2584, %v2817
    %v2819 = vpop.f32.mrf.mxu0
    %2820 = vmatprep.mubr.f32.mxu0 %v2611
    %2821 = vmatmul.mubr.f32.gmra.mxu0 %v2518
    %v2822 = vpop.f32.mrf.mxu0
    %v2823 = vadd.f32 %v2584, %v2822
    %v2824 = vpop.f32.mrf.mxu0
    %2825 = vmatprep.mubr.f32.mxu0 %v2613
    %2826 = vmatmul.mubr.f32.gmra.mxu0 %v2519
    %v2827 = vpop.f32.mrf.mxu0
    %v2828 = vadd.f32 %v2584, %v2827
    %v2829 = vpop.f32.mrf.mxu0
    %2830 = vmatprep.mubr.f32.mxu0 %v2615
    %2831 = vmatmul.mubr.f32.gmra.mxu0 %v2520
    %v2832 = vpop.f32.mrf.mxu0
    %v2833 = vadd.f32 %v2584, %v2832
    %v2834 = vpop.f32.mrf.mxu0
    %2835 = vmatprep.mubr.f32.mxu0 %v2617
    %2836 = vmatmul.mubr.f32.gmra.mxu0 %v2521
    %v2837 = vpop.f32.mrf.mxu0
    %v2838 = vadd.f32 %v2584, %v2837
    %v2839 = vpop.f32.mrf.mxu0
    %2840 = vmatprep.mubr.f32.mxu0 %v2619
    %2841 = vmatmul.mubr.f32.gmra.mxu0 %v2522
    %v2842 = vpop.f32.mrf.mxu0
    %v2843 = vadd.f32 %v2584, %v2842
    %v2844 = vpop.f32.mrf.mxu0
    %2845 = vmatprep.mubr.f32.mxu0 %v2621
    %2846 = vmatmul.mubr.f32.gmra.mxu0 %v2523
    %v2847 = vpop.f32.mrf.mxu0
    %v2848 = vadd.f32 %v2584, %v2847
    %v2849 = vpop.f32.mrf.mxu0
    %2850 = vmatprep.mubr.f32.mxu0 %v2623
    %2851 = vmatmul.mubr.f32.gmra.mxu0 %v2524
    %v2852 = vpop.f32.mrf.mxu0
    %v2853 = vadd.f32 %v2584, %v2852
    %v2854 = vpop.f32.mrf.mxu0
    %2855 = vmatprep.mubr.f32.mxu0 %v2625
    %2856 = vmatmul.mubr.f32.gmra.mxu0 %v2525
    %v2857 = vpop.f32.mrf.mxu0
    %v2858 = vadd.f32 %v2584, %v2857
    %v2859 = vpop.f32.mrf.mxu0
    %2860 = vmatprep.mubr.f32.mxu0 %v2627
    %2861 = vmatmul.mubr.f32.gmra.mxu0 %v2526
    %v2862 = vpop.f32.mrf.mxu0
    %v2863 = vadd.f32 %v2584, %v2862
    %v2864 = vpop.f32.mrf.mxu0
    %2865 = vmatprep.mubr.f32.mxu0 %v2629
    %2866 = vmatmul.mubr.f32.gmra.mxu0 %v2527
    %v2867 = vpop.f32.mrf.mxu0
    %v2868 = vadd.f32 %v2584, %v2867
    %v2869 = vpop.f32.mrf.mxu0
    %2870 = vmatprep.mubr.f32.mxu0 %v2631
    %2871 = vmatmul.mubr.f32.gmra.mxu0 %v2528
    %v2872 = vpop.f32.mrf.mxu0
    %v2873 = vadd.f32 %v2584, %v2872
    %v2874 = vpop.f32.mrf.mxu0
    %2875 = vmatprep.mubr.f32.mxu0 %v2633
    %2876 = vmatmul.mubr.f32.gmra.mxu0 %v2529
    %v2877 = vpop.f32.mrf.mxu0
    %v2878 = vadd.f32 %v2584, %v2877
    %v2879 = vpop.f32.mrf.mxu0
    %2880 = vmatprep.mubr.f32.mxu0 %v2635
    %2881 = vmatmul.mubr.f32.gmra.mxu0 %v2530
    %v2882 = vpop.f32.mrf.mxu0
    %v2883 = vadd.f32 %v2584, %v2882
    %v2884 = vpop.f32.mrf.mxu0
    %2885 = vmatprep.mubr.f32.mxu0 %v2637
    %2886 = vmatmul.mubr.f32.gmra.mxu0 %v2531
    %v2887 = vpop.f32.mrf.mxu0
    %v2888 = vadd.f32 %v2584, %v2887
    %v2889 = vpop.f32.mrf.mxu0
    %2890 = vmatprep.mubr.f32.mxu0 %v2639
    %2891 = vmatmul.mubr.f32.gmra.mxu0 %v2532
    %v2892 = vpop.f32.mrf.mxu0
    %v2893 = vadd.f32 %v2584, %v2892
    %v2894 = vpop.f32.mrf.mxu0
    %2895 = vmatprep.mubr.f32.mxu0 %v2641
    %2896 = vmatmul.mubr.f32.gmra.mxu0 %v2533
    %v2897 = vpop.f32.mrf.mxu0
    %v2898 = vadd.f32 %v2584, %v2897
    %v2899 = vpop.f32.mrf.mxu0
    %2900 = vmatprep.mubr.f32.mxu0 %v2643
    %2901 = vmatmul.mubr.f32.gmra.mxu0 %v2534
    %v2902 = vpop.f32.mrf.mxu0
    %v2903 = vadd.f32 %v2584, %v2902
    %v2904 = vpop.f32.mrf.mxu0
    %2905 = vmatprep.mubr.f32.mxu0 %v2645
    %2906 = vmatmul.mubr.f32.gmra.mxu0 %v2535
    %v2907 = vpop.f32.mrf.mxu0
    %v2908 = vadd.f32 %v2584, %v2907
    %v2909 = vpop.f32.mrf.mxu0
    %2910 = vmatprep.mubr.f32.mxu0 %v2647
    %2911 = vmatmul.mubr.f32.gmra.mxu0 %v2536
    %v2912 = vpop.f32.mrf.mxu0
    %v2913 = vadd.f32 %v2584, %v2912
    %v2914 = vpop.f32.mrf.mxu0
    %2915 = vmatprep.mubr.f32.mxu0 %v2649
    %2916 = vmatmul.mubr.f32.gmra.mxu0 %v2537
    %v2917 = vpop.f32.mrf.mxu0
    %v2918 = vadd.f32 %v2584, %v2917
    %v2919 = vpop.f32.mrf.mxu0
    %2920 = vmatprep.mubr.f32.mxu0 %v2651
    %2921 = vmatmul.mubr.f32.gmra.mxu0 %v2538
    %v2922 = vpop.f32.mrf.mxu0
    %v2923 = vadd.f32 %v2584, %v2922
    %v2924 = vpop.f32.mrf.mxu0
    %2925 = vmatprep.mubr.f32.mxu0 %v2653
    %2926 = vmatmul.mubr.f32.gmra.mxu0 %v2539
    %v2927 = vpop.f32.mrf.mxu0
    %v2928 = vadd.f32 %v2584, %v2927
    %v2929 = vpop.f32.mrf.mxu0
    %2930 = vmatprep.mubr.f32.mxu0 %v2655
    %2931 = vmatmul.mubr.f32.gmra.mxu0 %v2540
    %v2932 = vpop.f32.mrf.mxu0
    %v2933 = vadd.f32 %v2584, %v2932
    %v2934 = vpop.f32.mrf.mxu0
    %2935 = vmatprep.mubr.f32.mxu0 %v2657
    %2936 = vmatmul.mubr.f32.gmra.mxu0 %v2541
    %v2937 = vpop.f32.mrf.mxu0
    %v2938 = vadd.f32 %v2584, %v2937
    %v2939 = vpop.f32.mrf.mxu0
    %2940 = vmatprep.mubr.f32.mxu0 %v2659
    %2941 = vmatmul.mubr.f32.gmra.mxu0 %v2542
    %v2942 = vpop.f32.mrf.mxu0
    %v2943 = vadd.f32 %v2584, %v2942
    %v2944 = vpop.f32.mrf.mxu0
    %2945 = vmatprep.mubr.f32.mxu0 %v2661
    %2946 = vmatmul.mubr.f32.gmra.mxu0 %v2543
    %v2947 = vpop.f32.mrf.mxu0
    %v2948 = vadd.f32 %v2584, %v2947
    %v2949 = vpop.f32.mrf.mxu0
    %2950 = vmatprep.mubr.f32.mxu0 %v2663
    %2951 = vmatmul.mubr.f32.gmra.mxu0 %v2544
    %v2952 = vpop.f32.mrf.mxu0
    %v2953 = vadd.f32 %v2584, %v2952
    %v2954 = vpop.f32.mrf.mxu0
    %2955 = vmatprep.mubr.f32.mxu0 %v2665
    %2956 = vmatmul.mubr.f32.gmra.mxu0 %v2545
    %v2957 = vpop.f32.mrf.mxu0
    %v2958 = vadd.f32 %v2584, %v2957
    %v2959 = vpop.f32.mrf.mxu0
    %2960 = vmatprep.mubr.f32.mxu0 %v2667
    %2961 = vmatmul.mubr.f32.gmra.mxu0 %v2546
    %v2962 = vpop.f32.mrf.mxu0
    %v2963 = vadd.f32 %v2584, %v2962
    %v2964 = vpop.f32.mrf.mxu0
    %2965 = vmatprep.mubr.f32.mxu0 %v2669
    %2966 = vmatmul.mubr.f32.gmra.mxu0 %v2547
    %v2967 = vpop.f32.mrf.mxu0
    %v2968 = vadd.f32 %v2584, %v2967
    %v2969 = vpop.f32.mrf.mxu0
    %2970 = vmatprep.mubr.f32.mxu0 %v2671
    %2971 = vmatmul.mubr.f32.gmra.mxu0 %v2548
    %v2972 = vpop.f32.mrf.mxu0
    %v2973 = vadd.f32 %v2584, %v2972
    %v2974 = vpop.f32.mrf.mxu0
    %2975 = vmatprep.mubr.f32.mxu0 %v2673
    %2976 = vmatmul.mubr.f32.gmra.mxu0 %v2549
    %v2977 = vpop.f32.mrf.mxu0
    %v2978 = vadd.f32 %v2584, %v2977
    %v2979 = vpop.f32.mrf.mxu0
    %2980 = vmatprep.mubr.f32.mxu0 %v2675
    %2981 = vmatmul.mubr.f32.gmra.mxu0 %v2550
    %v2982 = vpop.f32.mrf.mxu0
    %v2983 = vadd.f32 %v2584, %v2982
    %v2984 = vpop.f32.mrf.mxu0
    %2985 = vmatprep.mubr.f32.mxu0 %v2677
    %2986 = vmatmul.mubr.f32.gmra.mxu0 %v2551
    %v2987 = vpop.f32.mrf.mxu0
    %v2988 = vadd.f32 %v2584, %v2987
    %v2989 = vpop.f32.mrf.mxu0
    %2990 = vmatprep.mubr.f32.mxu0 %v2679
    %2991 = vmatmul.mubr.f32.gmra.mxu0 %v2552
    %v2992 = vpop.f32.mrf.mxu0
    %v2993 = vadd.f32 %v2584, %v2992
    %v2994 = vpop.f32.mrf.mxu0
    %2995 = vmatprep.mubr.f32.mxu0 %v2681
    %2996 = vmatmul.mubr.f32.gmra.mxu0 %v2553
    %v2997 = vpop.f32.mrf.mxu0
    %v2998 = vadd.f32 %v2584, %v2997
    %v2999 = vpop.f32.mrf.mxu0
    %3000 = vmatprep.mubr.f32.mxu0 %v2683
    %3001 = vmatmul.mubr.f32.gmra.mxu0 %v2554
    %v3002 = vpop.f32.mrf.mxu0
    %v3003 = vadd.f32 %v2584, %v3002
    %v3004 = vpop.f32.mrf.mxu0
    %3005 = vmatprep.mubr.f32.mxu0 %v2686
    %3006 = vmatmul.mubr.f32.gmra.mxu0 %v2555
    %v3007 = vpop.f32.mrf.mxu0
    %v3008 = vadd.f32 %v2584, %v3007
    %v3009 = vpop.f32.mrf.mxu0
    %3010 = vmatprep.mubr.f32.mxu0 %v2689
    %3011 = vmatmul.mubr.f32.gmra.mxu0 %v2556
    %v3012 = vpop.f32.mrf.mxu0
    %v3013 = vadd.f32 %v2584, %v3012
    %v3014 = vpop.f32.mrf.mxu0
    %3015 = vdwg.mxu0
    %vm3016 = vcmp.gt.f32.partialorder %v2758, 0.0
    %vm3017 = vcmp.gt.f32.partialorder %v2763, 0.0
    %vm3018 = vcmp.gt.f32.partialorder %v2768, 0.0
    %vm3019 = vcmp.gt.f32.partialorder %v2773, 0.0
    %vm3020 = vcmp.gt.f32.partialorder %v2778, 0.0
    %vm3021 = vcmp.gt.f32.partialorder %v2783, 0.0
    %vm3022 = vcmp.gt.f32.partialorder %v2788, 0.0
    %vm3023 = vcmp.gt.f32.partialorder %v2793, 0.0
    %vm3024 = vcmp.gt.f32.partialorder %v2798, 0.0
    %vm3025 = vcmp.gt.f32.partialorder %v2803, 0.0
    %vm3026 = vcmp.gt.f32.partialorder %v2808, 0.0
    %vm3027 = vcmp.gt.f32.partialorder %v2813, 0.0
    %vm3028 = vcmp.gt.f32.partialorder %v2818, 0.0
    %vm3029 = vcmp.gt.f32.partialorder %v2823, 0.0
    %vm3030 = vcmp.gt.f32.partialorder %v2828, 0.0
    %vm3031 = vcmp.gt.f32.partialorder %v2833, 0.0
    %vm3032 = vcmp.gt.f32.partialorder %v2838, 0.0
    %vm3033 = vcmp.gt.f32.partialorder %v2843, 0.0
    %vm3034 = vcmp.gt.f32.partialorder %v2848, 0.0
    %vm3035 = vcmp.gt.f32.partialorder %v2853, 0.0
    %vm3036 = vcmp.gt.f32.partialorder %v2858, 0.0
    %vm3037 = vcmp.gt.f32.partialorder %v2863, 0.0
    %vm3038 = vcmp.gt.f32.partialorder %v2868, 0.0
    %vm3039 = vcmp.gt.f32.partialorder %v2873, 0.0
    %vm3040 = vcmp.gt.f32.partialorder %v2878, 0.0
    %vm3041 = vcmp.gt.f32.partialorder %v2883, 0.0
    %vm3042 = vcmp.gt.f32.partialorder %v2888, 0.0
    %vm3043 = vcmp.gt.f32.partialorder %v2893, 0.0
    %vm3044 = vcmp.gt.f32.partialorder %v2898, 0.0
    %vm3045 = vcmp.gt.f32.partialorder %v2903, 0.0
    %vm3046 = vcmp.gt.f32.partialorder %v2908, 0.0
    %vm3047 = vcmp.gt.f32.partialorder %v2913, 0.0
    %vm3048 = vcmp.gt.f32.partialorder %v2918, 0.0
    %vm3049 = vcmp.gt.f32.partialorder %v2923, 0.0
    %vm3050 = vcmp.gt.f32.partialorder %v2928, 0.0
    %vm3051 = vcmp.gt.f32.partialorder %v2933, 0.0
    %vm3052 = vcmp.gt.f32.partialorder %v2938, 0.0
    %vm3053 = vcmp.gt.f32.partialorder %v2943, 0.0
    %vm3054 = vcmp.gt.f32.partialorder %v2948, 0.0
    %vm3055 = vcmp.gt.f32.partialorder %v2953, 0.0
    %vm3056 = vcmp.gt.f32.partialorder %v2958, 0.0
    %vm3057 = vcmp.gt.f32.partialorder %v2963, 0.0
    %vm3058 = vcmp.gt.f32.partialorder %v2968, 0.0
    %vm3059 = vcmp.gt.f32.partialorder %v2973, 0.0
    %vm3060 = vcmp.gt.f32.partialorder %v2978, 0.0
    %vm3061 = vcmp.gt.f32.partialorder %v2983, 0.0
    %vm3062 = vcmp.gt.f32.partialorder %v2988, 0.0
    %vm3063 = vcmp.gt.f32.partialorder %v2993, 0.0
    %vm3064 = vcmp.gt.f32.partialorder %v2998, 0.0
    %vm3065 = vcmp.gt.f32.partialorder %v3003, 0.0
    %vm3066 = vcmp.gt.f32.partialorder %v3008, 0.0
    %vm3067 = vcmp.gt.f32.partialorder %v3013, 0.0
    %v3068 = vmin.f32 %v2758, 0.0
    %v3069 = vmin.f32 %v2763, 0.0
    %v3070 = vmin.f32 %v2768, 0.0
    %v3071 = vmin.f32 %v2773, 0.0
    %v3072 = vmin.f32 %v2778, 0.0
    %v3073 = vmin.f32 %v2783, 0.0
    %v3074 = vmin.f32 %v2788, 0.0
    %v3075 = vmin.f32 %v2793, 0.0
    %v3076 = vmin.f32 %v2798, 0.0
    %v3077 = vmin.f32 %v2803, 0.0
    %v3078 = vmin.f32 %v2808, 0.0
    %v3079 = vmin.f32 %v2813, 0.0
    %v3080 = vmin.f32 %v2818, 0.0
    %v3081 = vmin.f32 %v2823, 0.0
    %v3082 = vmin.f32 %v2828, 0.0
    %v3083 = vmin.f32 %v2833, 0.0
    %v3084 = vmin.f32 %v2838, 0.0
    %v3085 = vmin.f32 %v2843, 0.0
    %v3086 = vmin.f32 %v2848, 0.0
    %v3087 = vmin.f32 %v2853, 0.0
    %v3088 = vmin.f32 %v2858, 0.0
    %v3089 = vmin.f32 %v2863, 0.0
    %v3090 = vmin.f32 %v2868, 0.0
    %v3091 = vmin.f32 %v2873, 0.0
    %v3092 = vmin.f32 %v2878, 0.0
    %v3093 = vmin.f32 %v2883, 0.0
    %v3094 = vmin.f32 %v2888, 0.0
    %v3095 = vmin.f32 %v2893, 0.0
    %v3096 = vmin.f32 %v2898, 0.0
    %v3097 = vmin.f32 %v2903, 0.0
    %v3098 = vmin.f32 %v2908, 0.0
    %v3099 = vmin.f32 %v2913, 0.0
    %v3100 = vmin.f32 %v2918, 0.0
    %v3101 = vmin.f32 %v2923, 0.0
    %v3102 = vmin.f32 %v2928, 0.0
    %v3103 = vmin.f32 %v2933, 0.0
    %v3104 = vmin.f32 %v2938, 0.0
    %v3105 = vmin.f32 %v2943, 0.0
    %v3106 = vmin.f32 %v2948, 0.0
    %v3107 = vmin.f32 %v2953, 0.0
    %v3108 = vmin.f32 %v2958, 0.0
    %v3109 = vmin.f32 %v2963, 0.0
    %v3110 = vmin.f32 %v2968, 0.0
    %v3111 = vmin.f32 %v2973, 0.0
    %v3112 = vmin.f32 %v2978, 0.0
    %v3113 = vmin.f32 %v2983, 0.0
    %v3114 = vmin.f32 %v2988, 0.0
    %v3115 = vmin.f32 %v2993, 0.0
    %v3116 = vmin.f32 %v2998, 0.0
    %v3117 = vmin.f32 %v3003, 0.0
    %v3118 = vmin.f32 %v3008, 0.0
    %v3119 = vmin.f32 %v3013, 0.0
    %v3120 = vmul.f32 %v3068, 1.442695
    %v3121 = vpow.pop %v3120
    %v3122 = vmul.f32 %v3069, 1.442695
    %v3123 = vpow.pop %v3122
    %v3124 = vmul.f32 %v3070, 1.442695
    %v3125 = vpow.pop %v3124
    %v3126 = vmul.f32 %v3071, 1.442695
    %v3127 = vpow.pop %v3126
    %v3128 = vmul.f32 %v3072, 1.442695
    %v3129 = vpow.pop %v3128
    %v3130 = vmul.f32 %v3073, 1.442695
    %v3131 = vpow.pop %v3130
    %v3132 = vmul.f32 %v3074, 1.442695
    %v3133 = vpow.pop %v3132
    %v3134 = vmul.f32 %v3075, 1.442695
    %v3135 = vpow.pop %v3134
    %v3136 = vmul.f32 %v3076, 1.442695
    %v3137 = vpow.pop %v3136
    %v3138 = vmul.f32 %v3077, 1.442695
    %v3139 = vpow.pop %v3138
    %v3140 = vmul.f32 %v3078, 1.442695
    %v3141 = vpow.pop %v3140
    %v3142 = vmul.f32 %v3079, 1.442695
    %v3143 = vpow.pop %v3142
    %v3144 = vmul.f32 %v3080, 1.442695
    %v3145 = vpow.pop %v3144
    %v3146 = vmul.f32 %v3081, 1.442695
    %v3147 = vpow.pop %v3146
    %v3148 = vmul.f32 %v3082, 1.442695
    %v3149 = vpow.pop %v3148
    %v3150 = vmul.f32 %v3083, 1.442695
    %v3151 = vpow.pop %v3150
    %v3152 = vmul.f32 %v3084, 1.442695
    %v3153 = vpow.pop %v3152
    %v3154 = vmul.f32 %v3085, 1.442695
    %v3155 = vpow.pop %v3154
    %v3156 = vmul.f32 %v3086, 1.442695
    %v3157 = vpow.pop %v3156
    %v3158 = vmul.f32 %v3087, 1.442695
    %v3159 = vpow.pop %v3158
    %v3160 = vmul.f32 %v3088, 1.442695
    %v3161 = vpow.pop %v3160
    %v3162 = vmul.f32 %v3089, 1.442695
    %v3163 = vpow.pop %v3162
    %v3164 = vmul.f32 %v3090, 1.442695
    %v3165 = vpow.pop %v3164
    %v3166 = vmul.f32 %v3091, 1.442695
    %v3167 = vpow.pop %v3166
    %v3168 = vmul.f32 %v3092, 1.442695
    %v3169 = vpow.pop %v3168
    %v3170 = vmul.f32 %v3093, 1.442695
    %v3171 = vpow.pop %v3170
    %v3172 = vmul.f32 %v3094, 1.442695
    %v3173 = vpow.pop %v3172
    %v3174 = vmul.f32 %v3095, 1.442695
    %v3175 = vpow.pop %v3174
    %v3176 = vmul.f32 %v3096, 1.442695
    %v3177 = vpow.pop %v3176
    %v3178 = vmul.f32 %v3097, 1.442695
    %v3179 = vpow.pop %v3178
    %v3180 = vmul.f32 %v3098, 1.442695
    %v3181 = vpow.pop %v3180
    %v3182 = vmul.f32 %v3099, 1.442695
    %v3183 = vpow.pop %v3182
    %v3184 = vmul.f32 %v3100, 1.442695
    %v3185 = vpow.pop %v3184
    %v3186 = vmul.f32 %v3101, 1.442695
    %v3187 = vpow.pop %v3186
    %v3188 = vmul.f32 %v3102, 1.442695
    %v3189 = vpow.pop %v3188
    %v3190 = vmul.f32 %v3103, 1.442695
    %v3191 = vpow.pop %v3190
    %v3192 = vmul.f32 %v3104, 1.442695
    %v3193 = vpow.pop %v3192
    %v3194 = vmul.f32 %v3105, 1.442695
    %v3195 = vpow.pop %v3194
    %v3196 = vmul.f32 %v3106, 1.442695
    %v3197 = vpow.pop %v3196
    %v3198 = vmul.f32 %v3107, 1.442695
    %v3199 = vpow.pop %v3198
    %v3200 = vmul.f32 %v3108, 1.442695
    %v3201 = vpow.pop %v3200
    %v3202 = vmul.f32 %v3109, 1.442695
    %v3203 = vpow.pop %v3202
    %v3204 = vmul.f32 %v3110, 1.442695
    %v3205 = vpow.pop %v3204
    %v3206 = vmul.f32 %v3111, 1.442695
    %v3207 = vpow.pop %v3206
    %v3208 = vmul.f32 %v3112, 1.442695
    %v3209 = vpow.pop %v3208
    %v3210 = vmul.f32 %v3113, 1.442695
    %v3211 = vpow.pop %v3210
    %v3212 = vmul.f32 %v3114, 1.442695
    %v3213 = vpow.pop %v3212
    %v3214 = vmul.f32 %v3115, 1.442695
    %v3215 = vpow.pop %v3214
    %v3216 = vmul.f32 %v3116, 1.442695
    %v3217 = vpow.pop %v3216
    %v3218 = vmul.f32 %v3117, 1.442695
    %v3219 = vpow.pop %v3218
    %v3220 = vmul.f32 %v3118, 1.442695
    %v3221 = vpow.pop %v3220
    %v3222 = vmul.f32 %v3119, 1.442695
    %v3223 = vpow.pop %v3222
    %v3224 = vsub.f32 %v3121, 1.0
    %v3225 = vsub.f32 %v3123, 1.0
    %v3226 = vsub.f32 %v3125, 1.0
    %v3227 = vsub.f32 %v3127, 1.0
    %v3228 = vsub.f32 %v3129, 1.0
    %v3229 = vsub.f32 %v3131, 1.0
    %v3230 = vsub.f32 %v3133, 1.0
    %v3231 = vsub.f32 %v3135, 1.0
    %v3232 = vsub.f32 %v3137, 1.0
    %v3233 = vsub.f32 %v3139, 1.0
    %v3234 = vsub.f32 %v3141, 1.0
    %v3235 = vsub.f32 %v3143, 1.0
    %v3236 = vsub.f32 %v3145, 1.0
    %v3237 = vsub.f32 %v3147, 1.0
    %v3238 = vsub.f32 %v3149, 1.0
    %v3239 = vsub.f32 %v3151, 1.0
    %v3240 = vsub.f32 %v3153, 1.0
    %v3241 = vsub.f32 %v3155, 1.0
    %v3242 = vsub.f32 %v3157, 1.0
    %v3243 = vsub.f32 %v3159, 1.0
    %v3244 = vsub.f32 %v3161, 1.0
    %v3245 = vsub.f32 %v3163, 1.0
    %v3246 = vsub.f32 %v3165, 1.0
    %v3247 = vsub.f32 %v3167, 1.0
    %v3248 = vsub.f32 %v3169, 1.0
    %v3249 = vsub.f32 %v3171, 1.0
    %v3250 = vsub.f32 %v3173, 1.0
    %v3251 = vsub.f32 %v3175, 1.0
    %v3252 = vsub.f32 %v3177, 1.0
    %v3253 = vsub.f32 %v3179, 1.0
    %v3254 = vsub.f32 %v3181, 1.0
    %v3255 = vsub.f32 %v3183, 1.0
    %v3256 = vsub.f32 %v3185, 1.0
    %v3257 = vsub.f32 %v3187, 1.0
    %v3258 = vsub.f32 %v3189, 1.0
    %v3259 = vsub.f32 %v3191, 1.0
    %v3260 = vsub.f32 %v3193, 1.0
    %v3261 = vsub.f32 %v3195, 1.0
    %v3262 = vsub.f32 %v3197, 1.0
    %v3263 = vsub.f32 %v3199, 1.0
    %v3264 = vsub.f32 %v3201, 1.0
    %v3265 = vsub.f32 %v3203, 1.0
    %v3266 = vsub.f32 %v3205, 1.0
    %v3267 = vsub.f32 %v3207, 1.0
    %v3268 = vsub.f32 %v3209, 1.0
    %v3269 = vsub.f32 %v3211, 1.0
    %v3270 = vsub.f32 %v3213, 1.0
    %v3271 = vsub.f32 %v3215, 1.0
    %v3272 = vsub.f32 %v3217, 1.0
    %v3273 = vsub.f32 %v3219, 1.0
    %v3274 = vsub.f32 %v3221, 1.0
    %v3275 = vsub.f32 %v3223, 1.0
    %v3276 = vsel %vm3016, %v2758, %v3224
    %v3277 = vsel %vm3017, %v2763, %v3225
    %v3278 = vsel %vm3018, %v2768, %v3226
    %v3279 = vsel %vm3019, %v2773, %v3227
    %v3280 = vsel %vm3020, %v2778, %v3228
    %v3281 = vsel %vm3021, %v2783, %v3229
    %v3282 = vsel %vm3022, %v2788, %v3230
    %v3283 = vsel %vm3023, %v2793, %v3231
    %v3284 = vsel %vm3024, %v2798, %v3232
    %v3285 = vsel %vm3025, %v2803, %v3233
    %v3286 = vsel %vm3026, %v2808, %v3234
    %v3287 = vsel %vm3027, %v2813, %v3235
    %v3288 = vsel %vm3028, %v2818, %v3236
    %v3289 = vsel %vm3029, %v2823, %v3237
    %v3290 = vsel %vm3030, %v2828, %v3238
    %v3291 = vsel %vm3031, %v2833, %v3239
    %v3292 = vsel %vm3032, %v2838, %v3240
    %v3293 = vsel %vm3033, %v2843, %v3241
    %v3294 = vsel %vm3034, %v2848, %v3242
    %v3295 = vsel %vm3035, %v2853, %v3243
    %v3296 = vsel %vm3036, %v2858, %v3244
    %v3297 = vsel %vm3037, %v2863, %v3245
    %v3298 = vsel %vm3038, %v2868, %v3246
    %v3299 = vsel %vm3039, %v2873, %v3247
    %v3300 = vsel %vm3040, %v2878, %v3248
    %v3301 = vsel %vm3041, %v2883, %v3249
    %v3302 = vsel %vm3042, %v2888, %v3250
    %v3303 = vsel %vm3043, %v2893, %v3251
    %v3304 = vsel %vm3044, %v2898, %v3252
    %v3305 = vsel %vm3045, %v2903, %v3253
    %v3306 = vsel %vm3046, %v2908, %v3254
    %v3307 = vsel %vm3047, %v2913, %v3255
    %v3308 = vsel %vm3048, %v2918, %v3256
    %v3309 = vsel %vm3049, %v2923, %v3257
    %v3310 = vsel %vm3050, %v2928, %v3258
    %v3311 = vsel %vm3051, %v2933, %v3259
    %v3312 = vsel %vm3052, %v2938, %v3260
    %v3313 = vsel %vm3053, %v2943, %v3261
    %v3314 = vsel %vm3054, %v2948, %v3262
    %v3315 = vsel %vm3055, %v2953, %v3263
    %v3316 = vsel %vm3056, %v2958, %v3264
    %v3317 = vsel %vm3057, %v2963, %v3265
    %v3318 = vsel %vm3058, %v2968, %v3266
    %v3319 = vsel %vm3059, %v2973, %v3267
    %v3320 = vsel %vm3060, %v2978, %v3268
    %v3321 = vsel %vm3061, %v2983, %v3269
    %v3322 = vsel %vm3062, %v2988, %v3270
    %v3323 = vsel %vm3063, %v2993, %v3271
    %v3324 = vsel %vm3064, %v2998, %v3272
    %v3325 = vsel %vm3065, %v3003, %v3273
    %v3326 = vsel %vm3066, %v3008, %v3274
    %v3327 = vsel %vm3067, %v3013, %v3275
    %vm3328 = vcmask 785408
    %3329 = vst.msk [vmem:[#allocation3] sm:$0xff] %vm3328, %v3276
    %3330 = vst.msk [vmem:[#allocation3 + $0x8] sm:$0xff] %vm3328, %v3277
    %3331 = vst.msk [vmem:[#allocation3 + $0x10] sm:$0xff] %vm3328, %v3278
    %3332 = vst.msk [vmem:[#allocation3 + $0x18] sm:$0xff] %vm3328, %v3279
    %3333 = vst.msk [vmem:[#allocation3 + $0x20] sm:$0xff] %vm3328, %v3280
    %3334 = vst.msk [vmem:[#allocation3 + $0x28] sm:$0xff] %vm3328, %v3281
    %3335 = vst.msk [vmem:[#allocation3 + $0x30] sm:$0xff] %vm3328, %v3282
    %3336 = vst.msk [vmem:[#allocation3 + $0x38] sm:$0xff] %vm3328, %v3283
    %3337 = vst.msk [vmem:[#allocation3 + $0x40] sm:$0xff] %vm3328, %v3284
    %3338 = vst.msk [vmem:[#allocation3 + $0x48] sm:$0xff] %vm3328, %v3285
    %3339 = vst.msk [vmem:[#allocation3 + $0x50] sm:$0xff] %vm3328, %v3286
    %3340 = vst.msk [vmem:[#allocation3 + $0x58] sm:$0xff] %vm3328, %v3287
    %3341 = vst.msk [vmem:[#allocation3 + $0x60] sm:$0xff] %vm3328, %v3288
    %3342 = vst.msk [vmem:[#allocation3 + $0x68] sm:$0xff] %vm3328, %v3289
    %3343 = vst.msk [vmem:[#allocation3 + $0x70] sm:$0xff] %vm3328, %v3290
    %3344 = vst.msk [vmem:[#allocation3 + $0x78] sm:$0xff] %vm3328, %v3291
    %3345 = vst.msk [vmem:[#allocation3 + $0x80] sm:$0xff] %vm3328, %v3292
    %3346 = vst.msk [vmem:[#allocation3 + $0x88] sm:$0xff] %vm3328, %v3293
    %3347 = vst.msk [vmem:[#allocation3 + $0x90] sm:$0xff] %vm3328, %v3294
    %3348 = vst.msk [vmem:[#allocation3 + $0x98] sm:$0xff] %vm3328, %v3295
    %3349 = vst.msk [vmem:[#allocation3 + $0xa0] sm:$0xff] %vm3328, %v3296
    %3350 = vst.msk [vmem:[#allocation3 + $0xa8] sm:$0xff] %vm3328, %v3297
    %3351 = vst.msk [vmem:[#allocation3 + $0xb0] sm:$0xff] %vm3328, %v3298
    %3352 = vst.msk [vmem:[#allocation3 + $0xb8] sm:$0xff] %vm3328, %v3299
    %3353 = vst.msk [vmem:[#allocation3 + $0xc0] sm:$0xff] %vm3328, %v3300
    %3354 = vst.msk [vmem:[#allocation3 + $0xc8] sm:$0xff] %vm3328, %v3301
    %3355 = vst.msk [vmem:[#allocation3 + $0xd0] sm:$0xff] %vm3328, %v3302
    %3356 = vst.msk [vmem:[#allocation3 + $0xd8] sm:$0xff] %vm3328, %v3303
    %3357 = vst.msk [vmem:[#allocation3 + $0xe0] sm:$0xff] %vm3328, %v3304
    %3358 = vst.msk [vmem:[#allocation3 + $0xe8] sm:$0xff] %vm3328, %v3305
    %3359 = vst.msk [vmem:[#allocation3 + $0xf0] sm:$0xff] %vm3328, %v3306
    %3360 = vst.msk [vmem:[#allocation3 + $0xf8] sm:$0xff] %vm3328, %v3307
    %3361 = vst.msk [vmem:[#allocation3 + $0x100] sm:$0xff] %vm3328, %v3308
    %3362 = vst.msk [vmem:[#allocation3 + $0x108] sm:$0xff] %vm3328, %v3309
    %3363 = vst.msk [vmem:[#allocation3 + $0x110] sm:$0xff] %vm3328, %v3310
    %3364 = vst.msk [vmem:[#allocation3 + $0x118] sm:$0xff] %vm3328, %v3311
    %3365 = vst.msk [vmem:[#allocation3 + $0x120] sm:$0xff] %vm3328, %v3312
    %3366 = vst.msk [vmem:[#allocation3 + $0x128] sm:$0xff] %vm3328, %v3313
    %3367 = vst.msk [vmem:[#allocation3 + $0x130] sm:$0xff] %vm3328, %v3314
    %3368 = vst.msk [vmem:[#allocation3 + $0x138] sm:$0xff] %vm3328, %v3315
    %3369 = vst.msk [vmem:[#allocation3 + $0x140] sm:$0xff] %vm3328, %v3316
    %3370 = vst.msk [vmem:[#allocation3 + $0x148] sm:$0xff] %vm3328, %v3317
    %3371 = vst.msk [vmem:[#allocation3 + $0x150] sm:$0xff] %vm3328, %v3318
    %3372 = vst.msk [vmem:[#allocation3 + $0x158] sm:$0xff] %vm3328, %v3319
    %3373 = vst.msk [vmem:[#allocation3 + $0x160] sm:$0xff] %vm3328, %v3320
    %3374 = vst.msk [vmem:[#allocation3 + $0x168] sm:$0xff] %vm3328, %v3321
    %3375 = vst.msk [vmem:[#allocation3 + $0x170] sm:$0xff] %vm3328, %v3322
    %3376 = vst.msk [vmem:[#allocation3 + $0x178] sm:$0xff] %vm3328, %v3323
    %3377 = vst.msk [vmem:[#allocation3 + $0x180] sm:$0xff] %vm3328, %v3324
    %3378 = vst.msk [vmem:[#allocation3 + $0x188] sm:$0xff] %vm3328, %v3325
    %3379 = vst.msk [vmem:[#allocation3 + $0x190] sm:$0xff] %vm3328, %v3326
    %3380 = vst.msk [vmem:[#allocation3 + $0x198] sm:$0xff] %vm3328, %v3327
    %v3381 = vld [vmem:[#allocation3] sm:$0xff]
    %v3382 = vld [vmem:[#allocation3 + $0x8] sm:$0xff]
    %v3383 = vld [vmem:[#allocation3 + $0x20] sm:$0xff]
    %v3384 = vld [vmem:[#allocation3 + $0x28] sm:$0xff]
    %v3385 = vld [vmem:[#allocation3 + $0x40] sm:$0xff]
    %v3386 = vld [vmem:[#allocation3 + $0x48] sm:$0xff]
    %v3387 = vld [vmem:[#allocation3 + $0x60] sm:$0xff]
    %v3388 = vld [vmem:[#allocation3 + $0x68] sm:$0xff]
    %v3389 = vld [vmem:[#allocation3 + $0x80] sm:$0xff]
    %v3390 = vld [vmem:[#allocation3 + $0x88] sm:$0xff]
    %v3391 = vld [vmem:[#allocation3 + $0xa0] sm:$0xff]
    %v3392 = vld [vmem:[#allocation3 + $0xa8] sm:$0xff]
    %v3393 = vld [vmem:[#allocation3 + $0xc0] sm:$0xff]
    %v3394 = vld [vmem:[#allocation3 + $0xc8] sm:$0xff]
    %v3395 = vld [vmem:[#allocation3 + $0xe0] sm:$0xff]
    %v3396 = vld [vmem:[#allocation3 + $0xe8] sm:$0xff]
    %v3397 = vld [vmem:[#allocation3 + $0x100] sm:$0xff]
    %v3398 = vld [vmem:[#allocation3 + $0x108] sm:$0xff]
    %v3399 = vld [vmem:[#allocation3 + $0x120] sm:$0xff]
    %v3400 = vld [vmem:[#allocation3 + $0x128] sm:$0xff]
    %v3401 = vld [vmem:[#allocation3 + $0x140] sm:$0xff]
    %v3402 = vld [vmem:[#allocation3 + $0x148] sm:$0xff]
    %v3403 = vld [vmem:[#allocation3 + $0x160] sm:$0xff]
    %v3404 = vld [vmem:[#allocation3 + $0x168] sm:$0xff]
    %s3405 = scalar_lea.vmem [#allocation3], 16
    %v3406 = vld [vmem:[%s3405] sm:$0xff]
    %v3407 = vld [vmem:[%s3405 + $0x8] sm:$0xff]
    %v3408 = vld [vmem:[%s3405 + $0x20] sm:$0xff]
    %v3409 = vld [vmem:[%s3405 + $0x28] sm:$0xff]
    %v3410 = vld [vmem:[%s3405 + $0x40] sm:$0xff]
    %v3411 = vld [vmem:[%s3405 + $0x48] sm:$0xff]
    %v3412 = vld [vmem:[%s3405 + $0x60] sm:$0xff]
    %v3413 = vld [vmem:[%s3405 + $0x68] sm:$0xff]
    %v3414 = vld [vmem:[%s3405 + $0x80] sm:$0xff]
    %v3415 = vld [vmem:[%s3405 + $0x88] sm:$0xff]
    %v3416 = vld [vmem:[%s3405 + $0xa0] sm:$0xff]
    %v3417 = vld [vmem:[%s3405 + $0xa8] sm:$0xff]
    %v3418 = vld [vmem:[%s3405 + $0xc0] sm:$0xff]
    %v3419 = vld [vmem:[%s3405 + $0xc8] sm:$0xff]
    %v3420 = vld [vmem:[%s3405 + $0xe0] sm:$0xff]
    %v3421 = vld [vmem:[%s3405 + $0xe8] sm:$0xff]
    %v3422 = vld [vmem:[%s3405 + $0x100] sm:$0xff]
    %v3423 = vld [vmem:[%s3405 + $0x108] sm:$0xff]
    %v3424 = vld [vmem:[%s3405 + $0x120] sm:$0xff]
    %v3425 = vld [vmem:[%s3405 + $0x128] sm:$0xff]
    %v3426 = vld [vmem:[%s3405 + $0x140] sm:$0xff]
    %v3427 = vld [vmem:[%s3405 + $0x148] sm:$0xff]
    %v3428 = vld [vmem:[%s3405 + $0x160] sm:$0xff]
    %v3429 = vld [vmem:[%s3405 + $0x168] sm:$0xff]
    %v3430 = vadd.f32 %v3381, %v3406
    %v3431 = vadd.f32 %v3382, %v3407
    %v3432 = vadd.f32 %v3383, %v3408
    %v3433 = vadd.f32 %v3384, %v3409
    %v3434 = vadd.f32 %v3385, %v3410
    %v3435 = vadd.f32 %v3386, %v3411
    %v3436 = vadd.f32 %v3387, %v3412
    %v3437 = vadd.f32 %v3388, %v3413
    %v3438 = vadd.f32 %v3389, %v3414
    %v3439 = vadd.f32 %v3390, %v3415
    %v3440 = vadd.f32 %v3391, %v3416
    %v3441 = vadd.f32 %v3392, %v3417
    %v3442 = vadd.f32 %v3393, %v3418
    %v3443 = vadd.f32 %v3394, %v3419
    %v3444 = vadd.f32 %v3395, %v3420
    %v3445 = vadd.f32 %v3396, %v3421
    %v3446 = vadd.f32 %v3397, %v3422
    %v3447 = vadd.f32 %v3398, %v3423
    %v3448 = vadd.f32 %v3399, %v3424
    %v3449 = vadd.f32 %v3400, %v3425
    %v3450 = vadd.f32 %v3401, %v3426
    %v3451 = vadd.f32 %v3402, %v3427
    %v3452 = vadd.f32 %v3403, %v3428
    %v3453 = vadd.f32 %v3404, %v3429
    %s3454 = scalar_lea.vmem [#allocation3], 32
    %v3455 = vld [vmem:[%s3454] sm:$0xff]
    %v3456 = vld [vmem:[%s3454 + $0x8] sm:$0xff]
    %v3457 = vld [vmem:[%s3454 + $0x20] sm:$0xff]
    %v3458 = vld [vmem:[%s3454 + $0x28] sm:$0xff]
    %v3459 = vld [vmem:[%s3454 + $0x40] sm:$0xff]
    %v3460 = vld [vmem:[%s3454 + $0x48] sm:$0xff]
    %v3461 = vld [vmem:[%s3454 + $0x60] sm:$0xff]
    %v3462 = vld [vmem:[%s3454 + $0x68] sm:$0xff]
    %v3463 = vld [vmem:[%s3454 + $0x80] sm:$0xff]
    %v3464 = vld [vmem:[%s3454 + $0x88] sm:$0xff]
    %v3465 = vld [vmem:[%s3454 + $0xa0] sm:$0xff]
    %v3466 = vld [vmem:[%s3454 + $0xa8] sm:$0xff]
    %v3467 = vld [vmem:[%s3454 + $0xc0] sm:$0xff]
    %v3468 = vld [vmem:[%s3454 + $0xc8] sm:$0xff]
    %v3469 = vld [vmem:[%s3454 + $0xe0] sm:$0xff]
    %v3470 = vld [vmem:[%s3454 + $0xe8] sm:$0xff]
    %v3471 = vld [vmem:[%s3454 + $0x100] sm:$0xff]
    %v3472 = vld [vmem:[%s3454 + $0x108] sm:$0xff]
    %v3473 = vld [vmem:[%s3454 + $0x120] sm:$0xff]
    %v3474 = vld [vmem:[%s3454 + $0x128] sm:$0xff]
    %v3475 = vld [vmem:[%s3454 + $0x140] sm:$0xff]
    %v3476 = vld [vmem:[%s3454 + $0x148] sm:$0xff]
    %v3477 = vld [vmem:[%s3454 + $0x160] sm:$0xff]
    %v3478 = vld [vmem:[%s3454 + $0x168] sm:$0xff]
    %v3479 = vadd.f32 %v3430, %v3455
    %v3480 = vadd.f32 %v3431, %v3456
    %v3481 = vadd.f32 %v3432, %v3457
    %v3482 = vadd.f32 %v3433, %v3458
    %v3483 = vadd.f32 %v3434, %v3459
    %v3484 = vadd.f32 %v3435, %v3460
    %v3485 = vadd.f32 %v3436, %v3461
    %v3486 = vadd.f32 %v3437, %v3462
    %v3487 = vadd.f32 %v3438, %v3463
    %v3488 = vadd.f32 %v3439, %v3464
    %v3489 = vadd.f32 %v3440, %v3465
    %v3490 = vadd.f32 %v3441, %v3466
    %v3491 = vadd.f32 %v3442, %v3467
    %v3492 = vadd.f32 %v3443, %v3468
    %v3493 = vadd.f32 %v3444, %v3469
    %v3494 = vadd.f32 %v3445, %v3470
    %v3495 = vadd.f32 %v3446, %v3471
    %v3496 = vadd.f32 %v3447, %v3472
    %v3497 = vadd.f32 %v3448, %v3473
    %v3498 = vadd.f32 %v3449, %v3474
    %v3499 = vadd.f32 %v3450, %v3475
    %v3500 = vadd.f32 %v3451, %v3476
    %v3501 = vadd.f32 %v3452, %v3477
    %v3502 = vadd.f32 %v3453, %v3478
    %v3503 = vmul.f32 %v3479, 0.33333334
    %v3504 = vmul.f32 %v3480, 0.33333334
    %v3505 = vmul.f32 %v3481, 0.33333334
    %v3506 = vmul.f32 %v3482, 0.33333334
    %v3507 = vmul.f32 %v3483, 0.33333334
    %v3508 = vmul.f32 %v3484, 0.33333334
    %v3509 = vmul.f32 %v3485, 0.33333334
    %v3510 = vmul.f32 %v3486, 0.33333334
    %v3511 = vmul.f32 %v3487, 0.33333334
    %v3512 = vmul.f32 %v3488, 0.33333334
    %v3513 = vmul.f32 %v3489, 0.33333334
    %v3514 = vmul.f32 %v3490, 0.33333334
    %v3515 = vmul.f32 %v3491, 0.33333334
    %v3516 = vmul.f32 %v3492, 0.33333334
    %v3517 = vmul.f32 %v3493, 0.33333334
    %v3518 = vmul.f32 %v3494, 0.33333334
    %v3519 = vmul.f32 %v3495, 0.33333334
    %v3520 = vmul.f32 %v3496, 0.33333334
    %v3521 = vmul.f32 %v3497, 0.33333334
    %v3522 = vmul.f32 %v3498, 0.33333334
    %v3523 = vmul.f32 %v3499, 0.33333334
    %v3524 = vmul.f32 %v3500, 0.33333334
    %v3525 = vmul.f32 %v3501, 0.33333334
    %v3526 = vmul.f32 %v3502, 0.33333334
    %v3527 = vld [vmem:[%s3] sm:$0xff]
    %v3528 = vld [vmem:[%s3 + $0x8] sm:$0xff]
    %v3529 = vld [vmem:[%s3 + $0x10] sm:$0xff]
    %v3530 = vld [vmem:[%s3 + $0x18] sm:$0xff]
    %v3531 = vld [vmem:[%s3 + $0x20] sm:$0xff]
    %v3532 = vld [vmem:[%s3 + $0x28] sm:$0xff]
    %v3533 = vld [vmem:[%s3 + $0x30] sm:$0xff]
    %v3534 = vld [vmem:[%s3 + $0x38] sm:$0xff]
    %v3535 = vld [vmem:[%s3 + $0x40] sm:$0xff]
    %v3536 = vld [vmem:[%s3 + $0x48] sm:$0xff]
    %v3537 = vld [vmem:[%s3 + $0x50] sm:$0xff]
    %v3538 = vld [vmem:[%s3 + $0x58] sm:$0xff]
    %v3539 = vlaneseq
    %v3540 = vshrl.u32 %v3539, 7
    %v3541 = vsub.s32 0, %v3540
    %v3542 = vrot.slane %v23, %v3541
    %v3544 = vsel %vm3328, %v3503, 0
    %v3547 = vsel %vm3328, %v3504, 0
    %v3550 = vsel %vm3328, %v3505, 0
    %v3553 = vsel %vm3328, %v3506, 0
    %v3556 = vsel %vm3328, %v3507, 0
    %v3559 = vsel %vm3328, %v3508, 0
    %v3562 = vsel %vm3328, %v3509, 0
    %v3565 = vsel %vm3328, %v3510, 0
    %v3568 = vsel %vm3328, %v3511, 0
    %v3571 = vsel %vm3328, %v3512, 0
    %v3574 = vsel %vm3328, %v3513, 0
    %v3577 = vsel %vm3328, %v3514, 0
    %v3580 = vsel %vm3328, %v3515, 0
    %v3583 = vsel %vm3328, %v3516, 0
    %v3586 = vsel %vm3328, %v3517, 0
    %v3589 = vsel %vm3328, %v3518, 0
    %v3592 = vsel %vm3328, %v3519, 0
    %v3595 = vsel %vm3328, %v3520, 0
    %v3598 = vsel %vm3328, %v3521, 0
    %v3601 = vsel %vm3328, %v3522, 0
    %v3604 = vsel %vm3328, %v3523, 0
    %v3607 = vsel %vm3328, %v3524, 0
    %v3610 = vsel %vm3328, %v3525, 0
    %v3613 = vsel %vm3328, %v3526, 0
    %3615 = vmatprep.subr.mxu0 0.0
    %3616 = vmatpush1.msra.mxu0 0.0
    %3617 = vmatprep.subr.mxu0 0.0
    %3618 = vmatpush1.msra.mxu0 0.0
    %3619 = vmatprep.subr.mxu0 0.0
    %3620 = vmatpush1.msra.mxu0 0.0
    %3621 = vmatprep.subr.mxu0 0.0
    %3622 = vmatpush1.msra.mxu0 0.0
    %3623 = vmatprep.subr.mxu0 0.0
    %3624 = vmatpush1.msra.mxu0 %v3538
    %3625 = vmatprep.subr.mxu0 0.0
    %3626 = vmatpush1.msra.mxu0 %v3537
    %3627 = vmatprep.subr.mxu0 0.0
    %3628 = vmatpush1.msra.mxu0 %v3536
    %3629 = vmatprep.subr.mxu0 0.0
    %3630 = vmatpush1.msra.mxu0 %v3535
    %3631 = vmatprep.subr.mxu0 0.0
    %3632 = vmatpush1.msra.mxu0 %v3534
    %3633 = vmatprep.subr.mxu0 0.0
    %3634 = vmatpush1.msra.mxu0 %v3533
    %3635 = vmatprep.subr.mxu0 0.0
    %3636 = vmatpush1.msra.mxu0 %v3532
    %3637 = vmatprep.subr.mxu0 0.0
    %3638 = vmatpush1.msra.mxu0 %v3531
    %3639 = vmatprep.subr.mxu0 0.0
    %3640 = vmatpush1.msra.mxu0 %v3530
    %3641 = vmatprep.subr.mxu0 0.0
    %3642 = vmatpush1.msra.mxu0 %v3529
    %3643 = vmatprep.subr.mxu0 0.0
    %3644 = vmatpush1.msra.mxu0 %v3528
    %3645 = vmatprep.subr.mxu0 0.0
    %3646 = vmatpush1.msra.mxu0 %v3527
    %3647 = vmatprep.subr.mxu0 0.0
    %3648 = vmatpush2.msra.mxu0 0.0
    %3649 = vmatprep.subr.mxu0 0.0
    %3650 = vmatpush2.msra.mxu0 0.0
    %3651 = vmatprep.subr.mxu0 0.0
    %3652 = vmatpush2.msra.mxu0 0.0
    %3653 = vmatprep.subr.mxu0 0.0
    %3654 = vmatpush2.msra.mxu0 0.0
    %3655 = vmatprep.subr.mxu0 0.0
    %3656 = vmatpush2.msra.mxu0 0.0
    %3657 = vmatprep.subr.mxu0 0.0
    %3658 = vmatpush2.msra.mxu0 0.0
    %3659 = vmatprep.subr.mxu0 0.0
    %3660 = vmatpush2.msra.mxu0 0.0
    %3661 = vmatprep.subr.mxu0 0.0
    %3662 = vmatpush2.msra.mxu0 0.0
    %3663 = vmatprep.subr.mxu0 0.0
    %3664 = vmatpush2.msra.mxu0 0.0
    %3665 = vmatprep.subr.mxu0 0.0
    %3666 = vmatpush2.msra.mxu0 0.0
    %3667 = vmatprep.subr.mxu0 0.0
    %3668 = vmatpush2.msra.mxu0 0.0
    %3669 = vmatprep.subr.mxu0 0.0
    %3670 = vmatpush2.msra.mxu0 0.0
    %3671 = vmatprep.subr.mxu0 0.0
    %3672 = vmatpush2.msra.mxu0 0.0
    %3673 = vmatprep.subr.mxu0 0.0
    %3674 = vmatpush2.msra.mxu0 0.0
    %3675 = vmatprep.subr.mxu0 0.0
    %3676 = vmatpush2.msra.mxu0 0.0
    %3677 = vmatprep.subr.mxu0 0.0
    %3678 = vmatpush2.msra.mxu0 0.0
    %3679 = vmatprep.mubr.f32.mxu0 0.0
    %3680 = vmatmul.mubr.f32.gmra.mxu0 %v3544
    %v3681 = vpop.f32.mrf.mxu0
    %v3682 = vadd.f32 %v3542, %v3681
    %v3683 = vpop.f32.mrf.mxu0
    %3684 = vmatprep.mubr.f32.mxu0 0.0
    %3685 = vmatmul.mubr.f32.gmra.mxu0 %v3547
    %v3686 = vpop.f32.mrf.mxu0
    %v3687 = vadd.f32 %v3542, %v3686
    %v3688 = vpop.f32.mrf.mxu0
    %3689 = vmatprep.mubr.f32.mxu0 0.0
    %3690 = vmatmul.mubr.f32.gmra.mxu0 %v3550
    %v3691 = vpop.f32.mrf.mxu0
    %v3692 = vadd.f32 %v3542, %v3691
    %v3693 = vpop.f32.mrf.mxu0
    %3694 = vmatprep.mubr.f32.mxu0 0.0
    %3695 = vmatmul.mubr.f32.gmra.mxu0 %v3553
    %v3696 = vpop.f32.mrf.mxu0
    %v3697 = vadd.f32 %v3542, %v3696
    %v3698 = vpop.f32.mrf.mxu0
    %3699 = vmatprep.mubr.f32.mxu0 0.0
    %3700 = vmatmul.mubr.f32.gmra.mxu0 %v3556
    %v3701 = vpop.f32.mrf.mxu0
    %v3702 = vadd.f32 %v3542, %v3701
    %v3703 = vpop.f32.mrf.mxu0
    %3704 = vmatprep.mubr.f32.mxu0 0.0
    %3705 = vmatmul.mubr.f32.gmra.mxu0 %v3559
    %v3706 = vpop.f32.mrf.mxu0
    %v3707 = vadd.f32 %v3542, %v3706
    %v3708 = vpop.f32.mrf.mxu0
    %3709 = vmatprep.mubr.f32.mxu0 0.0
    %3710 = vmatmul.mubr.f32.gmra.mxu0 %v3562
    %v3711 = vpop.f32.mrf.mxu0
    %v3712 = vadd.f32 %v3542, %v3711
    %v3713 = vpop.f32.mrf.mxu0
    %3714 = vmatprep.mubr.f32.mxu0 0.0
    %3715 = vmatmul.mubr.f32.gmra.mxu0 %v3565
    %v3716 = vpop.f32.mrf.mxu0
    %v3717 = vadd.f32 %v3542, %v3716
    %v3718 = vpop.f32.mrf.mxu0
    %3719 = vmatprep.mubr.f32.mxu0 0.0
    %3720 = vmatmul.mubr.f32.gmra.mxu0 %v3568
    %v3721 = vpop.f32.mrf.mxu0
    %v3722 = vadd.f32 %v3542, %v3721
    %v3723 = vpop.f32.mrf.mxu0
    %3724 = vmatprep.mubr.f32.mxu0 0.0
    %3725 = vmatmul.mubr.f32.gmra.mxu0 %v3571
    %v3726 = vpop.f32.mrf.mxu0
    %v3727 = vadd.f32 %v3542, %v3726
    %v3728 = vpop.f32.mrf.mxu0
    %3729 = vmatprep.mubr.f32.mxu0 0.0
    %3730 = vmatmul.mubr.f32.gmra.mxu0 %v3574
    %v3731 = vpop.f32.mrf.mxu0
    %v3732 = vadd.f32 %v3542, %v3731
    %v3733 = vpop.f32.mrf.mxu0
    %3734 = vmatprep.mubr.f32.mxu0 0.0
    %3735 = vmatmul.mubr.f32.gmra.mxu0 %v3577
    %v3736 = vpop.f32.mrf.mxu0
    %v3737 = vadd.f32 %v3542, %v3736
    %v3738 = vpop.f32.mrf.mxu0
    %3739 = vmatprep.mubr.f32.mxu0 0.0
    %3740 = vmatmul.mubr.f32.gmra.mxu0 %v3580
    %v3741 = vpop.f32.mrf.mxu0
    %v3742 = vadd.f32 %v3542, %v3741
    %v3743 = vpop.f32.mrf.mxu0
    %3744 = vmatprep.mubr.f32.mxu0 0.0
    %3745 = vmatmul.mubr.f32.gmra.mxu0 %v3583
    %v3746 = vpop.f32.mrf.mxu0
    %v3747 = vadd.f32 %v3542, %v3746
    %v3748 = vpop.f32.mrf.mxu0
    %3749 = vmatprep.mubr.f32.mxu0 0.0
    %3750 = vmatmul.mubr.f32.gmra.mxu0 %v3586
    %v3751 = vpop.f32.mrf.mxu0
    %v3752 = vadd.f32 %v3542, %v3751
    %v3753 = vpop.f32.mrf.mxu0
    %3754 = vmatprep.mubr.f32.mxu0 0.0
    %3755 = vmatmul.mubr.f32.gmra.mxu0 %v3589
    %v3756 = vpop.f32.mrf.mxu0
    %v3757 = vadd.f32 %v3542, %v3756
    %v3758 = vpop.f32.mrf.mxu0
    %3759 = vmatprep.mubr.f32.mxu0 0.0
    %3760 = vmatmul.mubr.f32.gmra.mxu0 %v3592
    %v3761 = vpop.f32.mrf.mxu0
    %v3762 = vadd.f32 %v3542, %v3761
    %v3763 = vpop.f32.mrf.mxu0
    %3764 = vmatprep.mubr.f32.mxu0 0.0
    %3765 = vmatmul.mubr.f32.gmra.mxu0 %v3595
    %v3766 = vpop.f32.mrf.mxu0
    %v3767 = vadd.f32 %v3542, %v3766
    %v3768 = vpop.f32.mrf.mxu0
    %3769 = vmatprep.mubr.f32.mxu0 0.0
    %3770 = vmatmul.mubr.f32.gmra.mxu0 %v3598
    %v3771 = vpop.f32.mrf.mxu0
    %v3772 = vadd.f32 %v3542, %v3771
    %v3773 = vpop.f32.mrf.mxu0
    %3774 = vmatprep.mubr.f32.mxu0 0.0
    %3775 = vmatmul.mubr.f32.gmra.mxu0 %v3601
    %v3776 = vpop.f32.mrf.mxu0
    %v3777 = vadd.f32 %v3542, %v3776
    %v3778 = vpop.f32.mrf.mxu0
    %3779 = vmatprep.mubr.f32.mxu0 0.0
    %3780 = vmatmul.mubr.f32.gmra.mxu0 %v3604
    %v3781 = vpop.f32.mrf.mxu0
    %v3782 = vadd.f32 %v3542, %v3781
    %v3783 = vpop.f32.mrf.mxu0
    %3784 = vmatprep.mubr.f32.mxu0 0.0
    %3785 = vmatmul.mubr.f32.gmra.mxu0 %v3607
    %v3786 = vpop.f32.mrf.mxu0
    %v3787 = vadd.f32 %v3542, %v3786
    %v3788 = vpop.f32.mrf.mxu0
    %3789 = vmatprep.mubr.f32.mxu0 0.0
    %3790 = vmatmul.mubr.f32.gmra.mxu0 %v3610
    %v3791 = vpop.f32.mrf.mxu0
    %v3792 = vadd.f32 %v3542, %v3791
    %v3793 = vpop.f32.mrf.mxu0
    %3794 = vmatprep.mubr.f32.mxu0 0.0
    %3795 = vmatmul.mubr.f32.gmra.mxu0 %v3613
    %v3796 = vpop.f32.mrf.mxu0
    %v3797 = vadd.f32 %v3542, %v3796
    %v3798 = vpop.f32.mrf.mxu0
    %3799 = vdwg.mxu0
    %3800 = vst [vmem:[#allocation4] sm:$0xff] %v3682
    %3801 = vst [vmem:[#allocation4 + $0x8] sm:$0xff] %v3687
    %3802 = vst [vmem:[#allocation4 + $0x10] sm:$0xff] %v3692
    %3803 = vst [vmem:[#allocation4 + $0x18] sm:$0xff] %v3697
    %3804 = vst [vmem:[#allocation4 + $0x20] sm:$0xff] %v3702
    %3805 = vst [vmem:[#allocation4 + $0x28] sm:$0xff] %v3707
    %3806 = vst [vmem:[#allocation4 + $0x30] sm:$0xff] %v3712
    %3807 = vst [vmem:[#allocation4 + $0x38] sm:$0xff] %v3717
    %3808 = vst [vmem:[#allocation4 + $0x40] sm:$0xff] %v3722
    %3809 = vst [vmem:[#allocation4 + $0x48] sm:$0xff] %v3727
    %3810 = vst [vmem:[#allocation4 + $0x50] sm:$0xff] %v3732
    %3811 = vst [vmem:[#allocation4 + $0x58] sm:$0xff] %v3737
    %3812 = vst [vmem:[#allocation4 + $0x60] sm:$0xff] %v3742
    %3813 = vst [vmem:[#allocation4 + $0x68] sm:$0xff] %v3747
    %3814 = vst [vmem:[#allocation4 + $0x70] sm:$0xff] %v3752
    %3815 = vst [vmem:[#allocation4 + $0x78] sm:$0xff] %v3757
    %3816 = vst [vmem:[#allocation4 + $0x80] sm:$0xff] %v3762
    %3817 = vst [vmem:[#allocation4 + $0x88] sm:$0xff] %v3767
    %3818 = vst [vmem:[#allocation4 + $0x90] sm:$0xff] %v3772
    %3819 = vst [vmem:[#allocation4 + $0x98] sm:$0xff] %v3777
    %3820 = vst [vmem:[#allocation4 + $0xa0] sm:$0xff] %v3782
    %3821 = vst [vmem:[#allocation4 + $0xa8] sm:$0xff] %v3787
    %3822 = vst [vmem:[#allocation4 + $0xb0] sm:$0xff] %v3792
    %3823 = vst [vmem:[#allocation4 + $0xb8] sm:$0xff] %v3797
    // Predicated region
    $region22: #{tpu_custom_call.1} parent=1 // pred_check
      _
    $region23: #{tpu_custom_call.1} parent=1 // pred_check_branch
      %3825 = sbr.rel (0) target = $region25
    $region24: #{tpu_custom_call.1} parent=1 // pred_region
      %s3827 = ssub.s32 3072, 3072
      %3828 = vsyncadd [#allocation5], %s3827
      %s3829 = sshll.u32 [#allocation4], 4
      %s3830 = int_to_ptr.vmem [resolvable:$true] %s3829
      %3835 = dma.vmem_to_hbm [thread:$0]  %s3830, 3072, %s5, [#allocation5], 128, 128, 8
    $region25: #{tpu_custom_call.1} parent=1 // pred_fallthru
      _
    // Predicated region
    $region26: #{tpu_custom_call.1} parent=1 // pred_check
      _
    $region27: #{tpu_custom_call.1} parent=1 // pred_check_branch
      %3837 = sbr.rel (0) target = $region29
    $region28: #{tpu_custom_call.1} parent=1 // pred_region
      %3838 = dma.done [#allocation5], 3072
    $region29: #{tpu_custom_call.1} parent=1 // pred_fallthru
      _
    %3839 = vsyncpa [#allocation5], 1

</llo_original>
